<compile_context>
chip_gen: v7x
topology: tpu7x:2x2x1
jax: 0.10.0
libtpu: 0.0.40
codegen_flags: <defaults>
</compile_context>

<pallas_src>
import jax
import jax.numpy as jnp
from jax import lax
from jax.experimental import pallas as pl
from jax.experimental.pallas import tpu as pltpu

# Scaled-down model hyper-parameters (real model: mel=40, hidden=256, embed=256).
MEL_N_CHANNELS = 40
HIDDEN = 32          # model_hidden_size (small)
EMBED = 32           # model_embedding_size (small)
NUM_LAYERS = 3       # model_num_layers

LANE = 128           # TPU lane width
SUBLANE = 8          # f32 sublane tile


def _ceil_to(x, m):
    return (x + m - 1) // m * m


# --------------------------------------------------------------------------- #
# Kernel
# --------------------------------------------------------------------------- #
def voice_encoder_kernel(x_ref, w_ih0_ref, b0_ref, w_hh0_ref,
                         w_cat1_ref, b1_ref, w_cat2_ref, b2_ref,
                         w_lin_ref, b_lin_ref,
                         out_ref, xproj_ref):
    T, Bt, Dp = x_ref.shape
    G = w_hh0_ref.shape[1]          # 4 * Hp
    Hp = G // 4
    f32, bf16 = jnp.float32, jnp.bfloat16

    # ---- Layer-0 input projection hoisted out of the recurrence -------------
    # One well-shaped (T*Bt, Dp) @ (Dp, 4Hp) MXU matmul; bias folded in once.
    x2 = x_ref[...].reshape(T * Bt, Dp).astype(bf16)
    xp = jnp.dot(x2, w_ih0_ref[...], preferred_element_type=f32)
    xproj_ref[...] = xp.reshape(T, Bt, G) + b0_ref[...]

    # Loop-invariant biases (pre-broadcast to (Bt, G) host-side, so no
    # per-iteration broadcast_in_dim is emitted inside the loop).
    b1 = b1_ref[...]
    b2 = b2_ref[...]

    def lstm_cell(gates, c):
        # PyTorch gate order (i, f, g, o); each slice is a full 128-lane tile.
        i = jax.nn.sigmoid(gates[:, 0 * Hp:1 * Hp])
        f = jax.nn.sigmoid(gates[:, 1 * Hp:2 * Hp])
        g = jnp.tanh(gates[:, 2 * Hp:3 * Hp])
        o = jax.nn.sigmoid(gates[:, 3 * Hp:4 * Hp])
        c = f * c + i * g
        return o * jnp.tanh(c), c

    def step(t, carry):
        h0, c0, h1, c1, h2, c2 = carry
        # Layer 0: only h @ W_hh remains on the serial dependency chain.
        g0 = xproj_ref[t] + jnp.dot(h0.astype(bf16), w_hh0_ref[...],
                                    preferred_element_type=f32)
        h0, c0 = lstm_cell(g0, c0)
        # Layers 1/2: fused [x_t ; h] @ [W_ih ; W_hh] -> one MXU push per step.
        g1 = jnp.dot(jnp.concatenate([h0, h1], axis=1).astype(bf16),
                     w_cat1_ref[...], preferred_element_type=f32) + b1
        h1, c1 = lstm_cell(g1, c1)
        g2 = jnp.dot(jnp.concatenate([h1, h2], axis=1).astype(bf16),
                     w_cat2_ref[...], preferred_element_type=f32) + b2
        h2, c2 = lstm_cell(g2, c2)
        return h0, c0, h1, c1, h2, c2

    # Manually unrolled time loop: U steps per fori iteration gives the LLO
    # scheduler several semi-independent gate computations to overlap.
    U = 4 if T % 4 == 0 else (2 if T % 2 == 0 else 1)

    def unrolled(s, carry):
        for u in range(U):
            carry = step(s * U + u, carry)
        return carry

    z = jnp.zeros((Bt, Hp), f32)
    carry = lax.fori_loop(0, T // U, unrolled, (z, z, z, z, z, z))
    h_last = carry[4]               # final hidden state of the LAST layer

    # Linear -> ReLU -> L2 normalize (rsqrt + multiply; no divide).
    e = jnp.maximum(
        jnp.dot(h_last.astype(bf16), w_lin_ref[...], preferred_element_type=f32)
        + b_lin_ref[...], 0.0)
    out_ref[...] = e * lax.rsqrt(jnp.sum(e * e, axis=1, keepdims=True))


# --------------------------------------------------------------------------- #
# Parameters (synthetic, PyTorch-style init) + host-side padding / packing
# --------------------------------------------------------------------------- #
def make_params(key, mel=MEL_N_CHANNELS, hidden=HIDDEN, embed=EMBED,
                num_layers=NUM_LAYERS):
    """Deterministic synthetic weights, PyTorch-style U(-1/sqrt(H), 1/sqrt(H)).
    Stored already transposed for `x @ W`: (din, 4H), (H, 4H)."""
    bound = 1.0 / jnp.sqrt(hidden)
    params = {}
    for l in range(num_layers):
        din = mel if l == 0 else hidden
        key, k1, k2, k3, k4 = jax.random.split(key, 5)
        params[f"w_ih{l}"] = jax.random.uniform(k1, (din, 4 * hidden), jnp.float32,
                                                -bound, bound)
        params[f"w_hh{l}"] = jax.random.uniform(k2, (hidden, 4 * hidden), jnp.float32,
                                                -bound, bound)
        b_ih = jax.random.uniform(k3, (4 * hidden,), jnp.float32, -bound, bound)
        b_hh = jax.random.uniform(k4, (4 * hidden,), jnp.float32, -bound, bound)
        params[f"b{l}"] = (b_ih + b_hh).reshape(1, 4 * hidden)
    key, k1, k2 = jax.random.split(key, 3)
    params["w_lin"] = jax.random.uniform(k1, (hidden, embed), jnp.float32,
                                         -bound, bound)
    params["b_lin"] = jax.random.uniform(k2, (embed,), jnp.float32,
                                         -bound, bound).reshape(1, embed)
    return params


def _prepare_kernel_params(params, Dp, Hp, Ep, Bt):
    """Pad per-gate to Hp lanes, pad contraction dims, fuse [W_ih; W_hh] for
    layers 1/2, pre-broadcast biases, cast matmul weights to bf16."""
    H, E = HIDDEN, EMBED
    bf16 = jnp.bfloat16

    def pad_gate_cols(w):
        # (..., 4H) -> (..., 4Hp): zero-pad each gate block separately so the
        # PyTorch (i,f,g,o) gate layout lands on 128-lane-aligned slices.
        lead = w.shape[:-1]
        w4 = w.reshape(lead + (4, H))
        return (jnp.zeros(lead + (4, Hp), w.dtype).at[..., :H].set(w4)
                ).reshape(lead + (4 * Hp,))

    def pad_rows(w, rows):
        return jnp.zeros((rows,) + w.shape[1:], w.dtype).at[:w.shape[0]].set(w)

    out = {}
    out["w_ih0"] = pad_rows(pad_gate_cols(params["w_ih0"]), Dp).astype(bf16)
    out["w_hh0"] = pad_rows(pad_gate_cols(params["w_hh0"]), Hp).astype(bf16)
    out["b0"] = jnp.broadcast_to(pad_gate_cols(params["b0"]), (Bt, 4 * Hp))
    for l in (1, 2):
        w_ih = pad_rows(pad_gate_cols(params[f"w_ih{l}"]), Hp)
        w_hh = pad_rows(pad_gate_cols(params[f"w_hh{l}"]), Hp)
        out[f"w_cat{l}"] = jnp.concatenate([w_ih, w_hh], axis=0).astype(bf16)
        out[f"b{l}"] = jnp.broadcast_to(pad_gate_cols(params[f"b{l}"]), (Bt, 4 * Hp))
    out["w_lin"] = (jnp.zeros((Hp, Ep), jnp.float32)
                    .at[:H, :E].set(params["w_lin"])).astype(bf16)
    out["b_lin"] = jnp.broadcast_to(
        jnp.zeros((1, Ep), jnp.float32).at[:, :E].set(params["b_lin"]), (Bt, Ep))
    return out


# --------------------------------------------------------------------------- #
# Wrapper
# --------------------------------------------------------------------------- #
def voice_encoder_forward(mels, params):
    """mels: (B, T, mel) float32, batch-first like the PyTorch module."""
    B, T, D = mels.shape
    Hp = _ceil_to(HIDDEN, LANE)
    Ep = _ceil_to(EMBED, LANE)
    Dp = _ceil_to(D, LANE)
    G = 4 * Hp
    Bt = SUBLANE                           # per-grid-step batch tile
    B_pad = _ceil_to(max(B, Bt), Bt)
    n_b = B_pad // Bt

    kp = _prepare_kernel_params(params, Dp, Hp, Ep, Bt)

    # Time-major, zero-padded input (f32; cast to bf16 inside the kernel).
    x = jnp.transpose(mels, (1, 0, 2)).astype(jnp.float32)           # (T, B, D)
    x = jnp.zeros((T, B_pad, Dp), jnp.float32).at[:, :B, :D].set(x)  # padded

    weight_args = [kp["w_ih0"], kp["b0"], kp["w_hh0"],
                   kp["w_cat1"], kp["b1"], kp["w_cat2"], kp["b2"],
                   kp["w_lin"], kp["b_lin"]]

    def full_spec(a):
        return pl.BlockSpec(a.shape, lambda b: (0,) * a.ndim)

    # VMEM budget from actual buffer sizes (x2 for pipeline double-buffering),
    # with slack, capped safely below v7x's 64 MiB physical VMEM.
    nbytes = lambda a: a.size * a.dtype.itemsize
    block_bytes = (T * Bt * Dp * 4 + sum(nbytes(a) for a in weight_args)
                   + Bt * Ep * 4)
    scratch_bytes = T * Bt * G * 4
    vmem_limit = int(min(max(2 * block_bytes + scratch_bytes + (4 << 20),
                             8 << 20), 56 << 20))

    out = pl.pallas_call(
        voice_encoder_kernel,
        out_shape=jax.ShapeDtypeStruct((B_pad, Ep), jnp.float32),
        grid_spec=pltpu.PrefetchScalarGridSpec(
            num_scalar_prefetch=0,
            grid=(n_b,),                                   # batch-parallel axis
            in_specs=[pl.BlockSpec((T, Bt, Dp), lambda b: (0, b, 0))]
                     + [full_spec(a) for a in weight_args],
            out_specs=pl.BlockSpec((Bt, Ep), lambda b: (b, 0)),
            scratch_shapes=[pltpu.VMEM((T, Bt, G), jnp.float32)],   # xproj
        ),
        compiler_params=pltpu.CompilerParams(
            dimension_semantics=("parallel",),
            vmem_limit_bytes=vmem_limit,
        ),
    )(x, *weight_args)

    return out[:B, :EMBED]


# --------------------------------------------------------------------------- #
# Pure-JAX reference (mirrors the kernel's bf16-matmul / f32-accumulate math)
# --------------------------------------------------------------------------- #
def voice_encoder_reference(mels, params):
    x = jnp.transpose(mels, (1, 0, 2)).astype(jnp.float32)      # (T, B, D)
    T, B, _ = x.shape
    H = HIDDEN
    bf16, f32 = jnp.bfloat16, jnp.float32

    def run_layer(seq, w_ih, w_hh, b):
        w_ih = w_ih.astype(bf16)
        w_hh = w_hh.astype(bf16)

        def step(carry, x_t):
            h, c = carry
            gates = (jnp.dot(x_t.astype(bf16), w_ih, preferred_element_type=f32)
                     + jnp.dot(h.astype(bf16), w_hh, preferred_element_type=f32)
                     + b)
            i = jax.nn.sigmoid(gates[:, 0:H])
            f = jax.nn.sigmoid(gates[:, H:2 * H])
            g = jnp.tanh(gates[:, 2 * H:3 * H])
            o = jax.nn.sigmoid(gates[:, 3 * H:4 * H])
            c = f * c + i * g
            h = o * jnp.tanh(c)
            return (h, c), h

        (h, _), hs = lax.scan(step, (jnp.zeros((B, H)), jnp.zeros((B, H))), seq)
        return hs, h

    hs, _ = run_layer(x, params["w_ih0"], params["w_hh0"], params["b0"])
    hs, _ = run_layer(hs, params["w_ih1"], params["w_hh1"], params["b1"])
    _, h_last = run_layer(hs, params["w_ih2"], params["w_hh2"], params["b2"])
    e = jnp.maximum(
        jnp.dot(h_last.astype(bf16), params["w_lin"].astype(bf16),
                preferred_element_type=f32) + params["b_lin"], 0.0)
    return e / jnp.linalg.norm(e, axis=1, keepdims=True)


if __name__ == "__main__":
    key = jax.random.PRNGKey(0)
    k_params, k_x = jax.random.split(key)
    params = make_params(k_params)

    B, T = 2, 8
    mels = jax.random.normal(k_x, (B, T, MEL_N_CHANNELS), jnp.float32)

    out = jax.block_until_ready(voice_encoder_forward(mels, params))
    ref = jax.block_until_ready(voice_encoder_reference(mels, params))

    assert out.shape == (B, EMBED)
    assert bool(jnp.all(jnp.isfinite(out)))
    assert jnp.allclose(out, ref, atol=5e-3, rtol=5e-3), (
        f"mismatch vs reference: max|diff|={float(jnp.max(jnp.abs(out - ref)))}")

    # TODO(synk): checkpoint loading / CUDA-device plumbing from __init__ and the
    # embed_utterance wav->mel preprocessing are host-side glue with no kernel
    # equivalent; weights are synthetic and deterministic here.
    print("KERNEL_OK")
</pallas_src>

<mosaic_0001>
module attributes {stable_mosaic.version = 11 : i64} {
  func.func @voice_encoder_kernel(%arg0: i32, %arg1: memref<8x8x128xf32, #tpu.memory_space<vmem>>, %arg2: memref<128x512xbf16, #tpu.memory_space<vmem>>, %arg3: memref<8x512xf32, #tpu.memory_space<vmem>>, %arg4: memref<128x512xbf16, #tpu.memory_space<vmem>>, %arg5: memref<256x512xbf16, #tpu.memory_space<vmem>>, %arg6: memref<8x512xf32, #tpu.memory_space<vmem>>, %arg7: memref<256x512xbf16, #tpu.memory_space<vmem>>, %arg8: memref<8x512xf32, #tpu.memory_space<vmem>>, %arg9: memref<128x128xbf16, #tpu.memory_space<vmem>>, %arg10: memref<8x128xf32, #tpu.memory_space<vmem>>, %arg11: memref<8x128xf32, #tpu.memory_space<vmem>>, %arg12: memref<8x8x512xf32, #tpu.memory_space<vmem>>) attributes {dimension_semantics = [#tpu.dimension_semantics<parallel>], iteration_bounds = array<i64: 1>, scalar_prefetch = 0 : i64, scratch_operands = 1 : i64, tpu.core_type = #tpu.core_type<tc>, window_params = [{transform_indices = @transform_0, window_bounds = array<i64: 8, 8, 128>}, {pipeline_mode = #tpu.pipeline_mode<synchronous>, transform_indices = @transform_1, window_bounds = array<i64: 128, 512>}, {pipeline_mode = #tpu.pipeline_mode<synchronous>, transform_indices = @transform_2, window_bounds = array<i64: 8, 512>}, {pipeline_mode = #tpu.pipeline_mode<synchronous>, transform_indices = @transform_3, window_bounds = array<i64: 128, 512>}, {pipeline_mode = #tpu.pipeline_mode<synchronous>, transform_indices = @transform_4, window_bounds = array<i64: 256, 512>}, {pipeline_mode = #tpu.pipeline_mode<synchronous>, transform_indices = @transform_5, window_bounds = array<i64: 8, 512>}, {pipeline_mode = #tpu.pipeline_mode<synchronous>, transform_indices = @transform_6, window_bounds = array<i64: 256, 512>}, {pipeline_mode = #tpu.pipeline_mode<synchronous>, transform_indices = @transform_7, window_bounds = array<i64: 8, 512>}, {pipeline_mode = #tpu.pipeline_mode<synchronous>, transform_indices = @transform_8, window_bounds = array<i64: 128, 128>}, {pipeline_mode = #tpu.pipeline_mode<synchronous>, transform_indices = @transform_9, window_bounds = array<i64: 8, 128>}, {transform_indices = @transform_10, window_bounds = array<i64: 8, 128>}]} {
    %c0 = arith.constant 0 : index
    %c0_0 = arith.constant 0 : index
    %c0_1 = arith.constant 0 : index
    %0 = vector.load %arg1[%c0, %c0_0, %c0_1] : memref<8x8x128xf32, #tpu.memory_space<vmem>>, vector<8x8x128xf32>
    %1 = vector.shape_cast %0 : vector<8x8x128xf32> to vector<64x128xf32>
    %2 = arith.truncf %1 : vector<64x128xf32> to vector<64x128xbf16>
    %c0_2 = arith.constant 0 : index
    %c0_3 = arith.constant 0 : index
    %3 = vector.load %arg2[%c0_2, %c0_3] : memref<128x512xbf16, #tpu.memory_space<vmem>>, vector<128x512xbf16>
    %cst = arith.constant dense<0.000000e+00> : vector<64x512xf32>
    %4 = tpu.matmul %2, %3, %cst {dimension_numbers = #tpu.dot_dimension_numbers<[1], [0], [0], [1], [0, 0, 1, 1], [], []>} : vector<64x128xbf16>, vector<128x512xbf16>, vector<64x512xf32> -> vector<64x512xf32>
    %5 = vector.shape_cast %4 : vector<64x512xf32> to vector<8x8x512xf32>
    %c0_4 = arith.constant 0 : index
    %c0_5 = arith.constant 0 : index
    %6 = vector.load %arg3[%c0_4, %c0_5] : memref<8x512xf32, #tpu.memory_space<vmem>>, vector<8x512xf32>
    %7 = vector.shape_cast %6 : vector<8x512xf32> to vector<1x8x512xf32>
    %8 = vector.broadcast %7 : vector<1x8x512xf32> to vector<8x8x512xf32>
    %9 = arith.addf %5, %8 : vector<8x8x512xf32>
    %c0_6 = arith.constant 0 : index
    %c0_7 = arith.constant 0 : index
    %c0_8 = arith.constant 0 : index
    %10 = vector.load %arg12[%c0_6, %c0_7, %c0_8] : memref<8x8x512xf32, #tpu.memory_space<vmem>>, vector<8x8x512xf32>
    tpu.vector_store %arg12[%c0_6, %c0_7, %c0_8], %9 {strides = array<i32>} : memref<8x8x512xf32, #tpu.memory_space<vmem>>, vector<8x8x512xf32>,
    %c0_9 = arith.constant 0 : index
    %c0_10 = arith.constant 0 : index
    %11 = vector.load %arg6[%c0_9, %c0_10] : memref<8x512xf32, #tpu.memory_space<vmem>>, vector<8x512xf32>
    %c0_11 = arith.constant 0 : index
    %c0_12 = arith.constant 0 : index
    %12 = vector.load %arg8[%c0_11, %c0_12] : memref<8x512xf32, #tpu.memory_space<vmem>>, vector<8x512xf32>
    %cst_13 = arith.constant 0.000000e+00 : f32
    %13 = vector.broadcast %cst_13 : f32 to vector<8x128xf32>
    %c0_i32 = arith.constant 0 : i32
    %c2_i32 = arith.constant 2 : i32
    %14 = arith.addi %c0_i32, %c2_i32 : i32
    %c1_i32 = arith.constant 1 : i32
    %15:6 = scf.for %arg13 = %c0_i32 to %14 step %c1_i32 iter_args(%arg14 = %13, %arg15 = %13, %arg16 = %13, %arg17 = %13, %arg18 = %13, %arg19 = %13) -> (vector<8x128xf32>, vector<8x128xf32>, vector<8x128xf32>, vector<8x128xf32>, vector<8x128xf32>, vector<8x128xf32>)  : i32 {
      %c4_i32 = arith.constant 4 : i32
      %30 = arith.muli %arg13, %c4_i32 : i32
      %c0_i32_24 = arith.constant 0 : i32
      %31 = arith.addi %30, %c0_i32_24 : i32
      %32 = arith.index_cast %31 : i32 to index
      %c0_25 = arith.constant 0 : index
      %c0_26 = arith.constant 0 : index
      %33 = vector.load %arg12[%32, %c0_25, %c0_26] : memref<8x8x512xf32, #tpu.memory_space<vmem>>, vector<1x8x512xf32>
      %34 = vector.shape_cast %33 : vector<1x8x512xf32> to vector<8x512xf32>
      %35 = arith.truncf %arg14 : vector<8x128xf32> to vector<8x128xbf16>
      %c0_27 = arith.constant 0 : index
      %c0_28 = arith.constant 0 : index
      %36 = vector.load %arg4[%c0_27, %c0_28] : memref<128x512xbf16, #tpu.memory_space<vmem>>, vector<128x512xbf16>
      %cst_29 = arith.constant dense<0.000000e+00> : vector<8x512xf32>
      %37 = tpu.matmul %35, %36, %cst_29 {dimension_numbers = #tpu.dot_dimension_numbers<[1], [0], [0], [1], [0, 0, 1, 1], [], []>} : vector<8x128xbf16>, vector<128x512xbf16>, vector<8x512xf32> -> vector<8x512xf32>
      %38 = arith.addf %34, %37 : vector<8x512xf32>
      %39 = vector.extract_strided_slice %38 {offsets = [0, 0], sizes = [8, 128], strides = [1, 1]} : vector<8x512xf32> to vector<8x128xf32>
      %40 = arith.negf %39 : vector<8x128xf32>
      %41 = math.exp %40 : vector<8x128xf32>
      %cst_30 = arith.constant 1.000000e+00 : f32
      %42 = vector.broadcast %cst_30 : f32 to vector<8x128xf32>
      %43 = arith.addf %42, %41 : vector<8x128xf32>
      %44 = arith.divf %42, %43 : vector<8x128xf32>
      %45 = vector.extract_strided_slice %38 {offsets = [0, 128], sizes = [8, 128], strides = [1, 1]} : vector<8x512xf32> to vector<8x128xf32>
      %46 = arith.negf %45 : vector<8x128xf32>
      %47 = math.exp %46 : vector<8x128xf32>
      %cst_31 = arith.constant 1.000000e+00 : f32
      %48 = vector.broadcast %cst_31 : f32 to vector<8x128xf32>
      %49 = arith.addf %48, %47 : vector<8x128xf32>
      %50 = arith.divf %48, %49 : vector<8x128xf32>
      %51 = vector.extract_strided_slice %38 {offsets = [0, 256], sizes = [8, 128], strides = [1, 1]} : vector<8x512xf32> to vector<8x128xf32>
      %52 = math.tanh %51 : vector<8x128xf32>
      %53 = vector.extract_strided_slice %38 {offsets = [0, 384], sizes = [8, 128], strides = [1, 1]} : vector<8x512xf32> to vector<8x128xf32>
      %54 = arith.negf %53 : vector<8x128xf32>
      %55 = math.exp %54 : vector<8x128xf32>
      %cst_32 = arith.constant 1.000000e+00 : f32
      %56 = vector.broadcast %cst_32 : f32 to vector<8x128xf32>
      %57 = arith.addf %56, %55 : vector<8x128xf32>
      %58 = arith.divf %56, %57 : vector<8x128xf32>
      %59 = arith.mulf %50, %arg15 : vector<8x128xf32>
      %60 = arith.mulf %44, %52 : vector<8x128xf32>
      %61 = arith.addf %59, %60 : vector<8x128xf32>
      %62 = math.tanh %61 : vector<8x128xf32>
      %63 = arith.mulf %58, %62 : vector<8x128xf32>
      %64 = tpu.concatenate %63, %arg16 in 1 : vector<8x128xf32>, vector<8x128xf32> -> vector<8x256xf32>
      %65 = arith.truncf %64 : vector<8x256xf32> to vector<8x256xbf16>
      %c0_33 = arith.constant 0 : index
      %c0_34 = arith.constant 0 : index
      %66 = vector.load %arg5[%c0_33, %c0_34] : memref<256x512xbf16, #tpu.memory_space<vmem>>, vector<256x512xbf16>
      %cst_35 = arith.constant dense<0.000000e+00> : vector<8x512xf32>
      %67 = tpu.matmul %65, %66, %cst_35 {dimension_numbers = #tpu.dot_dimension_numbers<[1], [0], [0], [1], [0, 0, 1, 1], [], []>} : vector<8x256xbf16>, vector<256x512xbf16>, vector<8x512xf32> -> vector<8x512xf32>
      %68 = arith.addf %67, %11 : vector<8x512xf32>
      %69 = vector.extract_strided_slice %68 {offsets = [0, 0], sizes = [8, 128], strides = [1, 1]} : vector<8x512xf32> to vector<8x128xf32>
      %70 = arith.negf %69 : vector<8x128xf32>
      %71 = math.exp %70 : vector<8x128xf32>
      %cst_36 = arith.constant 1.000000e+00 : f32
      %72 = vector.broadcast %cst_36 : f32 to vector<8x128xf32>
      %73 = arith.addf %72, %71 : vector<8x128xf32>
      %74 = arith.divf %72, %73 : vector<8x128xf32>
      %75 = vector.extract_strided_slice %68 {offsets = [0, 128], sizes = [8, 128], strides = [1, 1]} : vector<8x512xf32> to vector<8x128xf32>
      %76 = arith.negf %75 : vector<8x128xf32>
      %77 = math.exp %76 : vector<8x128xf32>
      %cst_37 = arith.constant 1.000000e+00 : f32
      %78 = vector.broadcast %cst_37 : f32 to vector<8x128xf32>
      %79 = arith.addf %78, %77 : vector<8x128xf32>
      %80 = arith.divf %78, %79 : vector<8x128xf32>
      %81 = vector.extract_strided_slice %68 {offsets = [0, 256], sizes = [8, 128], strides = [1, 1]} : vector<8x512xf32> to vector<8x128xf32>
      %82 = math.tanh %81 : vector<8x128xf32>
      %83 = vector.extract_strided_slice %68 {offsets = [0, 384], sizes = [8, 128], strides = [1, 1]} : vector<8x512xf32> to vector<8x128xf32>
      %84 = arith.negf %83 : vector<8x128xf32>
      %85 = math.exp %84 : vector<8x128xf32>
      %cst_38 = arith.constant 1.000000e+00 : f32
      %86 = vector.broadcast %cst_38 : f32 to vector<8x128xf32>
      %87 = arith.addf %86, %85 : vector<8x128xf32>
      %88 = arith.divf %86, %87 : vector<8x128xf32>
      %89 = arith.mulf %80, %arg17 : vector<8x128xf32>
      %90 = arith.mulf %74, %82 : vector<8x128xf32>
      %91 = arith.addf %89, %90 : vector<8x128xf32>
      %92 = math.tanh %91 : vector<8x128xf32>
      %93 = arith.mulf %88, %92 : vector<8x128xf32>
      %94 = tpu.concatenate %93, %arg18 in 1 : vector<8x128xf32>, vector<8x128xf32> -> vector<8x256xf32>
      %95 = arith.truncf %94 : vector<8x256xf32> to vector<8x256xbf16>
      %c0_39 = arith.constant 0 : index
      %c0_40 = arith.constant 0 : index
      %96 = vector.load %arg7[%c0_39, %c0_40] : memref<256x512xbf16, #tpu.memory_space<vmem>>, vector<256x512xbf16>
      %cst_41 = arith.constant dense<0.000000e+00> : vector<8x512xf32>
      %97 = tpu.matmul %95, %96, %cst_41 {dimension_numbers = #tpu.dot_dimension_numbers<[1], [0], [0], [1], [0, 0, 1, 1], [], []>} : vector<8x256xbf16>, vector<256x512xbf16>, vector<8x512xf32> -> vector<8x512xf32>
      %98 = arith.addf %97, %12 : vector<8x512xf32>
      %99 = vector.extract_strided_slice %98 {offsets = [0, 0], sizes = [8, 128], strides = [1, 1]} : vector<8x512xf32> to vector<8x128xf32>
      %100 = arith.negf %99 : vector<8x128xf32>
      %101 = math.exp %100 : vector<8x128xf32>
      %cst_42 = arith.constant 1.000000e+00 : f32
      %102 = vector.broadcast %cst_42 : f32 to vector<8x128xf32>
      %103 = arith.addf %102, %101 : vector<8x128xf32>
      %104 = arith.divf %102, %103 : vector<8x128xf32>
      %105 = vector.extract_strided_slice %98 {offsets = [0, 128], sizes = [8, 128], strides = [1, 1]} : vector<8x512xf32> to vector<8x128xf32>
      %106 = arith.negf %105 : vector<8x128xf32>
      %107 = math.exp %106 : vector<8x128xf32>
      %cst_43 = arith.constant 1.000000e+00 : f32
      %108 = vector.broadcast %cst_43 : f32 to vector<8x128xf32>
      %109 = arith.addf %108, %107 : vector<8x128xf32>
      %110 = arith.divf %108, %109 : vector<8x128xf32>
      %111 = vector.extract_strided_slice %98 {offsets = [0, 256], sizes = [8, 128], strides = [1, 1]} : vector<8x512xf32> to vector<8x128xf32>
      %112 = math.tanh %111 : vector<8x128xf32>
      %113 = vector.extract_strided_slice %98 {offsets = [0, 384], sizes = [8, 128], strides = [1, 1]} : vector<8x512xf32> to vector<8x128xf32>
      %114 = arith.negf %113 : vector<8x128xf32>
      %115 = math.exp %114 : vector<8x128xf32>
      %cst_44 = arith.constant 1.000000e+00 : f32
      %116 = vector.broadcast %cst_44 : f32 to vector<8x128xf32>
      %117 = arith.addf %116, %115 : vector<8x128xf32>
      %118 = arith.divf %116, %117 : vector<8x128xf32>
      %119 = arith.mulf %110, %arg19 : vector<8x128xf32>
      %120 = arith.mulf %104, %112 : vector<8x128xf32>
      %121 = arith.addf %119, %120 : vector<8x128xf32>
      %122 = math.tanh %121 : vector<8x128xf32>
      %123 = arith.mulf %118, %122 : vector<8x128xf32>
      %c4_i32_45 = arith.constant 4 : i32
      %124 = arith.muli %arg13, %c4_i32_45 : i32
      %c1_i32_46 = arith.constant 1 : i32
      %125 = arith.addi %124, %c1_i32_46 : i32
      %126 = arith.index_cast %125 : i32 to index
      %c0_47 = arith.constant 0 : index
      %c0_48 = arith.constant 0 : index
      %127 = vector.load %arg12[%126, %c0_47, %c0_48] : memref<8x8x512xf32, #tpu.memory_space<vmem>>, vector<1x8x512xf32>
      %128 = vector.shape_cast %127 : vector<1x8x512xf32> to vector<8x512xf32>
      %129 = arith.truncf %63 : vector<8x128xf32> to vector<8x128xbf16>
      %c0_49 = arith.constant 0 : index
      %c0_50 = arith.constant 0 : index
      %130 = vector.load %arg4[%c0_49, %c0_50] : memref<128x512xbf16, #tpu.memory_space<vmem>>, vector<128x512xbf16>
      %cst_51 = arith.constant dense<0.000000e+00> : vector<8x512xf32>
      %131 = tpu.matmul %129, %130, %cst_51 {dimension_numbers = #tpu.dot_dimension_numbers<[1], [0], [0], [1], [0, 0, 1, 1], [], []>} : vector<8x128xbf16>, vector<128x512xbf16>, vector<8x512xf32> -> vector<8x512xf32>
      %132 = arith.addf %128, %131 : vector<8x512xf32>
      %133 = vector.extract_strided_slice %132 {offsets = [0, 0], sizes = [8, 128], strides = [1, 1]} : vector<8x512xf32> to vector<8x128xf32>
      %134 = arith.negf %133 : vector<8x128xf32>
      %135 = math.exp %134 : vector<8x128xf32>
      %cst_52 = arith.constant 1.000000e+00 : f32
      %136 = vector.broadcast %cst_52 : f32 to vector<8x128xf32>
      %137 = arith.addf %136, %135 : vector<8x128xf32>
      %138 = arith.divf %136, %137 : vector<8x128xf32>
      %139 = vector.extract_strided_slice %132 {offsets = [0, 128], sizes = [8, 128], strides = [1, 1]} : vector<8x512xf32> to vector<8x128xf32>
      %140 = arith.negf %139 : vector<8x128xf32>
      %141 = math.exp %140 : vector<8x128xf32>
      %cst_53 = arith.constant 1.000000e+00 : f32
      %142 = vector.broadcast %cst_53 : f32 to vector<8x128xf32>
      %143 = arith.addf %142, %141 : vector<8x128xf32>
      %144 = arith.divf %142, %143 : vector<8x128xf32>
      %145 = vector.extract_strided_slice %132 {offsets = [0, 256], sizes = [8, 128], strides = [1, 1]} : vector<8x512xf32> to vector<8x128xf32>
      %146 = math.tanh %145 : vector<8x128xf32>
      %147 = vector.extract_strided_slice %132 {offsets = [0, 384], sizes = [8, 128], strides = [1, 1]} : vector<8x512xf32> to vector<8x128xf32>
      %148 = arith.negf %147 : vector<8x128xf32>
      %149 = math.exp %148 : vector<8x128xf32>
      %cst_54 = arith.constant 1.000000e+00 : f32
      %150 = vector.broadcast %cst_54 : f32 to vector<8x128xf32>
      %151 = arith.addf %150, %149 : vector<8x128xf32>
      %152 = arith.divf %150, %151 : vector<8x128xf32>
      %153 = arith.mulf %144, %61 : vector<8x128xf32>
      %154 = arith.mulf %138, %146 : vector<8x128xf32>
      %155 = arith.addf %153, %154 : vector<8x128xf32>
      %156 = math.tanh %155 : vector<8x128xf32>
      %157 = arith.mulf %152, %156 : vector<8x128xf32>
      %158 = tpu.concatenate %157, %93 in 1 : vector<8x128xf32>, vector<8x128xf32> -> vector<8x256xf32>
      %159 = arith.truncf %158 : vector<8x256xf32> to vector<8x256xbf16>
      %c0_55 = arith.constant 0 : index
      %c0_56 = arith.constant 0 : index
      %160 = vector.load %arg5[%c0_55, %c0_56] : memref<256x512xbf16, #tpu.memory_space<vmem>>, vector<256x512xbf16>
      %cst_57 = arith.constant dense<0.000000e+00> : vector<8x512xf32>
      %161 = tpu.matmul %159, %160, %cst_57 {dimension_numbers = #tpu.dot_dimension_numbers<[1], [0], [0], [1], [0, 0, 1, 1], [], []>} : vector<8x256xbf16>, vector<256x512xbf16>, vector<8x512xf32> -> vector<8x512xf32>
      %162 = arith.addf %161, %11 : vector<8x512xf32>
      %163 = vector.extract_strided_slice %162 {offsets = [0, 0], sizes = [8, 128], strides = [1, 1]} : vector<8x512xf32> to vector<8x128xf32>
      %164 = arith.negf %163 : vector<8x128xf32>
      %165 = math.exp %164 : vector<8x128xf32>
      %cst_58 = arith.constant 1.000000e+00 : f32
      %166 = vector.broadcast %cst_58 : f32 to vector<8x128xf32>
      %167 = arith.addf %166, %165 : vector<8x128xf32>
      %168 = arith.divf %166, %167 : vector<8x128xf32>
      %169 = vector.extract_strided_slice %162 {offsets = [0, 128], sizes = [8, 128], strides = [1, 1]} : vector<8x512xf32> to vector<8x128xf32>
      %170 = arith.negf %169 : vector<8x128xf32>
      %171 = math.exp %170 : vector<8x128xf32>
      %cst_59 = arith.constant 1.000000e+00 : f32
      %172 = vector.broadcast %cst_59 : f32 to vector<8x128xf32>
      %173 = arith.addf %172, %171 : vector<8x128xf32>
      %174 = arith.divf %172, %173 : vector<8x128xf32>
      %175 = vector.extract_strided_slice %162 {offsets = [0, 256], sizes = [8, 128], strides = [1, 1]} : vector<8x512xf32> to vector<8x128xf32>
      %176 = math.tanh %175 : vector<8x128xf32>
      %177 = vector.extract_strided_slice %162 {offsets = [0, 384], sizes = [8, 128], strides = [1, 1]} : vector<8x512xf32> to vector<8x128xf32>
      %178 = arith.negf %177 : vector<8x128xf32>
      %179 = math.exp %178 : vector<8x128xf32>
      %cst_60 = arith.constant 1.000000e+00 : f32
      %180 = vector.broadcast %cst_60 : f32 to vector<8x128xf32>
      %181 = arith.addf %180, %179 : vector<8x128xf32>
      %182 = arith.divf %180, %181 : vector<8x128xf32>
      %183 = arith.mulf %174, %91 : vector<8x128xf32>
      %184 = arith.mulf %168, %176 : vector<8x128xf32>
      %185 = arith.addf %183, %184 : vector<8x128xf32>
      %186 = math.tanh %185 : vector<8x128xf32>
      %187 = arith.mulf %182, %186 : vector<8x128xf32>
      %188 = tpu.concatenate %187, %123 in 1 : vector<8x128xf32>, vector<8x128xf32> -> vector<8x256xf32>
      %189 = arith.truncf %188 : vector<8x256xf32> to vector<8x256xbf16>
      %c0_61 = arith.constant 0 : index
      %c0_62 = arith.constant 0 : index
      %190 = vector.load %arg7[%c0_61, %c0_62] : memref<256x512xbf16, #tpu.memory_space<vmem>>, vector<256x512xbf16>
      %cst_63 = arith.constant dense<0.000000e+00> : vector<8x512xf32>
      %191 = tpu.matmul %189, %190, %cst_63 {dimension_numbers = #tpu.dot_dimension_numbers<[1], [0], [0], [1], [0, 0, 1, 1], [], []>} : vector<8x256xbf16>, vector<256x512xbf16>, vector<8x512xf32> -> vector<8x512xf32>
      %192 = arith.addf %191, %12 : vector<8x512xf32>
      %193 = vector.extract_strided_slice %192 {offsets = [0, 0], sizes = [8, 128], strides = [1, 1]} : vector<8x512xf32> to vector<8x128xf32>
      %194 = arith.negf %193 : vector<8x128xf32>
      %195 = math.exp %194 : vector<8x128xf32>
      %cst_64 = arith.constant 1.000000e+00 : f32
      %196 = vector.broadcast %cst_64 : f32 to vector<8x128xf32>
      %197 = arith.addf %196, %195 : vector<8x128xf32>
      %198 = arith.divf %196, %197 : vector<8x128xf32>
      %199 = vector.extract_strided_slice %192 {offsets = [0, 128], sizes = [8, 128], strides = [1, 1]} : vector<8x512xf32> to vector<8x128xf32>
      %200 = arith.negf %199 : vector<8x128xf32>
      %201 = math.exp %200 : vector<8x128xf32>
      %cst_65 = arith.constant 1.000000e+00 : f32
      %202 = vector.broadcast %cst_65 : f32 to vector<8x128xf32>
      %203 = arith.addf %202, %201 : vector<8x128xf32>
      %204 = arith.divf %202, %203 : vector<8x128xf32>
      %205 = vector.extract_strided_slice %192 {offsets = [0, 256], sizes = [8, 128], strides = [1, 1]} : vector<8x512xf32> to vector<8x128xf32>
      %206 = math.tanh %205 : vector<8x128xf32>
      %207 = vector.extract_strided_slice %192 {offsets = [0, 384], sizes = [8, 128], strides = [1, 1]} : vector<8x512xf32> to vector<8x128xf32>
      %208 = arith.negf %207 : vector<8x128xf32>
      %209 = math.exp %208 : vector<8x128xf32>
      %cst_66 = arith.constant 1.000000e+00 : f32
      %210 = vector.broadcast %cst_66 : f32 to vector<8x128xf32>
      %211 = arith.addf %210, %209 : vector<8x128xf32>
      %212 = arith.divf %210, %211 : vector<8x128xf32>
      %213 = arith.mulf %204, %121 : vector<8x128xf32>
      %214 = arith.mulf %198, %206 : vector<8x128xf32>
      %215 = arith.addf %213, %214 : vector<8x128xf32>
      %216 = math.tanh %215 : vector<8x128xf32>
      %217 = arith.mulf %212, %216 : vector<8x128xf32>
      %c4_i32_67 = arith.constant 4 : i32
      %218 = arith.muli %arg13, %c4_i32_67 : i32
      %c2_i32_68 = arith.constant 2 : i32
      %219 = arith.addi %218, %c2_i32_68 : i32
      %220 = arith.index_cast %219 : i32 to index
      %c0_69 = arith.constant 0 : index
      %c0_70 = arith.constant 0 : index
      %221 = vector.load %arg12[%220, %c0_69, %c0_70] : memref<8x8x512xf32, #tpu.memory_space<vmem>>, vector<1x8x512xf32>
      %222 = vector.shape_cast %221 : vector<1x8x512xf32> to vector<8x512xf32>
      %223 = arith.truncf %157 : vector<8x128xf32> to vector<8x128xbf16>
      %c0_71 = arith.constant 0 : index
      %c0_72 = arith.constant 0 : index
      %224 = vector.load %arg4[%c0_71, %c0_72] : memref<128x512xbf16, #tpu.memory_space<vmem>>, vector<128x512xbf16>
      %cst_73 = arith.constant dense<0.000000e+00> : vector<8x512xf32>
      %225 = tpu.matmul %223, %224, %cst_73 {dimension_numbers = #tpu.dot_dimension_numbers<[1], [0], [0], [1], [0, 0, 1, 1], [], []>} : vector<8x128xbf16>, vector<128x512xbf16>, vector<8x512xf32> -> vector<8x512xf32>
      %226 = arith.addf %222, %225 : vector<8x512xf32>
      %227 = vector.extract_strided_slice %226 {offsets = [0, 0], sizes = [8, 128], strides = [1, 1]} : vector<8x512xf32> to vector<8x128xf32>
      %228 = arith.negf %227 : vector<8x128xf32>
      %229 = math.exp %228 : vector<8x128xf32>
      %cst_74 = arith.constant 1.000000e+00 : f32
      %230 = vector.broadcast %cst_74 : f32 to vector<8x128xf32>
      %231 = arith.addf %230, %229 : vector<8x128xf32>
      %232 = arith.divf %230, %231 : vector<8x128xf32>
      %233 = vector.extract_strided_slice %226 {offsets = [0, 128], sizes = [8, 128], strides = [1, 1]} : vector<8x512xf32> to vector<8x128xf32>
      %234 = arith.negf %233 : vector<8x128xf32>
      %235 = math.exp %234 : vector<8x128xf32>
      %cst_75 = arith.constant 1.000000e+00 : f32
      %236 = vector.broadcast %cst_75 : f32 to vector<8x128xf32>
      %237 = arith.addf %236, %235 : vector<8x128xf32>
      %238 = arith.divf %236, %237 : vector<8x128xf32>
      %239 = vector.extract_strided_slice %226 {offsets = [0, 256], sizes = [8, 128], strides = [1, 1]} : vector<8x512xf32> to vector<8x128xf32>
      %240 = math.tanh %239 : vector<8x128xf32>
      %241 = vector.extract_strided_slice %226 {offsets = [0, 384], sizes = [8, 128], strides = [1, 1]} : vector<8x512xf32> to vector<8x128xf32>
      %242 = arith.negf %241 : vector<8x128xf32>
      %243 = math.exp %242 : vector<8x128xf32>
      %cst_76 = arith.constant 1.000000e+00 : f32
      %244 = vector.broadcast %cst_76 : f32 to vector<8x128xf32>
      %245 = arith.addf %244, %243 : vector<8x128xf32>
      %246 = arith.divf %244, %245 : vector<8x128xf32>
      %247 = arith.mulf %238, %155 : vector<8x128xf32>
      %248 = arith.mulf %232, %240 : vector<8x128xf32>
      %249 = arith.addf %247, %248 : vector<8x128xf32>
      %250 = math.tanh %249 : vector<8x128xf32>
      %251 = arith.mulf %246, %250 : vector<8x128xf32>
      %252 = tpu.concatenate %251, %187 in 1 : vector<8x128xf32>, vector<8x128xf32> -> vector<8x256xf32>
      %253 = arith.truncf %252 : vector<8x256xf32> to vector<8x256xbf16>
      %c0_77 = arith.constant 0 : index
      %c0_78 = arith.constant 0 : index
      %254 = vector.load %arg5[%c0_77, %c0_78] : memref<256x512xbf16, #tpu.memory_space<vmem>>, vector<256x512xbf16>
      %cst_79 = arith.constant dense<0.000000e+00> : vector<8x512xf32>
      %255 = tpu.matmul %253, %254, %cst_79 {dimension_numbers = #tpu.dot_dimension_numbers<[1], [0], [0], [1], [0, 0, 1, 1], [], []>} : vector<8x256xbf16>, vector<256x512xbf16>, vector<8x512xf32> -> vector<8x512xf32>
      %256 = arith.addf %255, %11 : vector<8x512xf32>
      %257 = vector.extract_strided_slice %256 {offsets = [0, 0], sizes = [8, 128], strides = [1, 1]} : vector<8x512xf32> to vector<8x128xf32>
      %258 = arith.negf %257 : vector<8x128xf32>
      %259 = math.exp %258 : vector<8x128xf32>
      %cst_80 = arith.constant 1.000000e+00 : f32
      %260 = vector.broadcast %cst_80 : f32 to vector<8x128xf32>
      %261 = arith.addf %260, %259 : vector<8x128xf32>
      %262 = arith.divf %260, %261 : vector<8x128xf32>
      %263 = vector.extract_strided_slice %256 {offsets = [0, 128], sizes = [8, 128], strides = [1, 1]} : vector<8x512xf32> to vector<8x128xf32>
      %264 = arith.negf %263 : vector<8x128xf32>
      %265 = math.exp %264 : vector<8x128xf32>
      %cst_81 = arith.constant 1.000000e+00 : f32
      %266 = vector.broadcast %cst_81 : f32 to vector<8x128xf32>
      %267 = arith.addf %266, %265 : vector<8x128xf32>
      %268 = arith.divf %266, %267 : vector<8x128xf32>
      %269 = vector.extract_strided_slice %256 {offsets = [0, 256], sizes = [8, 128], strides = [1, 1]} : vector<8x512xf32> to vector<8x128xf32>
      %270 = math.tanh %269 : vector<8x128xf32>
      %271 = vector.extract_strided_slice %256 {offsets = [0, 384], sizes = [8, 128], strides = [1, 1]} : vector<8x512xf32> to vector<8x128xf32>
      %272 = arith.negf %271 : vector<8x128xf32>
      %273 = math.exp %272 : vector<8x128xf32>
      %cst_82 = arith.constant 1.000000e+00 : f32
      %274 = vector.broadcast %cst_82 : f32 to vector<8x128xf32>
      %275 = arith.addf %274, %273 : vector<8x128xf32>
      %276 = arith.divf %274, %275 : vector<8x128xf32>
      %277 = arith.mulf %268, %185 : vector<8x128xf32>
      %278 = arith.mulf %262, %270 : vector<8x128xf32>
      %279 = arith.addf %277, %278 : vector<8x128xf32>
      %280 = math.tanh %279 : vector<8x128xf32>
      %281 = arith.mulf %276, %280 : vector<8x128xf32>
      %282 = tpu.concatenate %281, %217 in 1 : vector<8x128xf32>, vector<8x128xf32> -> vector<8x256xf32>
      %283 = arith.truncf %282 : vector<8x256xf32> to vector<8x256xbf16>
      %c0_83 = arith.constant 0 : index
      %c0_84 = arith.constant 0 : index
      %284 = vector.load %arg7[%c0_83, %c0_84] : memref<256x512xbf16, #tpu.memory_space<vmem>>, vector<256x512xbf16>
      %cst_85 = arith.constant dense<0.000000e+00> : vector<8x512xf32>
      %285 = tpu.matmul %283, %284, %cst_85 {dimension_numbers = #tpu.dot_dimension_numbers<[1], [0], [0], [1], [0, 0, 1, 1], [], []>} : vector<8x256xbf16>, vector<256x512xbf16>, vector<8x512xf32> -> vector<8x512xf32>
      %286 = arith.addf %285, %12 : vector<8x512xf32>
      %287 = vector.extract_strided_slice %286 {offsets = [0, 0], sizes = [8, 128], strides = [1, 1]} : vector<8x512xf32> to vector<8x128xf32>
      %288 = arith.negf %287 : vector<8x128xf32>
      %289 = math.exp %288 : vector<8x128xf32>
      %cst_86 = arith.constant 1.000000e+00 : f32
      %290 = vector.broadcast %cst_86 : f32 to vector<8x128xf32>
      %291 = arith.addf %290, %289 : vector<8x128xf32>
      %292 = arith.divf %290, %291 : vector<8x128xf32>
      %293 = vector.extract_strided_slice %286 {offsets = [0, 128], sizes = [8, 128], strides = [1, 1]} : vector<8x512xf32> to vector<8x128xf32>
      %294 = arith.negf %293 : vector<8x128xf32>
      %295 = math.exp %294 : vector<8x128xf32>
      %cst_87 = arith.constant 1.000000e+00 : f32
      %296 = vector.broadcast %cst_87 : f32 to vector<8x128xf32>
      %297 = arith.addf %296, %295 : vector<8x128xf32>
      %298 = arith.divf %296, %297 : vector<8x128xf32>
      %299 = vector.extract_strided_slice %286 {offsets = [0, 256], sizes = [8, 128], strides = [1, 1]} : vector<8x512xf32> to vector<8x128xf32>
      %300 = math.tanh %299 : vector<8x128xf32>
      %301 = vector.extract_strided_slice %286 {offsets = [0, 384], sizes = [8, 128], strides = [1, 1]} : vector<8x512xf32> to vector<8x128xf32>
      %302 = arith.negf %301 : vector<8x128xf32>
      %303 = math.exp %302 : vector<8x128xf32>
      %cst_88 = arith.constant 1.000000e+00 : f32
      %304 = vector.broadcast %cst_88 : f32 to vector<8x128xf32>
      %305 = arith.addf %304, %303 : vector<8x128xf32>
      %306 = arith.divf %304, %305 : vector<8x128xf32>
      %307 = arith.mulf %298, %215 : vector<8x128xf32>
      %308 = arith.mulf %292, %300 : vector<8x128xf32>
      %309 = arith.addf %307, %308 : vector<8x128xf32>
      %310 = math.tanh %309 : vector<8x128xf32>
      %311 = arith.mulf %306, %310 : vector<8x128xf32>
      %c4_i32_89 = arith.constant 4 : i32
      %312 = arith.muli %arg13, %c4_i32_89 : i32
      %c3_i32 = arith.constant 3 : i32
      %313 = arith.addi %312, %c3_i32 : i32
      %314 = arith.index_cast %313 : i32 to index
      %c0_90 = arith.constant 0 : index
      %c0_91 = arith.constant 0 : index
      %315 = vector.load %arg12[%314, %c0_90, %c0_91] : memref<8x8x512xf32, #tpu.memory_space<vmem>>, vector<1x8x512xf32>
      %316 = vector.shape_cast %315 : vector<1x8x512xf32> to vector<8x512xf32>
      %317 = arith.truncf %251 : vector<8x128xf32> to vector<8x128xbf16>
      %c0_92 = arith.constant 0 : index
      %c0_93 = arith.constant 0 : index
      %318 = vector.load %arg4[%c0_92, %c0_93] : memref<128x512xbf16, #tpu.memory_space<vmem>>, vector<128x512xbf16>
      %cst_94 = arith.constant dense<0.000000e+00> : vector<8x512xf32>
      %319 = tpu.matmul %317, %318, %cst_94 {dimension_numbers = #tpu.dot_dimension_numbers<[1], [0], [0], [1], [0, 0, 1, 1], [], []>} : vector<8x128xbf16>, vector<128x512xbf16>, vector<8x512xf32> -> vector<8x512xf32>
      %320 = arith.addf %316, %319 : vector<8x512xf32>
      %321 = vector.extract_strided_slice %320 {offsets = [0, 0], sizes = [8, 128], strides = [1, 1]} : vector<8x512xf32> to vector<8x128xf32>
      %322 = arith.negf %321 : vector<8x128xf32>
      %323 = math.exp %322 : vector<8x128xf32>
      %cst_95 = arith.constant 1.000000e+00 : f32
      %324 = vector.broadcast %cst_95 : f32 to vector<8x128xf32>
      %325 = arith.addf %324, %323 : vector<8x128xf32>
      %326 = arith.divf %324, %325 : vector<8x128xf32>
      %327 = vector.extract_strided_slice %320 {offsets = [0, 128], sizes = [8, 128], strides = [1, 1]} : vector<8x512xf32> to vector<8x128xf32>
      %328 = arith.negf %327 : vector<8x128xf32>
      %329 = math.exp %328 : vector<8x128xf32>
      %cst_96 = arith.constant 1.000000e+00 : f32
      %330 = vector.broadcast %cst_96 : f32 to vector<8x128xf32>
      %331 = arith.addf %330, %329 : vector<8x128xf32>
      %332 = arith.divf %330, %331 : vector<8x128xf32>
      %333 = vector.extract_strided_slice %320 {offsets = [0, 256], sizes = [8, 128], strides = [1, 1]} : vector<8x512xf32> to vector<8x128xf32>
      %334 = math.tanh %333 : vector<8x128xf32>
      %335 = vector.extract_strided_slice %320 {offsets = [0, 384], sizes = [8, 128], strides = [1, 1]} : vector<8x512xf32> to vector<8x128xf32>
      %336 = arith.negf %335 : vector<8x128xf32>
      %337 = math.exp %336 : vector<8x128xf32>
      %cst_97 = arith.constant 1.000000e+00 : f32
      %338 = vector.broadcast %cst_97 : f32 to vector<8x128xf32>
      %339 = arith.addf %338, %337 : vector<8x128xf32>
      %340 = arith.divf %338, %339 : vector<8x128xf32>
      %341 = arith.mulf %332, %249 : vector<8x128xf32>
      %342 = arith.mulf %326, %334 : vector<8x128xf32>
      %343 = arith.addf %341, %342 : vector<8x128xf32>
      %344 = math.tanh %343 : vector<8x128xf32>
      %345 = arith.mulf %340, %344 : vector<8x128xf32>
      %346 = tpu.concatenate %345, %281 in 1 : vector<8x128xf32>, vector<8x128xf32> -> vector<8x256xf32>
      %347 = arith.truncf %346 : vector<8x256xf32> to vector<8x256xbf16>
      %c0_98 = arith.constant 0 : index
      %c0_99 = arith.constant 0 : index
      %348 = vector.load %arg5[%c0_98, %c0_99] : memref<256x512xbf16, #tpu.memory_space<vmem>>, vector<256x512xbf16>
      %cst_100 = arith.constant dense<0.000000e+00> : vector<8x512xf32>
      %349 = tpu.matmul %347, %348, %cst_100 {dimension_numbers = #tpu.dot_dimension_numbers<[1], [0], [0], [1], [0, 0, 1, 1], [], []>} : vector<8x256xbf16>, vector<256x512xbf16>, vector<8x512xf32> -> vector<8x512xf32>
      %350 = arith.addf %349, %11 : vector<8x512xf32>
      %351 = vector.extract_strided_slice %350 {offsets = [0, 0], sizes = [8, 128], strides = [1, 1]} : vector<8x512xf32> to vector<8x128xf32>
      %352 = arith.negf %351 : vector<8x128xf32>
      %353 = math.exp %352 : vector<8x128xf32>
      %cst_101 = arith.constant 1.000000e+00 : f32
      %354 = vector.broadcast %cst_101 : f32 to vector<8x128xf32>
      %355 = arith.addf %354, %353 : vector<8x128xf32>
      %356 = arith.divf %354, %355 : vector<8x128xf32>
      %357 = vector.extract_strided_slice %350 {offsets = [0, 128], sizes = [8, 128], strides = [1, 1]} : vector<8x512xf32> to vector<8x128xf32>
      %358 = arith.negf %357 : vector<8x128xf32>
      %359 = math.exp %358 : vector<8x128xf32>
      %cst_102 = arith.constant 1.000000e+00 : f32
      %360 = vector.broadcast %cst_102 : f32 to vector<8x128xf32>
      %361 = arith.addf %360, %359 : vector<8x128xf32>
      %362 = arith.divf %360, %361 : vector<8x128xf32>
      %363 = vector.extract_strided_slice %350 {offsets = [0, 256], sizes = [8, 128], strides = [1, 1]} : vector<8x512xf32> to vector<8x128xf32>
      %364 = math.tanh %363 : vector<8x128xf32>
      %365 = vector.extract_strided_slice %350 {offsets = [0, 384], sizes = [8, 128], strides = [1, 1]} : vector<8x512xf32> to vector<8x128xf32>
      %366 = arith.negf %365 : vector<8x128xf32>
      %367 = math.exp %366 : vector<8x128xf32>
      %cst_103 = arith.constant 1.000000e+00 : f32
      %368 = vector.broadcast %cst_103 : f32 to vector<8x128xf32>
      %369 = arith.addf %368, %367 : vector<8x128xf32>
      %370 = arith.divf %368, %369 : vector<8x128xf32>
      %371 = arith.mulf %362, %279 : vector<8x128xf32>
      %372 = arith.mulf %356, %364 : vector<8x128xf32>
      %373 = arith.addf %371, %372 : vector<8x128xf32>
      %374 = math.tanh %373 : vector<8x128xf32>
      %375 = arith.mulf %370, %374 : vector<8x128xf32>
      %376 = tpu.concatenate %375, %311 in 1 : vector<8x128xf32>, vector<8x128xf32> -> vector<8x256xf32>
      %377 = arith.truncf %376 : vector<8x256xf32> to vector<8x256xbf16>
      %c0_104 = arith.constant 0 : index
      %c0_105 = arith.constant 0 : index
      %378 = vector.load %arg7[%c0_104, %c0_105] : memref<256x512xbf16, #tpu.memory_space<vmem>>, vector<256x512xbf16>
      %cst_106 = arith.constant dense<0.000000e+00> : vector<8x512xf32>
      %379 = tpu.matmul %377, %378, %cst_106 {dimension_numbers = #tpu.dot_dimension_numbers<[1], [0], [0], [1], [0, 0, 1, 1], [], []>} : vector<8x256xbf16>, vector<256x512xbf16>, vector<8x512xf32> -> vector<8x512xf32>
      %380 = arith.addf %379, %12 : vector<8x512xf32>
      %381 = vector.extract_strided_slice %380 {offsets = [0, 0], sizes = [8, 128], strides = [1, 1]} : vector<8x512xf32> to vector<8x128xf32>
      %382 = arith.negf %381 : vector<8x128xf32>
      %383 = math.exp %382 : vector<8x128xf32>
      %cst_107 = arith.constant 1.000000e+00 : f32
      %384 = vector.broadcast %cst_107 : f32 to vector<8x128xf32>
      %385 = arith.addf %384, %383 : vector<8x128xf32>
      %386 = arith.divf %384, %385 : vector<8x128xf32>
      %387 = vector.extract_strided_slice %380 {offsets = [0, 128], sizes = [8, 128], strides = [1, 1]} : vector<8x512xf32> to vector<8x128xf32>
      %388 = arith.negf %387 : vector<8x128xf32>
      %389 = math.exp %388 : vector<8x128xf32>
      %cst_108 = arith.constant 1.000000e+00 : f32
      %390 = vector.broadcast %cst_108 : f32 to vector<8x128xf32>
      %391 = arith.addf %390, %389 : vector<8x128xf32>
      %392 = arith.divf %390, %391 : vector<8x128xf32>
      %393 = vector.extract_strided_slice %380 {offsets = [0, 256], sizes = [8, 128], strides = [1, 1]} : vector<8x512xf32> to vector<8x128xf32>
      %394 = math.tanh %393 : vector<8x128xf32>
      %395 = vector.extract_strided_slice %380 {offsets = [0, 384], sizes = [8, 128], strides = [1, 1]} : vector<8x512xf32> to vector<8x128xf32>
      %396 = arith.negf %395 : vector<8x128xf32>
      %397 = math.exp %396 : vector<8x128xf32>
      %cst_109 = arith.constant 1.000000e+00 : f32
      %398 = vector.broadcast %cst_109 : f32 to vector<8x128xf32>
      %399 = arith.addf %398, %397 : vector<8x128xf32>
      %400 = arith.divf %398, %399 : vector<8x128xf32>
      %401 = arith.mulf %392, %309 : vector<8x128xf32>
      %402 = arith.mulf %386, %394 : vector<8x128xf32>
      %403 = arith.addf %401, %402 : vector<8x128xf32>
      %404 = math.tanh %403 : vector<8x128xf32>
      %405 = arith.mulf %400, %404 : vector<8x128xf32>
      scf.yield %345, %343, %375, %373, %405, %403 : vector<8x128xf32>, vector<8x128xf32>, vector<8x128xf32>, vector<8x128xf32>, vector<8x128xf32>, vector<8x128xf32>
    }
    %c2_i32_14 = arith.constant 2 : i32
    %16 = arith.truncf %15#4 : vector<8x128xf32> to vector<8x128xbf16>
    %c0_15 = arith.constant 0 : index
    %c0_16 = arith.constant 0 : index
    %17 = vector.load %arg9[%c0_15, %c0_16] : memref<128x128xbf16, #tpu.memory_space<vmem>>, vector<128x128xbf16>
    %cst_17 = arith.constant dense<0.000000e+00> : vector<8x128xf32>
    %18 = tpu.matmul %16, %17, %cst_17 {dimension_numbers = #tpu.dot_dimension_numbers<[1], [0], [0], [1], [0, 0, 1, 1], [], []>} : vector<8x128xbf16>, vector<128x128xbf16>, vector<8x128xf32> -> vector<8x128xf32>
    %c0_18 = arith.constant 0 : index
    %c0_19 = arith.constant 0 : index
    %19 = vector.load %arg10[%c0_18, %c0_19] : memref<8x128xf32, #tpu.memory_space<vmem>>, vector<8x128xf32>
    %20 = arith.addf %18, %19 : vector<8x128xf32>
    %cst_20 = arith.constant 0.000000e+00 : f32
    %21 = vector.broadcast %cst_20 : f32 to vector<8x128xf32>
    %22 = arith.maximumf %20, %21 : vector<8x128xf32>
    %23 = arith.mulf %22, %22 : vector<8x128xf32>
    %cst_21 = arith.constant dense<0.000000e+00> : vector<8xf32>
    %24 = vector.multi_reduction <add>, %23, %cst_21 [1] : vector<8x128xf32> to vector<8xf32>
    %25 = vector.shape_cast %24 : vector<8xf32> to vector<8x1xf32>
    %26 = math.rsqrt %25 : vector<8x1xf32>
    %27 = vector.broadcast %26 : vector<8x1xf32> to vector<8x128xf32>
    %28 = arith.mulf %22, %27 : vector<8x128xf32>
    %c0_22 = arith.constant 0 : index
    %c0_23 = arith.constant 0 : index
    %29 = vector.load %arg11[%c0_22, %c0_23] : memref<8x128xf32, #tpu.memory_space<vmem>>, vector<8x128xf32>
    tpu.vector_store %arg11[%c0_22, %c0_23], %28 {strides = array<i32>} : memref<8x128xf32, #tpu.memory_space<vmem>>, vector<8x128xf32>,
    return
  }
  func.func @transform_0(%arg0: i32) -> (i32, i32, i32) {
    %c0_i32 = arith.constant 0 : i32
    %c0_i32_0 = arith.constant 0 : i32
    %c0_i32_1 = arith.constant 0 : i32
    return %c0_i32, %arg0, %c0_i32_0 : i32, i32, i32
  }
  func.func @transform_1(%arg0: i32) -> (i32, i32) {
    %c0_i32 = arith.constant 0 : i32
    %c0_i32_0 = arith.constant 0 : i32
    %c0_i32_1 = arith.constant 0 : i32
    return %c0_i32, %c0_i32_0 : i32, i32
  }
  func.func @transform_2(%arg0: i32) -> (i32, i32) {
    %c0_i32 = arith.constant 0 : i32
    %c0_i32_0 = arith.constant 0 : i32
    %c0_i32_1 = arith.constant 0 : i32
    return %c0_i32, %c0_i32_0 : i32, i32
  }
  func.func @transform_3(%arg0: i32) -> (i32, i32) {
    %c0_i32 = arith.constant 0 : i32
    %c0_i32_0 = arith.constant 0 : i32
    %c0_i32_1 = arith.constant 0 : i32
    return %c0_i32, %c0_i32_0 : i32, i32
  }
  func.func @transform_4(%arg0: i32) -> (i32, i32) {
    %c0_i32 = arith.constant 0 : i32
    %c0_i32_0 = arith.constant 0 : i32
    %c0_i32_1 = arith.constant 0 : i32
    return %c0_i32, %c0_i32_0 : i32, i32
  }
  func.func @transform_5(%arg0: i32) -> (i32, i32) {
    %c0_i32 = arith.constant 0 : i32
    %c0_i32_0 = arith.constant 0 : i32
    %c0_i32_1 = arith.constant 0 : i32
    return %c0_i32, %c0_i32_0 : i32, i32
  }
  func.func @transform_6(%arg0: i32) -> (i32, i32) {
    %c0_i32 = arith.constant 0 : i32
    %c0_i32_0 = arith.constant 0 : i32
    %c0_i32_1 = arith.constant 0 : i32
    return %c0_i32, %c0_i32_0 : i32, i32
  }
  func.func @transform_7(%arg0: i32) -> (i32, i32) {
    %c0_i32 = arith.constant 0 : i32
    %c0_i32_0 = arith.constant 0 : i32
    %c0_i32_1 = arith.constant 0 : i32
    return %c0_i32, %c0_i32_0 : i32, i32
  }
  func.func @transform_8(%arg0: i32) -> (i32, i32) {
    %c0_i32 = arith.constant 0 : i32
    %c0_i32_0 = arith.constant 0 : i32
    %c0_i32_1 = arith.constant 0 : i32
    return %c0_i32, %c0_i32_0 : i32, i32
  }
  func.func @transform_9(%arg0: i32) -> (i32, i32) {
    %c0_i32 = arith.constant 0 : i32
    %c0_i32_0 = arith.constant 0 : i32
    %c0_i32_1 = arith.constant 0 : i32
    return %c0_i32, %c0_i32_0 : i32, i32
  }
  func.func @transform_10(%arg0: i32) -> (i32, i32) {
    %c0_i32 = arith.constant 0 : i32
    %c0_i32_0 = arith.constant 0 : i32
    return %arg0, %c0_i32 : i32, i32
  }
}

</mosaic_0001>

<llo_original>
// kernel: tpu_custom_call.1
$region0: #{tpu_custom_call.1}
  #allocation0 [shape = 'u32[]', space=smem, size = 0x4, offset = 0x4, fixed_abs, tag = 'smem constant byte address 0x4 - core index']
  #allocation1 [shape = 'u32[144,128]{1,0:T(1,128)}', space=vmem, size = 0x12000, scoped, tag = 'internal scratch']
  #allocation2 [shape = 'f32[8,8,512]{2,1,0:T(8,128)}', space=vmem, size = 0x20000, scoped, tag = 'scratch operand']
  %s0 = inlined_call_operand.hbm [shape: f32[8,8,128], index: 0, kind: input, shape index: {}]
  %s1 = inlined_call_operand.hbm [shape: bf16[128,512], index: 1, kind: input, shape index: {}]
  %s2 = inlined_call_operand.hbm [shape: f32[8,512], index: 2, kind: input, shape index: {}]
  %s3 = inlined_call_operand.hbm [shape: bf16[128,512], index: 3, kind: input, shape index: {}]
  %s4 = inlined_call_operand.hbm [shape: bf16[256,512], index: 4, kind: input, shape index: {}]
  %s5 = inlined_call_operand.hbm [shape: f32[8,512], index: 5, kind: input, shape index: {}]
  %s6 = inlined_call_operand.hbm [shape: bf16[256,512], index: 6, kind: input, shape index: {}]
  %s7 = inlined_call_operand.hbm [shape: f32[8,512], index: 7, kind: input, shape index: {}]
  %s8 = inlined_call_operand.hbm [shape: bf16[128,128], index: 8, kind: input, shape index: {}]
  %s9 = inlined_call_operand.vmem [shape: f32[8,128], index: 9, kind: input, shape index: {}]
  %s10 = inlined_call_operand.hbm [shape: f32[8,128], index: 10, kind: output, shape index: {}]
  %s11 = sld [smem:[#allocation0]]
  $region93: #{tpu_custom_call.1} parent=0
    _
  %s13 = ssub.s32 1, %s11
  %s14 = scalar_select 0, %s13, %s11
  $region1: #{tpu_custom_call.1} parent=0
    #allocation3 [shape = 'u8[32768]{0}', space=vmem, size = 0x8000, scoped, tag = 'input window, operand 0, single buffered']
    #allocation4 [shape = 's32[1]{0}', space=sflag, size = 0x4, scoped, tag = 'scoped memory for tpu_custom_call.1']
    #allocation5 [shape = 's32[1]{0}', space=sflag, size = 0x4, scoped, tag = 'scoped memory for tpu_custom_call.1']
    #allocation6 [shape = 'u8[131072]{0}', space=vmem, size = 0x20000, scoped, tag = 'input window, operand 1, single buffered']
    #allocation7 [shape = 's32[1]{0}', space=sflag, size = 0x4, scoped, tag = 'scoped memory for tpu_custom_call.1']
    #allocation8 [shape = 'u8[16384]{0}', space=vmem, size = 0x4000, scoped, tag = 'input window, operand 2, single buffered']
    #allocation9 [shape = 'u8[131072]{0}', space=vmem, size = 0x20000, scoped, tag = 'input window, operand 3, single buffered']
    #allocation10 [shape = 's32[1]{0}', space=sflag, size = 0x4, scoped, tag = 'scoped memory for tpu_custom_call.1']
    #allocation11 [shape = 'u8[262144]{0}', space=vmem, size = 0x40000, scoped, tag = 'input window, operand 4, single buffered']
    #allocation12 [shape = 'u8[16384]{0}', space=vmem, size = 0x4000, scoped, tag = 'input window, operand 5, single buffered']
    #allocation13 [shape = 's32[1]{0}', space=sflag, size = 0x4, scoped, tag = 'scoped memory for tpu_custom_call.1']
    #allocation14 [shape = 'u8[262144]{0}', space=vmem, size = 0x40000, scoped, tag = 'input window, operand 6, single buffered']
    #allocation15 [shape = 'u8[16384]{0}', space=vmem, size = 0x4000, scoped, tag = 'input window, operand 7, single buffered']
    #allocation16 [shape = 's32[1]{0}', space=sflag, size = 0x4, scoped, tag = 'scoped memory for tpu_custom_call.1']
    #allocation17 [shape = 'u8[32768]{0}', space=vmem, size = 0x8000, scoped, tag = 'input window, operand 8, single buffered']
    #allocation18 [shape = 'u8[4096]{0}', space=vmem, size = 0x1000, scoped, tag = 'output window, operand 0, single buffered']
    %15 = vsyncpa [#allocation4], 0
    %16 = vsyncpa [#allocation7], 0
    %17 = vsyncpa [#allocation10], 0
    %18 = vsyncpa [#allocation13], 0
    %19 = vsyncpa [#allocation16], 0
    %20 = vsyncpa [#allocation5], 0
    // Predicated region
    $region2: #{tpu_custom_call.1} parent=1 // pred_check
      _
    $region3: #{tpu_custom_call.1} parent=1 // pred_check_branch
      %22 = sbr.rel (0) target = $region5
    $region4: #{tpu_custom_call.1} parent=1 // pred_region
      %s24 = ssub.s32 1024, 1024
      %25 = vsyncadd [#allocation4], %s24
      %s26 = sshll.u32 [#allocation3], 4
      %s27 = int_to_ptr.vmem [resolvable:$true] %s26
      %32 = dma.hbm_to_vmem [thread:$0]  %s0, 1024, %s27, [#allocation4], 128, 128, 8
    $region5: #{tpu_custom_call.1} parent=1 // pred_fallthru
      _
    // Predicated region
    $region6: #{tpu_custom_call.1} parent=1 // pred_check
      _
    $region7: #{tpu_custom_call.1} parent=1 // pred_check_branch
      %34 = sbr.rel (0) target = $region9
    $region8: #{tpu_custom_call.1} parent=1 // pred_region
      %s36 = ssub.s32 4096, 4096
      %37 = vsyncadd [#allocation7], %s36
      %s38 = sshll.u32 [#allocation6], 4
      %s39 = int_to_ptr.vmem [resolvable:$true] %s38
      %44 = dma.hbm_to_vmem [thread:$0]  %s1, 4096, %s39, [#allocation7], 256, 256, 16
    $region9: #{tpu_custom_call.1} parent=1 // pred_fallthru
      _
    // Predicated region
    $region10: #{tpu_custom_call.1} parent=1 // pred_check
      _
    $region11: #{tpu_custom_call.1} parent=1 // pred_check_branch
      %46 = sbr.rel (0) target = $region13
    $region12: #{tpu_custom_call.1} parent=1 // pred_region
      %s48 = ssub.s32 512, 512
      %49 = vsyncadd [#allocation7], %s48
      %s51 = sshll.u32 [#allocation8], 4
      %s52 = int_to_ptr.vmem [resolvable:$true] %s51
      %54 = dma.hbm_to_vmem [thread:$0]  %s2, 512, %s52, [#allocation7]
    $region13: #{tpu_custom_call.1} parent=1 // pred_fallthru
      _
    // Predicated region
    $region14: #{tpu_custom_call.1} parent=1 // pred_check
      _
    $region15: #{tpu_custom_call.1} parent=1 // pred_check_branch
      %56 = sbr.rel (0) target = $region17
    $region16: #{tpu_custom_call.1} parent=1 // pred_region
      %s58 = ssub.s32 4096, 4096
      %59 = vsyncadd [#allocation10], %s58
      %s60 = sshll.u32 [#allocation9], 4
      %s61 = int_to_ptr.vmem [resolvable:$true] %s60
      %66 = dma.hbm_to_vmem [thread:$0]  %s3, 4096, %s61, [#allocation10], 256, 256, 16
    $region17: #{tpu_custom_call.1} parent=1 // pred_fallthru
      _
    // Predicated region
    $region18: #{tpu_custom_call.1} parent=1 // pred_check
      _
    $region19: #{tpu_custom_call.1} parent=1 // pred_check_branch
      %68 = sbr.rel (0) target = $region21
    $region20: #{tpu_custom_call.1} parent=1 // pred_region
      %s70 = ssub.s32 8192, 8192
      %71 = vsyncadd [#allocation10], %s70
      %s72 = sshll.u32 [#allocation11], 4
      %s73 = int_to_ptr.vmem [resolvable:$true] %s72
      %78 = dma.hbm_to_vmem [thread:$0]  %s4, 8192, %s73, [#allocation10], 256, 256, 16
    $region21: #{tpu_custom_call.1} parent=1 // pred_fallthru
      _
    // Predicated region
    $region22: #{tpu_custom_call.1} parent=1 // pred_check
      _
    $region23: #{tpu_custom_call.1} parent=1 // pred_check_branch
      %80 = sbr.rel (0) target = $region25
    $region24: #{tpu_custom_call.1} parent=1 // pred_region
      %s82 = ssub.s32 512, 512
      %83 = vsyncadd [#allocation13], %s82
      %s85 = sshll.u32 [#allocation12], 4
      %s86 = int_to_ptr.vmem [resolvable:$true] %s85
      %88 = dma.hbm_to_vmem [thread:$0]  %s5, 512, %s86, [#allocation13]
    $region25: #{tpu_custom_call.1} parent=1 // pred_fallthru
      _
    // Predicated region
    $region26: #{tpu_custom_call.1} parent=1 // pred_check
      _
    $region27: #{tpu_custom_call.1} parent=1 // pred_check_branch
      %90 = sbr.rel (0) target = $region29
    $region28: #{tpu_custom_call.1} parent=1 // pred_region
      %s92 = ssub.s32 8192, 8192
      %93 = vsyncadd [#allocation13], %s92
      %s94 = sshll.u32 [#allocation14], 4
      %s95 = int_to_ptr.vmem [resolvable:$true] %s94
      %100 = dma.hbm_to_vmem [thread:$0]  %s6, 8192, %s95, [#allocation13], 256, 256, 16
    $region29: #{tpu_custom_call.1} parent=1 // pred_fallthru
      _
    // Predicated region
    $region30: #{tpu_custom_call.1} parent=1 // pred_check
      _
    $region31: #{tpu_custom_call.1} parent=1 // pred_check_branch
      %102 = sbr.rel (0) target = $region33
    $region32: #{tpu_custom_call.1} parent=1 // pred_region
      %s104 = ssub.s32 512, 512
      %105 = vsyncadd [#allocation16], %s104
      %s107 = sshll.u32 [#allocation15], 4
      %s108 = int_to_ptr.vmem [resolvable:$true] %s107
      %110 = dma.hbm_to_vmem [thread:$0]  %s7, 512, %s108, [#allocation16]
    $region33: #{tpu_custom_call.1} parent=1 // pred_fallthru
      _
    // Predicated region
    $region34: #{tpu_custom_call.1} parent=1 // pred_check
      _
    $region35: #{tpu_custom_call.1} parent=1 // pred_check_branch
      %112 = sbr.rel (0) target = $region37
    $region36: #{tpu_custom_call.1} parent=1 // pred_region
      %s114 = ssub.s32 1024, 1024
      %115 = vsyncadd [#allocation16], %s114
      %s116 = sshll.u32 [#allocation17], 4
      %s117 = int_to_ptr.vmem [resolvable:$true] %s116
      %122 = dma.hbm_to_vmem [thread:$0]  %s8, 1024, %s117, [#allocation16], 64, 64, 4
    $region37: #{tpu_custom_call.1} parent=1 // pred_fallthru
      _
    // Predicated region
    $region38: #{tpu_custom_call.1} parent=1 // pred_check
      _
    $region39: #{tpu_custom_call.1} parent=1 // pred_check_branch
      %124 = sbr.rel (0) target = $region41
    $region40: #{tpu_custom_call.1} parent=1 // pred_region
      _
    $region41: #{tpu_custom_call.1} parent=1 // pred_fallthru
      _
    // Predicated region
    $region42: #{tpu_custom_call.1} parent=1 // pred_check
      _
    $region43: #{tpu_custom_call.1} parent=1 // pred_check_branch
      %126 = sbr.rel (0) target = $region45
    $region44: #{tpu_custom_call.1} parent=1 // pred_region
      %127 = dma.done [#allocation4], 1024
    $region45: #{tpu_custom_call.1} parent=1 // pred_fallthru
      _
    // Predicated region
    $region46: #{tpu_custom_call.1} parent=1 // pred_check
      _
    $region47: #{tpu_custom_call.1} parent=1 // pred_check_branch
      %129 = sbr.rel (0) target = $region49
    $region48: #{tpu_custom_call.1} parent=1 // pred_region
      %130 = dma.done [#allocation7], 4096
    $region49: #{tpu_custom_call.1} parent=1 // pred_fallthru
      _
    // Predicated region
    $region50: #{tpu_custom_call.1} parent=1 // pred_check
      _
    $region51: #{tpu_custom_call.1} parent=1 // pred_check_branch
      %132 = sbr.rel (0) target = $region53
    $region52: #{tpu_custom_call.1} parent=1 // pred_region
      %133 = dma.done [#allocation7], 512
    $region53: #{tpu_custom_call.1} parent=1 // pred_fallthru
      _
    // Predicated region
    $region54: #{tpu_custom_call.1} parent=1 // pred_check
      _
    $region55: #{tpu_custom_call.1} parent=1 // pred_check_branch
      %135 = sbr.rel (0) target = $region57
    $region56: #{tpu_custom_call.1} parent=1 // pred_region
      %136 = dma.done [#allocation10], 4096
    $region57: #{tpu_custom_call.1} parent=1 // pred_fallthru
      _
    // Predicated region
    $region58: #{tpu_custom_call.1} parent=1 // pred_check
      _
    $region59: #{tpu_custom_call.1} parent=1 // pred_check_branch
      %138 = sbr.rel (0) target = $region61
    $region60: #{tpu_custom_call.1} parent=1 // pred_region
      %139 = dma.done [#allocation10], 8192
    $region61: #{tpu_custom_call.1} parent=1 // pred_fallthru
      _
    // Predicated region
    $region62: #{tpu_custom_call.1} parent=1 // pred_check
      _
    $region63: #{tpu_custom_call.1} parent=1 // pred_check_branch
      %141 = sbr.rel (0) target = $region65
    $region64: #{tpu_custom_call.1} parent=1 // pred_region
      %142 = dma.done [#allocation13], 512
    $region65: #{tpu_custom_call.1} parent=1 // pred_fallthru
      _
    // Predicated region
    $region66: #{tpu_custom_call.1} parent=1 // pred_check
      _
    $region67: #{tpu_custom_call.1} parent=1 // pred_check_branch
      %144 = sbr.rel (0) target = $region69
    $region68: #{tpu_custom_call.1} parent=1 // pred_region
      %145 = dma.done [#allocation13], 8192
    $region69: #{tpu_custom_call.1} parent=1 // pred_fallthru
      _
    // Predicated region
    $region70: #{tpu_custom_call.1} parent=1 // pred_check
      _
    $region71: #{tpu_custom_call.1} parent=1 // pred_check_branch
      %147 = sbr.rel (0) target = $region73
    $region72: #{tpu_custom_call.1} parent=1 // pred_region
      %148 = dma.done [#allocation16], 512
    $region73: #{tpu_custom_call.1} parent=1 // pred_fallthru
      _
    // Predicated region
    $region74: #{tpu_custom_call.1} parent=1 // pred_check
      _
    $region75: #{tpu_custom_call.1} parent=1 // pred_check_branch
      %150 = sbr.rel (0) target = $region77
    $region76: #{tpu_custom_call.1} parent=1 // pred_region
      %151 = dma.done [#allocation16], 1024
    $region77: #{tpu_custom_call.1} parent=1 // pred_fallthru
      _
    %v153 = vld [vmem:[#allocation3] sm:$0xff]
    %v154 = vld [vmem:[#allocation3 + $0x8] sm:$0xff]
    %v155 = vld [vmem:[#allocation3 + $0x10] sm:$0xff]
    %v156 = vld [vmem:[#allocation3 + $0x18] sm:$0xff]
    %v157 = vld [vmem:[#allocation3 + $0x20] sm:$0xff]
    %v158 = vld [vmem:[#allocation3 + $0x28] sm:$0xff]
    %v159 = vld [vmem:[#allocation3 + $0x30] sm:$0xff]
    %v160 = vld [vmem:[#allocation3 + $0x38] sm:$0xff]
    %v161 = vpack.c.bf16 %v154, %v153
    %v162 = vpack.c.bf16 %v156, %v155
    %v163 = vpack.c.bf16 %v158, %v157
    %v164 = vpack.c.bf16 %v160, %v159
    %v165 = vld [vmem:[#allocation6] sm:$0xff]
    %v166 = vld [vmem:[#allocation6 + $0x8] sm:$0xff]
    %v167 = vld [vmem:[#allocation6 + $0x10] sm:$0xff]
    %v168 = vld [vmem:[#allocation6 + $0x18] sm:$0xff]
    %v169 = vld [vmem:[#allocation6 + $0x20] sm:$0xff]
    %v170 = vld [vmem:[#allocation6 + $0x28] sm:$0xff]
    %v171 = vld [vmem:[#allocation6 + $0x30] sm:$0xff]
    %v172 = vld [vmem:[#allocation6 + $0x38] sm:$0xff]
    %v173 = vld [vmem:[#allocation6 + $0x40] sm:$0xff]
    %v174 = vld [vmem:[#allocation6 + $0x48] sm:$0xff]
    %v175 = vld [vmem:[#allocation6 + $0x50] sm:$0xff]
    %v176 = vld [vmem:[#allocation6 + $0x58] sm:$0xff]
    %v177 = vld [vmem:[#allocation6 + $0x60] sm:$0xff]
    %v178 = vld [vmem:[#allocation6 + $0x68] sm:$0xff]
    %v179 = vld [vmem:[#allocation6 + $0x70] sm:$0xff]
    %v180 = vld [vmem:[#allocation6 + $0x78] sm:$0xff]
    %v181 = vld [vmem:[#allocation6 + $0x80] sm:$0xff]
    %v182 = vld [vmem:[#allocation6 + $0x88] sm:$0xff]
    %v183 = vld [vmem:[#allocation6 + $0x90] sm:$0xff]
    %v184 = vld [vmem:[#allocation6 + $0x98] sm:$0xff]
    %v185 = vld [vmem:[#allocation6 + $0xa0] sm:$0xff]
    %v186 = vld [vmem:[#allocation6 + $0xa8] sm:$0xff]
    %v187 = vld [vmem:[#allocation6 + $0xb0] sm:$0xff]
    %v188 = vld [vmem:[#allocation6 + $0xb8] sm:$0xff]
    %v189 = vld [vmem:[#allocation6 + $0xc0] sm:$0xff]
    %v190 = vld [vmem:[#allocation6 + $0xc8] sm:$0xff]
    %v191 = vld [vmem:[#allocation6 + $0xd0] sm:$0xff]
    %v192 = vld [vmem:[#allocation6 + $0xd8] sm:$0xff]
    %v193 = vld [vmem:[#allocation6 + $0xe0] sm:$0xff]
    %v194 = vld [vmem:[#allocation6 + $0xe8] sm:$0xff]
    %v195 = vld [vmem:[#allocation6 + $0xf0] sm:$0xff]
    %v196 = vld [vmem:[#allocation6 + $0xf8] sm:$0xff]
    %v229 = vunpack.c.l.b16 %v165
    %v230 = vunpack.c.h.b16 %v165
    %v231 = vunpack.c.l.b16 %v166
    %v232 = vunpack.c.h.b16 %v166
    %v233 = vunpack.c.l.b16 %v167
    %v234 = vunpack.c.h.b16 %v167
    %v235 = vunpack.c.l.b16 %v168
    %v236 = vunpack.c.h.b16 %v168
    %v237 = vunpack.c.l.b16 %v169
    %v238 = vunpack.c.h.b16 %v169
    %v239 = vunpack.c.l.b16 %v170
    %v240 = vunpack.c.h.b16 %v170
    %v241 = vunpack.c.l.b16 %v171
    %v242 = vunpack.c.h.b16 %v171
    %v243 = vunpack.c.l.b16 %v172
    %v244 = vunpack.c.h.b16 %v172
    %v245 = vunpack.c.l.b16 %v173
    %v246 = vunpack.c.h.b16 %v173
    %v247 = vunpack.c.l.b16 %v174
    %v248 = vunpack.c.h.b16 %v174
    %v249 = vunpack.c.l.b16 %v175
    %v250 = vunpack.c.h.b16 %v175
    %v251 = vunpack.c.l.b16 %v176
    %v252 = vunpack.c.h.b16 %v176
    %v253 = vunpack.c.l.b16 %v177
    %v254 = vunpack.c.h.b16 %v177
    %v255 = vunpack.c.l.b16 %v178
    %v256 = vunpack.c.h.b16 %v178
    %v257 = vunpack.c.l.b16 %v179
    %v258 = vunpack.c.h.b16 %v179
    %v259 = vunpack.c.l.b16 %v180
    %v260 = vunpack.c.h.b16 %v180
    %v261 = vunpack.c.l.b16 %v181
    %v262 = vunpack.c.h.b16 %v181
    %v263 = vunpack.c.l.b16 %v182
    %v264 = vunpack.c.h.b16 %v182
    %v265 = vunpack.c.l.b16 %v183
    %v266 = vunpack.c.h.b16 %v183
    %v267 = vunpack.c.l.b16 %v184
    %v268 = vunpack.c.h.b16 %v184
    %v269 = vunpack.c.l.b16 %v185
    %v270 = vunpack.c.h.b16 %v185
    %v271 = vunpack.c.l.b16 %v186
    %v272 = vunpack.c.h.b16 %v186
    %v273 = vunpack.c.l.b16 %v187
    %v274 = vunpack.c.h.b16 %v187
    %v275 = vunpack.c.l.b16 %v188
    %v276 = vunpack.c.h.b16 %v188
    %v277 = vunpack.c.l.b16 %v189
    %v278 = vunpack.c.h.b16 %v189
    %v279 = vunpack.c.l.b16 %v190
    %v280 = vunpack.c.h.b16 %v190
    %v281 = vunpack.c.l.b16 %v191
    %v282 = vunpack.c.h.b16 %v191
    %v283 = vunpack.c.l.b16 %v192
    %v284 = vunpack.c.h.b16 %v192
    %v285 = vunpack.c.l.b16 %v193
    %v286 = vunpack.c.h.b16 %v193
    %v287 = vunpack.c.l.b16 %v194
    %v288 = vunpack.c.h.b16 %v194
    %v289 = vunpack.c.l.b16 %v195
    %v290 = vunpack.c.h.b16 %v195
    %v291 = vunpack.c.l.b16 %v196
    %v292 = vunpack.c.h.b16 %v196
    %v293 = vpack.c.b16 %v233, %v229
    %v294 = vpack.c.b16 %v234, %v230
    %v295 = vpack.c.b16 %v235, %v231
    %v296 = vpack.c.b16 %v236, %v232
    %v297 = vpack.c.b16 %v241, %v237
    %v298 = vpack.c.b16 %v242, %v238
    %v299 = vpack.c.b16 %v243, %v239
    %v300 = vpack.c.b16 %v244, %v240
    %v301 = vpack.c.b16 %v249, %v245
    %v302 = vpack.c.b16 %v250, %v246
    %v303 = vpack.c.b16 %v251, %v247
    %v304 = vpack.c.b16 %v252, %v248
    %v305 = vpack.c.b16 %v257, %v253
    %v306 = vpack.c.b16 %v258, %v254
    %v307 = vpack.c.b16 %v259, %v255
    %v308 = vpack.c.b16 %v260, %v256
    %v309 = vpack.c.b16 %v265, %v261
    %v310 = vpack.c.b16 %v266, %v262
    %v311 = vpack.c.b16 %v267, %v263
    %v312 = vpack.c.b16 %v268, %v264
    %v313 = vpack.c.b16 %v273, %v269
    %v314 = vpack.c.b16 %v274, %v270
    %v315 = vpack.c.b16 %v275, %v271
    %v316 = vpack.c.b16 %v276, %v272
    %v317 = vpack.c.b16 %v281, %v277
    %v318 = vpack.c.b16 %v282, %v278
    %v319 = vpack.c.b16 %v283, %v279
    %v320 = vpack.c.b16 %v284, %v280
    %v321 = vpack.c.b16 %v289, %v285
    %v322 = vpack.c.b16 %v290, %v286
    %v323 = vpack.c.b16 %v291, %v287
    %v324 = vpack.c.b16 %v292, %v288
    %357 = vmatprep.subr.bf16.mxu0 %v294
    %358 = vmatpush1.bf16.msra.mxu0 %v293
    %359 = vmatprep.subr.bf16.mxu0 %v298
    %360 = vmatpush1.bf16.msra.mxu0 %v297
    %361 = vmatprep.subr.bf16.mxu0 %v302
    %362 = vmatpush1.bf16.msra.mxu0 %v301
    %363 = vmatprep.subr.bf16.mxu0 %v306
    %364 = vmatpush1.bf16.msra.mxu0 %v305
    %365 = vmatprep.subr.bf16.mxu0 %v310
    %366 = vmatpush1.bf16.msra.mxu0 %v309
    %367 = vmatprep.subr.bf16.mxu0 %v314
    %368 = vmatpush1.bf16.msra.mxu0 %v313
    %369 = vmatprep.subr.bf16.mxu0 %v318
    %370 = vmatpush1.bf16.msra.mxu0 %v317
    %371 = vmatprep.subr.bf16.mxu0 %v322
    %372 = vmatpush1.bf16.msra.mxu0 %v321
    %373 = vmatprep.subr.bf16.mxu0 0
    %374 = vmatpush1.bf16.msra.mxu0 0
    %375 = vmatprep.subr.bf16.mxu0 0
    %376 = vmatpush1.bf16.msra.mxu0 0
    %377 = vmatprep.subr.bf16.mxu0 0
    %378 = vmatpush1.bf16.msra.mxu0 0
    %379 = vmatprep.subr.bf16.mxu0 0
    %380 = vmatpush1.bf16.msra.mxu0 0
    %381 = vmatprep.subr.bf16.mxu0 0
    %382 = vmatpush1.bf16.msra.mxu0 0
    %383 = vmatprep.subr.bf16.mxu0 0
    %384 = vmatpush1.bf16.msra.mxu0 0
    %385 = vmatprep.subr.bf16.mxu0 0
    %386 = vmatpush1.bf16.msra.mxu0 0
    %387 = vmatprep.subr.bf16.mxu0 0
    %388 = vmatpush1.bf16.msra.mxu0 0
    %389 = vmatprep.mubr.bf16.mxu0 0
    %390 = vmatmul.mubr.bf16.gmra.mrb[0].mxu0 %v161
    %v391 = vpop.f32.mrb[0].mxu0
    %v392 = vadd.f32 0.0, %v391
    %v393 = vpop.f32.mrb[0].mxu0
    %v394 = vadd.f32 0.0, %v393
    %v395 = vpop.f32.mrb[0].mxu0
    %v396 = vadd.f32 0.0, %v395
    %v397 = vpop.f32.mrb[0].mxu0
    %v398 = vadd.f32 0.0, %v397
    %399 = vmatprep.mubr.bf16.mxu0 0
    %400 = vmatmul.mubr.bf16.gmra.mrb[0].mxu0 %v162
    %v401 = vpop.f32.mrb[0].mxu0
    %v402 = vadd.f32 0.0, %v401
    %v403 = vpop.f32.mrb[0].mxu0
    %v404 = vadd.f32 0.0, %v403
    %v405 = vpop.f32.mrb[0].mxu0
    %v406 = vadd.f32 0.0, %v405
    %v407 = vpop.f32.mrb[0].mxu0
    %v408 = vadd.f32 0.0, %v407
    %409 = vmatprep.mubr.bf16.mxu0 0
    %410 = vmatmul.mubr.bf16.gmra.mrb[0].mxu0 %v163
    %v411 = vpop.f32.mrb[0].mxu0
    %v412 = vadd.f32 0.0, %v411
    %v413 = vpop.f32.mrb[0].mxu0
    %v414 = vadd.f32 0.0, %v413
    %v415 = vpop.f32.mrb[0].mxu0
    %v416 = vadd.f32 0.0, %v415
    %v417 = vpop.f32.mrb[0].mxu0
    %v418 = vadd.f32 0.0, %v417
    %419 = vmatprep.mubr.bf16.mxu0 0
    %420 = vmatmul.mubr.bf16.gmra.mrb[0].mxu0 %v164
    %v421 = vpop.f32.mrb[0].mxu0
    %v422 = vadd.f32 0.0, %v421
    %v423 = vpop.f32.mrb[0].mxu0
    %v424 = vadd.f32 0.0, %v423
    %v425 = vpop.f32.mrb[0].mxu0
    %v426 = vadd.f32 0.0, %v425
    %v427 = vpop.f32.mrb[0].mxu0
    %v428 = vadd.f32 0.0, %v427
    %429 = vdwg.mxu0
    %430 = vmatprep.subr.bf16.mxu0 %v296
    %431 = vmatpush1.bf16.msra.mxu0 %v295
    %432 = vmatprep.subr.bf16.mxu0 %v300
    %433 = vmatpush1.bf16.msra.mxu0 %v299
    %434 = vmatprep.subr.bf16.mxu0 %v304
    %435 = vmatpush1.bf16.msra.mxu0 %v303
    %436 = vmatprep.subr.bf16.mxu0 %v308
    %437 = vmatpush1.bf16.msra.mxu0 %v307
    %438 = vmatprep.subr.bf16.mxu0 %v312
    %439 = vmatpush1.bf16.msra.mxu0 %v311
    %440 = vmatprep.subr.bf16.mxu0 %v316
    %441 = vmatpush1.bf16.msra.mxu0 %v315
    %442 = vmatprep.subr.bf16.mxu0 %v320
    %443 = vmatpush1.bf16.msra.mxu0 %v319
    %444 = vmatprep.subr.bf16.mxu0 %v324
    %445 = vmatpush1.bf16.msra.mxu0 %v323
    %446 = vmatprep.subr.bf16.mxu0 0
    %447 = vmatpush1.bf16.msra.mxu0 0
    %448 = vmatprep.subr.bf16.mxu0 0
    %449 = vmatpush1.bf16.msra.mxu0 0
    %450 = vmatprep.subr.bf16.mxu0 0
    %451 = vmatpush1.bf16.msra.mxu0 0
    %452 = vmatprep.subr.bf16.mxu0 0
    %453 = vmatpush1.bf16.msra.mxu0 0
    %454 = vmatprep.subr.bf16.mxu0 0
    %455 = vmatpush1.bf16.msra.mxu0 0
    %456 = vmatprep.subr.bf16.mxu0 0
    %457 = vmatpush1.bf16.msra.mxu0 0
    %458 = vmatprep.subr.bf16.mxu0 0
    %459 = vmatpush1.bf16.msra.mxu0 0
    %460 = vmatprep.subr.bf16.mxu0 0
    %461 = vmatpush1.bf16.msra.mxu0 0
    %462 = vmatprep.mubr.bf16.mxu0 0
    %463 = vmatmul.mubr.bf16.gmra.mrb[0].mxu0 %v161
    %v464 = vpop.f32.mrb[0].mxu0
    %v465 = vadd.f32 0.0, %v464
    %v466 = vpop.f32.mrb[0].mxu0
    %v467 = vadd.f32 0.0, %v466
    %v468 = vpop.f32.mrb[0].mxu0
    %v469 = vadd.f32 0.0, %v468
    %v470 = vpop.f32.mrb[0].mxu0
    %v471 = vadd.f32 0.0, %v470
    %472 = vmatprep.mubr.bf16.mxu0 0
    %473 = vmatmul.mubr.bf16.gmra.mrb[0].mxu0 %v162
    %v474 = vpop.f32.mrb[0].mxu0
    %v475 = vadd.f32 0.0, %v474
    %v476 = vpop.f32.mrb[0].mxu0
    %v477 = vadd.f32 0.0, %v476
    %v478 = vpop.f32.mrb[0].mxu0
    %v479 = vadd.f32 0.0, %v478
    %v480 = vpop.f32.mrb[0].mxu0
    %v481 = vadd.f32 0.0, %v480
    %482 = vmatprep.mubr.bf16.mxu0 0
    %483 = vmatmul.mubr.bf16.gmra.mrb[0].mxu0 %v163
    %v484 = vpop.f32.mrb[0].mxu0
    %v485 = vadd.f32 0.0, %v484
    %v486 = vpop.f32.mrb[0].mxu0
    %v487 = vadd.f32 0.0, %v486
    %v488 = vpop.f32.mrb[0].mxu0
    %v489 = vadd.f32 0.0, %v488
    %v490 = vpop.f32.mrb[0].mxu0
    %v491 = vadd.f32 0.0, %v490
    %492 = vmatprep.mubr.bf16.mxu0 0
    %493 = vmatmul.mubr.bf16.gmra.mrb[0].mxu0 %v164
    %v494 = vpop.f32.mrb[0].mxu0
    %v495 = vadd.f32 0.0, %v494
    %v496 = vpop.f32.mrb[0].mxu0
    %v497 = vadd.f32 0.0, %v496
    %v498 = vpop.f32.mrb[0].mxu0
    %v499 = vadd.f32 0.0, %v498
    %v500 = vpop.f32.mrb[0].mxu0
    %v501 = vadd.f32 0.0, %v500
    %502 = vdwg.mxu0
    %v503 = vld [vmem:[#allocation8] sm:$0xff]
    %v504 = vld [vmem:[#allocation8 + $0x8] sm:$0xff]
    %v505 = vld [vmem:[#allocation8 + $0x10] sm:$0xff]
    %v506 = vld [vmem:[#allocation8 + $0x18] sm:$0xff]
    %v507 = vadd.f32 %v392, %v503
    %v508 = vadd.f32 %v394, %v504
    %v509 = vadd.f32 %v465, %v505
    %v510 = vadd.f32 %v467, %v506
    %v511 = vadd.f32 %v396, %v503
    %v512 = vadd.f32 %v398, %v504
    %v513 = vadd.f32 %v469, %v505
    %v514 = vadd.f32 %v471, %v506
    %v515 = vadd.f32 %v402, %v503
    %v516 = vadd.f32 %v404, %v504
    %v517 = vadd.f32 %v475, %v505
    %v518 = vadd.f32 %v477, %v506
    %v519 = vadd.f32 %v406, %v503
    %v520 = vadd.f32 %v408, %v504
    %v521 = vadd.f32 %v479, %v505
    %v522 = vadd.f32 %v481, %v506
    %v523 = vadd.f32 %v412, %v503
    %v524 = vadd.f32 %v414, %v504
    %v525 = vadd.f32 %v485, %v505
    %v526 = vadd.f32 %v487, %v506
    %v527 = vadd.f32 %v416, %v503
    %v528 = vadd.f32 %v418, %v504
    %v529 = vadd.f32 %v489, %v505
    %v530 = vadd.f32 %v491, %v506
    %v531 = vadd.f32 %v422, %v503
    %v532 = vadd.f32 %v424, %v504
    %v533 = vadd.f32 %v495, %v505
    %v534 = vadd.f32 %v497, %v506
    %v535 = vadd.f32 %v426, %v503
    %v536 = vadd.f32 %v428, %v504
    %v537 = vadd.f32 %v499, %v505
    %v538 = vadd.f32 %v501, %v506
    %539 = vst [vmem:[#allocation2] sm:$0xff] %v507
    %540 = vst [vmem:[#allocation2 + $0x8] sm:$0xff] %v508
    %541 = vst [vmem:[#allocation2 + $0x10] sm:$0xff] %v509
    %542 = vst [vmem:[#allocation2 + $0x18] sm:$0xff] %v510
    %543 = vst [vmem:[#allocation2 + $0x20] sm:$0xff] %v511
    %544 = vst [vmem:[#allocation2 + $0x28] sm:$0xff] %v512
    %545 = vst [vmem:[#allocation2 + $0x30] sm:$0xff] %v513
    %546 = vst [vmem:[#allocation2 + $0x38] sm:$0xff] %v514
    %547 = vst [vmem:[#allocation2 + $0x40] sm:$0xff] %v515
    %548 = vst [vmem:[#allocation2 + $0x48] sm:$0xff] %v516
    %549 = vst [vmem:[#allocation2 + $0x50] sm:$0xff] %v517
    %550 = vst [vmem:[#allocation2 + $0x58] sm:$0xff] %v518
    %551 = vst [vmem:[#allocation2 + $0x60] sm:$0xff] %v519
    %552 = vst [vmem:[#allocation2 + $0x68] sm:$0xff] %v520
    %553 = vst [vmem:[#allocation2 + $0x70] sm:$0xff] %v521
    %554 = vst [vmem:[#allocation2 + $0x78] sm:$0xff] %v522
    %555 = vst [vmem:[#allocation2 + $0x80] sm:$0xff] %v523
    %556 = vst [vmem:[#allocation2 + $0x88] sm:$0xff] %v524
    %557 = vst [vmem:[#allocation2 + $0x90] sm:$0xff] %v525
    %558 = vst [vmem:[#allocation2 + $0x98] sm:$0xff] %v526
    %559 = vst [vmem:[#allocation2 + $0xa0] sm:$0xff] %v527
    %560 = vst [vmem:[#allocation2 + $0xa8] sm:$0xff] %v528
    %561 = vst [vmem:[#allocation2 + $0xb0] sm:$0xff] %v529
    %562 = vst [vmem:[#allocation2 + $0xb8] sm:$0xff] %v530
    %563 = vst [vmem:[#allocation2 + $0xc0] sm:$0xff] %v531
    %564 = vst [vmem:[#allocation2 + $0xc8] sm:$0xff] %v532
    %565 = vst [vmem:[#allocation2 + $0xd0] sm:$0xff] %v533
    %566 = vst [vmem:[#allocation2 + $0xd8] sm:$0xff] %v534
    %567 = vst [vmem:[#allocation2 + $0xe0] sm:$0xff] %v535
    %568 = vst [vmem:[#allocation2 + $0xe8] sm:$0xff] %v536
    %569 = vst [vmem:[#allocation2 + $0xf0] sm:$0xff] %v537
    %570 = vst [vmem:[#allocation2 + $0xf8] sm:$0xff] %v538
    %v571 = vld [vmem:[#allocation12] sm:$0xff]
    %v572 = vld [vmem:[#allocation12 + $0x8] sm:$0xff]
    %v573 = vld [vmem:[#allocation12 + $0x10] sm:$0xff]
    %v574 = vld [vmem:[#allocation12 + $0x18] sm:$0xff]
    %v575 = vld [vmem:[#allocation15] sm:$0xff]
    %v576 = vld [vmem:[#allocation15 + $0x8] sm:$0xff]
    %v577 = vld [vmem:[#allocation15 + $0x10] sm:$0xff]
    %v578 = vld [vmem:[#allocation15 + $0x18] sm:$0xff]
    loop: start=0, step=1, limit=2
    $region78: #{tpu_custom_call.1} parent=1 // loop_pre_header
      _
    $region79: #{tpu_custom_call.1} parent=1 // loop_header
      %s580 = sphi 0, %s584
      %p581 = scmp.ge.s32.totalorder %s580, 2
      %v585 = vphi 0.0, %v2669
      %v586 = vphi 0.0, %v2667
      %v587 = vphi 0.0, %v2776
      %v588 = vphi 0.0, %v2774
      %v589 = vphi 0.0, %v2884
      %v590 = vphi 0.0, %v2882
    $region80: #{tpu_custom_call.1} parent=1 // loop_header_branch
      %583 = sbr.rel (%p581) target = $region84
    $region81: #{tpu_custom_call.1} parent=1 // loop_body
      %s591 = smul.u32 %s580, 4
      %s592 = smul.u32 %s591, 4
      %s593 = smul.addr %s592, 8
      %s594 = scalar_lea.vmem [#allocation2], %s593
      %v595 = vld [vmem:[%s594] sm:$0xff]
      %v596 = vld [vmem:[%s594 + $0x8] sm:$0xff]
      %v597 = vld [vmem:[%s594 + $0x10] sm:$0xff]
      %v598 = vld [vmem:[%s594 + $0x18] sm:$0xff]
      %v599 = vpack.c.bf16 %v585, %v585
      %v600 = vld [vmem:[#allocation9] sm:$0xff]
      %v601 = vld [vmem:[#allocation9 + $0x8] sm:$0xff]
      %v602 = vld [vmem:[#allocation9 + $0x10] sm:$0xff]
      %v603 = vld [vmem:[#allocation9 + $0x18] sm:$0xff]
      %v604 = vld [vmem:[#allocation9 + $0x20] sm:$0xff]
      %v605 = vld [vmem:[#allocation9 + $0x28] sm:$0xff]
      %v606 = vld [vmem:[#allocation9 + $0x30] sm:$0xff]
      %v607 = vld [vmem:[#allocation9 + $0x38] sm:$0xff]
      %v608 = vld [vmem:[#allocation9 + $0x40] sm:$0xff]
      %v609 = vld [vmem:[#allocation9 + $0x48] sm:$0xff]
      %v610 = vld [vmem:[#allocation9 + $0x50] sm:$0xff]
      %v611 = vld [vmem:[#allocation9 + $0x58] sm:$0xff]
      %v612 = vld [vmem:[#allocation9 + $0x60] sm:$0xff]
      %v613 = vld [vmem:[#allocation9 + $0x68] sm:$0xff]
      %v614 = vld [vmem:[#allocation9 + $0x70] sm:$0xff]
      %v615 = vld [vmem:[#allocation9 + $0x78] sm:$0xff]
      %v616 = vld [vmem:[#allocation9 + $0x80] sm:$0xff]
      %v617 = vld [vmem:[#allocation9 + $0x88] sm:$0xff]
      %v618 = vld [vmem:[#allocation9 + $0x90] sm:$0xff]
      %v619 = vld [vmem:[#allocation9 + $0x98] sm:$0xff]
      %v620 = vld [vmem:[#allocation9 + $0xa0] sm:$0xff]
      %v621 = vld [vmem:[#allocation9 + $0xa8] sm:$0xff]
      %v622 = vld [vmem:[#allocation9 + $0xb0] sm:$0xff]
      %v623 = vld [vmem:[#allocation9 + $0xb8] sm:$0xff]
      %v624 = vld [vmem:[#allocation9 + $0xc0] sm:$0xff]
      %v625 = vld [vmem:[#allocation9 + $0xc8] sm:$0xff]
      %v626 = vld [vmem:[#allocation9 + $0xd0] sm:$0xff]
      %v627 = vld [vmem:[#allocation9 + $0xd8] sm:$0xff]
      %v628 = vld [vmem:[#allocation9 + $0xe0] sm:$0xff]
      %v629 = vld [vmem:[#allocation9 + $0xe8] sm:$0xff]
      %v630 = vld [vmem:[#allocation9 + $0xf0] sm:$0xff]
      %v631 = vld [vmem:[#allocation9 + $0xf8] sm:$0xff]
      %v664 = vunpack.c.l.b16 %v600
      %v665 = vunpack.c.h.b16 %v600
      %v666 = vunpack.c.l.b16 %v601
      %v667 = vunpack.c.h.b16 %v601
      %v668 = vunpack.c.l.b16 %v602
      %v669 = vunpack.c.h.b16 %v602
      %v670 = vunpack.c.l.b16 %v603
      %v671 = vunpack.c.h.b16 %v603
      %v672 = vunpack.c.l.b16 %v604
      %v673 = vunpack.c.h.b16 %v604
      %v674 = vunpack.c.l.b16 %v605
      %v675 = vunpack.c.h.b16 %v605
      %v676 = vunpack.c.l.b16 %v606
      %v677 = vunpack.c.h.b16 %v606
      %v678 = vunpack.c.l.b16 %v607
      %v679 = vunpack.c.h.b16 %v607
      %v680 = vunpack.c.l.b16 %v608
      %v681 = vunpack.c.h.b16 %v608
      %v682 = vunpack.c.l.b16 %v609
      %v683 = vunpack.c.h.b16 %v609
      %v684 = vunpack.c.l.b16 %v610
      %v685 = vunpack.c.h.b16 %v610
      %v686 = vunpack.c.l.b16 %v611
      %v687 = vunpack.c.h.b16 %v611
      %v688 = vunpack.c.l.b16 %v612
      %v689 = vunpack.c.h.b16 %v612
      %v690 = vunpack.c.l.b16 %v613
      %v691 = vunpack.c.h.b16 %v613
      %v692 = vunpack.c.l.b16 %v614
      %v693 = vunpack.c.h.b16 %v614
      %v694 = vunpack.c.l.b16 %v615
      %v695 = vunpack.c.h.b16 %v615
      %v696 = vunpack.c.l.b16 %v616
      %v697 = vunpack.c.h.b16 %v616
      %v698 = vunpack.c.l.b16 %v617
      %v699 = vunpack.c.h.b16 %v617
      %v700 = vunpack.c.l.b16 %v618
      %v701 = vunpack.c.h.b16 %v618
      %v702 = vunpack.c.l.b16 %v619
      %v703 = vunpack.c.h.b16 %v619
      %v704 = vunpack.c.l.b16 %v620
      %v705 = vunpack.c.h.b16 %v620
      %v706 = vunpack.c.l.b16 %v621
      %v707 = vunpack.c.h.b16 %v621
      %v708 = vunpack.c.l.b16 %v622
      %v709 = vunpack.c.h.b16 %v622
      %v710 = vunpack.c.l.b16 %v623
      %v711 = vunpack.c.h.b16 %v623
      %v712 = vunpack.c.l.b16 %v624
      %v713 = vunpack.c.h.b16 %v624
      %v714 = vunpack.c.l.b16 %v625
      %v715 = vunpack.c.h.b16 %v625
      %v716 = vunpack.c.l.b16 %v626
      %v717 = vunpack.c.h.b16 %v626
      %v718 = vunpack.c.l.b16 %v627
      %v719 = vunpack.c.h.b16 %v627
      %v720 = vunpack.c.l.b16 %v628
      %v721 = vunpack.c.h.b16 %v628
      %v722 = vunpack.c.l.b16 %v629
      %v723 = vunpack.c.h.b16 %v629
      %v724 = vunpack.c.l.b16 %v630
      %v725 = vunpack.c.h.b16 %v630
      %v726 = vunpack.c.l.b16 %v631
      %v727 = vunpack.c.h.b16 %v631
      %v728 = vpack.c.b16 %v668, %v664
      %v729 = vpack.c.b16 %v669, %v665
      %v730 = vpack.c.b16 %v670, %v666
      %v731 = vpack.c.b16 %v671, %v667
      %v732 = vpack.c.b16 %v676, %v672
      %v733 = vpack.c.b16 %v677, %v673
      %v734 = vpack.c.b16 %v678, %v674
      %v735 = vpack.c.b16 %v679, %v675
      %v736 = vpack.c.b16 %v684, %v680
      %v737 = vpack.c.b16 %v685, %v681
      %v738 = vpack.c.b16 %v686, %v682
      %v739 = vpack.c.b16 %v687, %v683
      %v740 = vpack.c.b16 %v692, %v688
      %v741 = vpack.c.b16 %v693, %v689
      %v742 = vpack.c.b16 %v694, %v690
      %v743 = vpack.c.b16 %v695, %v691
      %v744 = vpack.c.b16 %v700, %v696
      %v745 = vpack.c.b16 %v701, %v697
      %v746 = vpack.c.b16 %v702, %v698
      %v747 = vpack.c.b16 %v703, %v699
      %v748 = vpack.c.b16 %v708, %v704
      %v749 = vpack.c.b16 %v709, %v705
      %v750 = vpack.c.b16 %v710, %v706
      %v751 = vpack.c.b16 %v711, %v707
      %v752 = vpack.c.b16 %v716, %v712
      %v753 = vpack.c.b16 %v717, %v713
      %v754 = vpack.c.b16 %v718, %v714
      %v755 = vpack.c.b16 %v719, %v715
      %v756 = vpack.c.b16 %v724, %v720
      %v757 = vpack.c.b16 %v725, %v721
      %v758 = vpack.c.b16 %v726, %v722
      %v759 = vpack.c.b16 %v727, %v723
      %792 = vmatprep.subr.bf16.mxu0 %v729
      %793 = vmatpush1.bf16.msra.mxu0 %v728
      %794 = vmatprep.subr.bf16.mxu0 %v733
      %795 = vmatpush1.bf16.msra.mxu0 %v732
      %796 = vmatprep.subr.bf16.mxu0 %v737
      %797 = vmatpush1.bf16.msra.mxu0 %v736
      %798 = vmatprep.subr.bf16.mxu0 %v741
      %799 = vmatpush1.bf16.msra.mxu0 %v740
      %800 = vmatprep.subr.bf16.mxu0 %v745
      %801 = vmatpush1.bf16.msra.mxu0 %v744
      %802 = vmatprep.subr.bf16.mxu0 %v749
      %803 = vmatpush1.bf16.msra.mxu0 %v748
      %804 = vmatprep.subr.bf16.mxu0 %v753
      %805 = vmatpush1.bf16.msra.mxu0 %v752
      %806 = vmatprep.subr.bf16.mxu0 %v757
      %807 = vmatpush1.bf16.msra.mxu0 %v756
      %808 = vmatprep.subr.bf16.mxu0 0
      %809 = vmatpush1.bf16.msra.mxu0 0
      %810 = vmatprep.subr.bf16.mxu0 0
      %811 = vmatpush1.bf16.msra.mxu0 0
      %812 = vmatprep.subr.bf16.mxu0 0
      %813 = vmatpush1.bf16.msra.mxu0 0
      %814 = vmatprep.subr.bf16.mxu0 0
      %815 = vmatpush1.bf16.msra.mxu0 0
      %816 = vmatprep.subr.bf16.mxu0 0
      %817 = vmatpush1.bf16.msra.mxu0 0
      %818 = vmatprep.subr.bf16.mxu0 0
      %819 = vmatpush1.bf16.msra.mxu0 0
      %820 = vmatprep.subr.bf16.mxu0 0
      %821 = vmatpush1.bf16.msra.mxu0 0
      %822 = vmatprep.subr.bf16.mxu0 0
      %823 = vmatpush1.bf16.msra.mxu0 0
      %824 = vmatprep.mubr.bf16.mxu0 0
      %825 = vmatmul.mubr.bf16.gmra.mrb[0].mxu0 %v599
      %v826 = vpop.f32.mrb[0].mxu0
      %v827 = vadd.f32 0.0, %v826
      %v828 = vpop.f32.mrb[0].mxu0
      %v829 = vadd.f32 0.0, %v828
      %v830 = vpop.f32.mrb[0].mxu0
      %v831 = vpop.f32.mrb[0].mxu0
      %832 = vdwg.mxu0
      %833 = vmatprep.subr.bf16.mxu0 %v731
      %834 = vmatpush1.bf16.msra.mxu0 %v730
      %835 = vmatprep.subr.bf16.mxu0 %v735
      %836 = vmatpush1.bf16.msra.mxu0 %v734
      %837 = vmatprep.subr.bf16.mxu0 %v739
      %838 = vmatpush1.bf16.msra.mxu0 %v738
      %839 = vmatprep.subr.bf16.mxu0 %v743
      %840 = vmatpush1.bf16.msra.mxu0 %v742
      %841 = vmatprep.subr.bf16.mxu0 %v747
      %842 = vmatpush1.bf16.msra.mxu0 %v746
      %843 = vmatprep.subr.bf16.mxu0 %v751
      %844 = vmatpush1.bf16.msra.mxu0 %v750
      %845 = vmatprep.subr.bf16.mxu0 %v755
      %846 = vmatpush1.bf16.msra.mxu0 %v754
      %847 = vmatprep.subr.bf16.mxu0 %v759
      %848 = vmatpush1.bf16.msra.mxu0 %v758
      %849 = vmatprep.subr.bf16.mxu0 0
      %850 = vmatpush1.bf16.msra.mxu0 0
      %851 = vmatprep.subr.bf16.mxu0 0
      %852 = vmatpush1.bf16.msra.mxu0 0
      %853 = vmatprep.subr.bf16.mxu0 0
      %854 = vmatpush1.bf16.msra.mxu0 0
      %855 = vmatprep.subr.bf16.mxu0 0
      %856 = vmatpush1.bf16.msra.mxu0 0
      %857 = vmatprep.subr.bf16.mxu0 0
      %858 = vmatpush1.bf16.msra.mxu0 0
      %859 = vmatprep.subr.bf16.mxu0 0
      %860 = vmatpush1.bf16.msra.mxu0 0
      %861 = vmatprep.subr.bf16.mxu0 0
      %862 = vmatpush1.bf16.msra.mxu0 0
      %863 = vmatprep.subr.bf16.mxu0 0
      %864 = vmatpush1.bf16.msra.mxu0 0
      %865 = vmatprep.mubr.bf16.mxu0 0
      %866 = vmatmul.mubr.bf16.gmra.mrb[0].mxu0 %v599
      %v867 = vpop.f32.mrb[0].mxu0
      %v868 = vadd.f32 0.0, %v867
      %v869 = vpop.f32.mrb[0].mxu0
      %v870 = vadd.f32 0.0, %v869
      %v871 = vpop.f32.mrb[0].mxu0
      %v872 = vpop.f32.mrb[0].mxu0
      %873 = vdwg.mxu0
      %v874 = vadd.f32 %v595, %v827
      %v875 = vadd.f32 %v596, %v829
      %v876 = vadd.f32 %v597, %v868
      %v877 = vadd.f32 %v598, %v870
      %v878 = vxor.u32 %v874, 2147483648
      %v879 = vmul.f32 %v878, 1.442695
      %v880 = vpow.pop %v879
      %v881 = vadd.f32 %v880, 1.0
      %v882 = vrcp.pop %v881
      %v883 = vmul.f32 1.0, %v882
      %v884 = vxor.u32 %v875, 2147483648
      %v885 = vmul.f32 %v884, 1.442695
      %v886 = vpow.pop %v885
      %v887 = vadd.f32 %v886, 1.0
      %v888 = vrcp.pop %v887
      %v889 = vmul.f32 1.0, %v888
      %v890 = vtanh.pop %v876
      %v891 = vxor.u32 %v877, 2147483648
      %v892 = vmul.f32 %v891, 1.442695
      %v893 = vpow.pop %v892
      %v894 = vadd.f32 %v893, 1.0
      %v895 = vrcp.pop %v894
      %v896 = vmul.f32 1.0, %v895
      %v897 = vmul.f32 %v889, %v586
      %v898 = vmul.f32 %v883, %v890
      %v899 = vadd.f32 %v897, %v898
      %v900 = vtanh.pop %v899
      %v901 = vmul.f32 %v896, %v900
      %v902 = vpack.c.bf16 %v901, %v901
      %v903 = vpack.c.bf16 %v587, %v587
      %v904 = vld [vmem:[#allocation11] sm:$0xff]
      %v905 = vld [vmem:[#allocation11 + $0x8] sm:$0xff]
      %v906 = vld [vmem:[#allocation11 + $0x10] sm:$0xff]
      %v907 = vld [vmem:[#allocation11 + $0x18] sm:$0xff]
      %v908 = vld [vmem:[#allocation11 + $0x20] sm:$0xff]
      %v909 = vld [vmem:[#allocation11 + $0x28] sm:$0xff]
      %v910 = vld [vmem:[#allocation11 + $0x30] sm:$0xff]
      %v911 = vld [vmem:[#allocation11 + $0x38] sm:$0xff]
      %v912 = vld [vmem:[#allocation11 + $0x40] sm:$0xff]
      %v913 = vld [vmem:[#allocation11 + $0x48] sm:$0xff]
      %v914 = vld [vmem:[#allocation11 + $0x50] sm:$0xff]
      %v915 = vld [vmem:[#allocation11 + $0x58] sm:$0xff]
      %v916 = vld [vmem:[#allocation11 + $0x60] sm:$0xff]
      %v917 = vld [vmem:[#allocation11 + $0x68] sm:$0xff]
      %v918 = vld [vmem:[#allocation11 + $0x70] sm:$0xff]
      %v919 = vld [vmem:[#allocation11 + $0x78] sm:$0xff]
      %v920 = vld [vmem:[#allocation11 + $0x80] sm:$0xff]
      %v921 = vld [vmem:[#allocation11 + $0x88] sm:$0xff]
      %v922 = vld [vmem:[#allocation11 + $0x90] sm:$0xff]
      %v923 = vld [vmem:[#allocation11 + $0x98] sm:$0xff]
      %v924 = vld [vmem:[#allocation11 + $0xa0] sm:$0xff]
      %v925 = vld [vmem:[#allocation11 + $0xa8] sm:$0xff]
      %v926 = vld [vmem:[#allocation11 + $0xb0] sm:$0xff]
      %v927 = vld [vmem:[#allocation11 + $0xb8] sm:$0xff]
      %v928 = vld [vmem:[#allocation11 + $0xc0] sm:$0xff]
      %v929 = vld [vmem:[#allocation11 + $0xc8] sm:$0xff]
      %v930 = vld [vmem:[#allocation11 + $0xd0] sm:$0xff]
      %v931 = vld [vmem:[#allocation11 + $0xd8] sm:$0xff]
      %v932 = vld [vmem:[#allocation11 + $0xe0] sm:$0xff]
      %v933 = vld [vmem:[#allocation11 + $0xe8] sm:$0xff]
      %v934 = vld [vmem:[#allocation11 + $0xf0] sm:$0xff]
      %v935 = vld [vmem:[#allocation11 + $0xf8] sm:$0xff]
      %v936 = vld [vmem:[#allocation11 + $0x100] sm:$0xff]
      %v937 = vld [vmem:[#allocation11 + $0x108] sm:$0xff]
      %v938 = vld [vmem:[#allocation11 + $0x110] sm:$0xff]
      %v939 = vld [vmem:[#allocation11 + $0x118] sm:$0xff]
      %v940 = vld [vmem:[#allocation11 + $0x120] sm:$0xff]
      %v941 = vld [vmem:[#allocation11 + $0x128] sm:$0xff]
      %v942 = vld [vmem:[#allocation11 + $0x130] sm:$0xff]
      %v943 = vld [vmem:[#allocation11 + $0x138] sm:$0xff]
      %v944 = vld [vmem:[#allocation11 + $0x140] sm:$0xff]
      %v945 = vld [vmem:[#allocation11 + $0x148] sm:$0xff]
      %v946 = vld [vmem:[#allocation11 + $0x150] sm:$0xff]
      %v947 = vld [vmem:[#allocation11 + $0x158] sm:$0xff]
      %v948 = vld [vmem:[#allocation11 + $0x160] sm:$0xff]
      %v949 = vld [vmem:[#allocation11 + $0x168] sm:$0xff]
      %v950 = vld [vmem:[#allocation11 + $0x170] sm:$0xff]
      %v951 = vld [vmem:[#allocation11 + $0x178] sm:$0xff]
      %v952 = vld [vmem:[#allocation11 + $0x180] sm:$0xff]
      %v953 = vld [vmem:[#allocation11 + $0x188] sm:$0xff]
      %v954 = vld [vmem:[#allocation11 + $0x190] sm:$0xff]
      %v955 = vld [vmem:[#allocation11 + $0x198] sm:$0xff]
      %v956 = vld [vmem:[#allocation11 + $0x1a0] sm:$0xff]
      %v957 = vld [vmem:[#allocation11 + $0x1a8] sm:$0xff]
      %v958 = vld [vmem:[#allocation11 + $0x1b0] sm:$0xff]
      %v959 = vld [vmem:[#allocation11 + $0x1b8] sm:$0xff]
      %v960 = vld [vmem:[#allocation11 + $0x1c0] sm:$0xff]
      %v961 = vld [vmem:[#allocation11 + $0x1c8] sm:$0xff]
      %v962 = vld [vmem:[#allocation11 + $0x1d0] sm:$0xff]
      %v963 = vld [vmem:[#allocation11 + $0x1d8] sm:$0xff]
      %v964 = vld [vmem:[#allocation11 + $0x1e0] sm:$0xff]
      %v965 = vld [vmem:[#allocation11 + $0x1e8] sm:$0xff]
      %v966 = vld [vmem:[#allocation11 + $0x1f0] sm:$0xff]
      %v967 = vld [vmem:[#allocation11 + $0x1f8] sm:$0xff]
      %v1032 = vunpack.c.l.b16 %v904
      %v1033 = vunpack.c.h.b16 %v904
      %v1034 = vunpack.c.l.b16 %v905
      %v1035 = vunpack.c.h.b16 %v905
      %v1036 = vunpack.c.l.b16 %v906
      %v1037 = vunpack.c.h.b16 %v906
      %v1038 = vunpack.c.l.b16 %v907
      %v1039 = vunpack.c.h.b16 %v907
      %v1040 = vunpack.c.l.b16 %v908
      %v1041 = vunpack.c.h.b16 %v908
      %v1042 = vunpack.c.l.b16 %v909
      %v1043 = vunpack.c.h.b16 %v909
      %v1044 = vunpack.c.l.b16 %v910
      %v1045 = vunpack.c.h.b16 %v910
      %v1046 = vunpack.c.l.b16 %v911
      %v1047 = vunpack.c.h.b16 %v911
      %v1048 = vunpack.c.l.b16 %v912
      %v1049 = vunpack.c.h.b16 %v912
      %v1050 = vunpack.c.l.b16 %v913
      %v1051 = vunpack.c.h.b16 %v913
      %v1052 = vunpack.c.l.b16 %v914
      %v1053 = vunpack.c.h.b16 %v914
      %v1054 = vunpack.c.l.b16 %v915
      %v1055 = vunpack.c.h.b16 %v915
      %v1056 = vunpack.c.l.b16 %v916
      %v1057 = vunpack.c.h.b16 %v916
      %v1058 = vunpack.c.l.b16 %v917
      %v1059 = vunpack.c.h.b16 %v917
      %v1060 = vunpack.c.l.b16 %v918
      %v1061 = vunpack.c.h.b16 %v918
      %v1062 = vunpack.c.l.b16 %v919
      %v1063 = vunpack.c.h.b16 %v919
      %v1064 = vunpack.c.l.b16 %v920
      %v1065 = vunpack.c.h.b16 %v920
      %v1066 = vunpack.c.l.b16 %v921
      %v1067 = vunpack.c.h.b16 %v921
      %v1068 = vunpack.c.l.b16 %v922
      %v1069 = vunpack.c.h.b16 %v922
      %v1070 = vunpack.c.l.b16 %v923
      %v1071 = vunpack.c.h.b16 %v923
      %v1072 = vunpack.c.l.b16 %v924
      %v1073 = vunpack.c.h.b16 %v924
      %v1074 = vunpack.c.l.b16 %v925
      %v1075 = vunpack.c.h.b16 %v925
      %v1076 = vunpack.c.l.b16 %v926
      %v1077 = vunpack.c.h.b16 %v926
      %v1078 = vunpack.c.l.b16 %v927
      %v1079 = vunpack.c.h.b16 %v927
      %v1080 = vunpack.c.l.b16 %v928
      %v1081 = vunpack.c.h.b16 %v928
      %v1082 = vunpack.c.l.b16 %v929
      %v1083 = vunpack.c.h.b16 %v929
      %v1084 = vunpack.c.l.b16 %v930
      %v1085 = vunpack.c.h.b16 %v930
      %v1086 = vunpack.c.l.b16 %v931
      %v1087 = vunpack.c.h.b16 %v931
      %v1088 = vunpack.c.l.b16 %v932
      %v1089 = vunpack.c.h.b16 %v932
      %v1090 = vunpack.c.l.b16 %v933
      %v1091 = vunpack.c.h.b16 %v933
      %v1092 = vunpack.c.l.b16 %v934
      %v1093 = vunpack.c.h.b16 %v934
      %v1094 = vunpack.c.l.b16 %v935
      %v1095 = vunpack.c.h.b16 %v935
      %v1096 = vunpack.c.l.b16 %v936
      %v1097 = vunpack.c.h.b16 %v936
      %v1098 = vunpack.c.l.b16 %v937
      %v1099 = vunpack.c.h.b16 %v937
      %v1100 = vunpack.c.l.b16 %v938
      %v1101 = vunpack.c.h.b16 %v938
      %v1102 = vunpack.c.l.b16 %v939
      %v1103 = vunpack.c.h.b16 %v939
      %v1104 = vunpack.c.l.b16 %v940
      %v1105 = vunpack.c.h.b16 %v940
      %v1106 = vunpack.c.l.b16 %v941
      %v1107 = vunpack.c.h.b16 %v941
      %v1108 = vunpack.c.l.b16 %v942
      %v1109 = vunpack.c.h.b16 %v942
      %v1110 = vunpack.c.l.b16 %v943
      %v1111 = vunpack.c.h.b16 %v943
      %v1112 = vunpack.c.l.b16 %v944
      %v1113 = vunpack.c.h.b16 %v944
      %v1114 = vunpack.c.l.b16 %v945
      %v1115 = vunpack.c.h.b16 %v945
      %v1116 = vunpack.c.l.b16 %v946
      %v1117 = vunpack.c.h.b16 %v946
      %v1118 = vunpack.c.l.b16 %v947
      %v1119 = vunpack.c.h.b16 %v947
      %v1120 = vunpack.c.l.b16 %v948
      %v1121 = vunpack.c.h.b16 %v948
      %v1122 = vunpack.c.l.b16 %v949
      %v1123 = vunpack.c.h.b16 %v949
      %v1124 = vunpack.c.l.b16 %v950
      %v1125 = vunpack.c.h.b16 %v950
      %v1126 = vunpack.c.l.b16 %v951
      %v1127 = vunpack.c.h.b16 %v951
      %v1128 = vunpack.c.l.b16 %v952
      %v1129 = vunpack.c.h.b16 %v952
      %v1130 = vunpack.c.l.b16 %v953
      %v1131 = vunpack.c.h.b16 %v953
      %v1132 = vunpack.c.l.b16 %v954
      %v1133 = vunpack.c.h.b16 %v954
      %v1134 = vunpack.c.l.b16 %v955
      %v1135 = vunpack.c.h.b16 %v955
      %v1136 = vunpack.c.l.b16 %v956
      %v1137 = vunpack.c.h.b16 %v956
      %v1138 = vunpack.c.l.b16 %v957
      %v1139 = vunpack.c.h.b16 %v957
      %v1140 = vunpack.c.l.b16 %v958
      %v1141 = vunpack.c.h.b16 %v958
      %v1142 = vunpack.c.l.b16 %v959
      %v1143 = vunpack.c.h.b16 %v959
      %v1144 = vunpack.c.l.b16 %v960
      %v1145 = vunpack.c.h.b16 %v960
      %v1146 = vunpack.c.l.b16 %v961
      %v1147 = vunpack.c.h.b16 %v961
      %v1148 = vunpack.c.l.b16 %v962
      %v1149 = vunpack.c.h.b16 %v962
      %v1150 = vunpack.c.l.b16 %v963
      %v1151 = vunpack.c.h.b16 %v963
      %v1152 = vunpack.c.l.b16 %v964
      %v1153 = vunpack.c.h.b16 %v964
      %v1154 = vunpack.c.l.b16 %v965
      %v1155 = vunpack.c.h.b16 %v965
      %v1156 = vunpack.c.l.b16 %v966
      %v1157 = vunpack.c.h.b16 %v966
      %v1158 = vunpack.c.l.b16 %v967
      %v1159 = vunpack.c.h.b16 %v967
      %v1160 = vpack.c.b16 %v1036, %v1032
      %v1161 = vpack.c.b16 %v1037, %v1033
      %v1162 = vpack.c.b16 %v1038, %v1034
      %v1163 = vpack.c.b16 %v1039, %v1035
      %v1164 = vpack.c.b16 %v1044, %v1040
      %v1165 = vpack.c.b16 %v1045, %v1041
      %v1166 = vpack.c.b16 %v1046, %v1042
      %v1167 = vpack.c.b16 %v1047, %v1043
      %v1168 = vpack.c.b16 %v1052, %v1048
      %v1169 = vpack.c.b16 %v1053, %v1049
      %v1170 = vpack.c.b16 %v1054, %v1050
      %v1171 = vpack.c.b16 %v1055, %v1051
      %v1172 = vpack.c.b16 %v1060, %v1056
      %v1173 = vpack.c.b16 %v1061, %v1057
      %v1174 = vpack.c.b16 %v1062, %v1058
      %v1175 = vpack.c.b16 %v1063, %v1059
      %v1176 = vpack.c.b16 %v1068, %v1064
      %v1177 = vpack.c.b16 %v1069, %v1065
      %v1178 = vpack.c.b16 %v1070, %v1066
      %v1179 = vpack.c.b16 %v1071, %v1067
      %v1180 = vpack.c.b16 %v1076, %v1072
      %v1181 = vpack.c.b16 %v1077, %v1073
      %v1182 = vpack.c.b16 %v1078, %v1074
      %v1183 = vpack.c.b16 %v1079, %v1075
      %v1184 = vpack.c.b16 %v1084, %v1080
      %v1185 = vpack.c.b16 %v1085, %v1081
      %v1186 = vpack.c.b16 %v1086, %v1082
      %v1187 = vpack.c.b16 %v1087, %v1083
      %v1188 = vpack.c.b16 %v1092, %v1088
      %v1189 = vpack.c.b16 %v1093, %v1089
      %v1190 = vpack.c.b16 %v1094, %v1090
      %v1191 = vpack.c.b16 %v1095, %v1091
      %v1192 = vpack.c.b16 %v1100, %v1096
      %v1193 = vpack.c.b16 %v1101, %v1097
      %v1194 = vpack.c.b16 %v1102, %v1098
      %v1195 = vpack.c.b16 %v1103, %v1099
      %v1196 = vpack.c.b16 %v1108, %v1104
      %v1197 = vpack.c.b16 %v1109, %v1105
      %v1198 = vpack.c.b16 %v1110, %v1106
      %v1199 = vpack.c.b16 %v1111, %v1107
      %v1200 = vpack.c.b16 %v1116, %v1112
      %v1201 = vpack.c.b16 %v1117, %v1113
      %v1202 = vpack.c.b16 %v1118, %v1114
      %v1203 = vpack.c.b16 %v1119, %v1115
      %v1204 = vpack.c.b16 %v1124, %v1120
      %v1205 = vpack.c.b16 %v1125, %v1121
      %v1206 = vpack.c.b16 %v1126, %v1122
      %v1207 = vpack.c.b16 %v1127, %v1123
      %v1208 = vpack.c.b16 %v1132, %v1128
      %v1209 = vpack.c.b16 %v1133, %v1129
      %v1210 = vpack.c.b16 %v1134, %v1130
      %v1211 = vpack.c.b16 %v1135, %v1131
      %v1212 = vpack.c.b16 %v1140, %v1136
      %v1213 = vpack.c.b16 %v1141, %v1137
      %v1214 = vpack.c.b16 %v1142, %v1138
      %v1215 = vpack.c.b16 %v1143, %v1139
      %v1216 = vpack.c.b16 %v1148, %v1144
      %v1217 = vpack.c.b16 %v1149, %v1145
      %v1218 = vpack.c.b16 %v1150, %v1146
      %v1219 = vpack.c.b16 %v1151, %v1147
      %v1220 = vpack.c.b16 %v1156, %v1152
      %v1221 = vpack.c.b16 %v1157, %v1153
      %v1222 = vpack.c.b16 %v1158, %v1154
      %v1223 = vpack.c.b16 %v1159, %v1155
      %1288 = vmatprep.subr.bf16.mxu0 %v1161
      %1289 = vmatpush1.bf16.msra.mxu0 %v1160
      %1290 = vmatprep.subr.bf16.mxu0 %v1165
      %1291 = vmatpush1.bf16.msra.mxu0 %v1164
      %1292 = vmatprep.subr.bf16.mxu0 %v1169
      %1293 = vmatpush1.bf16.msra.mxu0 %v1168
      %1294 = vmatprep.subr.bf16.mxu0 %v1173
      %1295 = vmatpush1.bf16.msra.mxu0 %v1172
      %1296 = vmatprep.subr.bf16.mxu0 %v1177
      %1297 = vmatpush1.bf16.msra.mxu0 %v1176
      %1298 = vmatprep.subr.bf16.mxu0 %v1181
      %1299 = vmatpush1.bf16.msra.mxu0 %v1180
      %1300 = vmatprep.subr.bf16.mxu0 %v1185
      %1301 = vmatpush1.bf16.msra.mxu0 %v1184
      %1302 = vmatprep.subr.bf16.mxu0 %v1189
      %1303 = vmatpush1.bf16.msra.mxu0 %v1188
      %1304 = vmatprep.subr.bf16.mxu0 %v1193
      %1305 = vmatpush1.bf16.msra.mxu0 %v1192
      %1306 = vmatprep.subr.bf16.mxu0 %v1197
      %1307 = vmatpush1.bf16.msra.mxu0 %v1196
      %1308 = vmatprep.subr.bf16.mxu0 %v1201
      %1309 = vmatpush1.bf16.msra.mxu0 %v1200
      %1310 = vmatprep.subr.bf16.mxu0 %v1205
      %1311 = vmatpush1.bf16.msra.mxu0 %v1204
      %1312 = vmatprep.subr.bf16.mxu0 %v1209
      %1313 = vmatpush1.bf16.msra.mxu0 %v1208
      %1314 = vmatprep.subr.bf16.mxu0 %v1213
      %1315 = vmatpush1.bf16.msra.mxu0 %v1212
      %1316 = vmatprep.subr.bf16.mxu0 %v1217
      %1317 = vmatpush1.bf16.msra.mxu0 %v1216
      %1318 = vmatprep.subr.bf16.mxu0 %v1221
      %1319 = vmatpush1.bf16.msra.mxu0 %v1220
      %1320 = vmatprep.mubr.bf16.mxu0 %v903
      %1321 = vmatmul.mubr.bf16.gmra.mrb[0].mxu0 %v902
      %v1322 = vpop.f32.mrb[0].mxu0
      %v1323 = vadd.f32 %v571, %v1322
      %v1324 = vpop.f32.mrb[0].mxu0
      %v1325 = vadd.f32 %v572, %v1324
      %v1326 = vpop.f32.mrb[0].mxu0
      %v1327 = vpop.f32.mrb[0].mxu0
      %1328 = vdwg.mxu0
      %1329 = vmatprep.subr.bf16.mxu0 %v1163
      %1330 = vmatpush1.bf16.msra.mxu0 %v1162
      %1331 = vmatprep.subr.bf16.mxu0 %v1167
      %1332 = vmatpush1.bf16.msra.mxu0 %v1166
      %1333 = vmatprep.subr.bf16.mxu0 %v1171
      %1334 = vmatpush1.bf16.msra.mxu0 %v1170
      %1335 = vmatprep.subr.bf16.mxu0 %v1175
      %1336 = vmatpush1.bf16.msra.mxu0 %v1174
      %1337 = vmatprep.subr.bf16.mxu0 %v1179
      %1338 = vmatpush1.bf16.msra.mxu0 %v1178
      %1339 = vmatprep.subr.bf16.mxu0 %v1183
      %1340 = vmatpush1.bf16.msra.mxu0 %v1182
      %1341 = vmatprep.subr.bf16.mxu0 %v1187
      %1342 = vmatpush1.bf16.msra.mxu0 %v1186
      %1343 = vmatprep.subr.bf16.mxu0 %v1191
      %1344 = vmatpush1.bf16.msra.mxu0 %v1190
      %1345 = vmatprep.subr.bf16.mxu0 %v1195
      %1346 = vmatpush1.bf16.msra.mxu0 %v1194
      %1347 = vmatprep.subr.bf16.mxu0 %v1199
      %1348 = vmatpush1.bf16.msra.mxu0 %v1198
      %1349 = vmatprep.subr.bf16.mxu0 %v1203
      %1350 = vmatpush1.bf16.msra.mxu0 %v1202
      %1351 = vmatprep.subr.bf16.mxu0 %v1207
      %1352 = vmatpush1.bf16.msra.mxu0 %v1206
      %1353 = vmatprep.subr.bf16.mxu0 %v1211
      %1354 = vmatpush1.bf16.msra.mxu0 %v1210
      %1355 = vmatprep.subr.bf16.mxu0 %v1215
      %1356 = vmatpush1.bf16.msra.mxu0 %v1214
      %1357 = vmatprep.subr.bf16.mxu0 %v1219
      %1358 = vmatpush1.bf16.msra.mxu0 %v1218
      %1359 = vmatprep.subr.bf16.mxu0 %v1223
      %1360 = vmatpush1.bf16.msra.mxu0 %v1222
      %1361 = vmatprep.mubr.bf16.mxu0 %v903
      %1362 = vmatmul.mubr.bf16.gmra.mrb[0].mxu0 %v902
      %v1363 = vpop.f32.mrb[0].mxu0
      %v1364 = vadd.f32 %v573, %v1363
      %v1365 = vpop.f32.mrb[0].mxu0
      %v1366 = vadd.f32 %v574, %v1365
      %v1367 = vpop.f32.mrb[0].mxu0
      %v1368 = vpop.f32.mrb[0].mxu0
      %1369 = vdwg.mxu0
      %v1370 = vxor.u32 %v1323, 2147483648
      %v1371 = vmul.f32 %v1370, 1.442695
      %v1372 = vpow.pop %v1371
      %v1373 = vadd.f32 %v1372, 1.0
      %v1374 = vrcp.pop %v1373
      %v1375 = vmul.f32 1.0, %v1374
      %v1376 = vxor.u32 %v1325, 2147483648
      %v1377 = vmul.f32 %v1376, 1.442695
      %v1378 = vpow.pop %v1377
      %v1379 = vadd.f32 %v1378, 1.0
      %v1380 = vrcp.pop %v1379
      %v1381 = vmul.f32 1.0, %v1380
      %v1382 = vtanh.pop %v1364
      %v1383 = vxor.u32 %v1366, 2147483648
      %v1384 = vmul.f32 %v1383, 1.442695
      %v1385 = vpow.pop %v1384
      %v1386 = vadd.f32 %v1385, 1.0
      %v1387 = vrcp.pop %v1386
      %v1388 = vmul.f32 1.0, %v1387
      %v1389 = vmul.f32 %v1381, %v588
      %v1390 = vmul.f32 %v1375, %v1382
      %v1391 = vadd.f32 %v1389, %v1390
      %v1392 = vtanh.pop %v1391
      %v1393 = vmul.f32 %v1388, %v1392
      %v1394 = vpack.c.bf16 %v1393, %v1393
      %v1395 = vpack.c.bf16 %v589, %v589
      %v1396 = vld [vmem:[#allocation14] sm:$0xff]
      %v1397 = vld [vmem:[#allocation14 + $0x8] sm:$0xff]
      %v1398 = vld [vmem:[#allocation14 + $0x10] sm:$0xff]
      %v1399 = vld [vmem:[#allocation14 + $0x18] sm:$0xff]
      %v1400 = vld [vmem:[#allocation14 + $0x20] sm:$0xff]
      %v1401 = vld [vmem:[#allocation14 + $0x28] sm:$0xff]
      %v1402 = vld [vmem:[#allocation14 + $0x30] sm:$0xff]
      %v1403 = vld [vmem:[#allocation14 + $0x38] sm:$0xff]
      %v1404 = vld [vmem:[#allocation14 + $0x40] sm:$0xff]
      %v1405 = vld [vmem:[#allocation14 + $0x48] sm:$0xff]
      %v1406 = vld [vmem:[#allocation14 + $0x50] sm:$0xff]
      %v1407 = vld [vmem:[#allocation14 + $0x58] sm:$0xff]
      %v1408 = vld [vmem:[#allocation14 + $0x60] sm:$0xff]
      %v1409 = vld [vmem:[#allocation14 + $0x68] sm:$0xff]
      %v1410 = vld [vmem:[#allocation14 + $0x70] sm:$0xff]
      %v1411 = vld [vmem:[#allocation14 + $0x78] sm:$0xff]
      %v1412 = vld [vmem:[#allocation14 + $0x80] sm:$0xff]
      %v1413 = vld [vmem:[#allocation14 + $0x88] sm:$0xff]
      %v1414 = vld [vmem:[#allocation14 + $0x90] sm:$0xff]
      %v1415 = vld [vmem:[#allocation14 + $0x98] sm:$0xff]
      %v1416 = vld [vmem:[#allocation14 + $0xa0] sm:$0xff]
      %v1417 = vld [vmem:[#allocation14 + $0xa8] sm:$0xff]
      %v1418 = vld [vmem:[#allocation14 + $0xb0] sm:$0xff]
      %v1419 = vld [vmem:[#allocation14 + $0xb8] sm:$0xff]
      %v1420 = vld [vmem:[#allocation14 + $0xc0] sm:$0xff]
      %v1421 = vld [vmem:[#allocation14 + $0xc8] sm:$0xff]
      %v1422 = vld [vmem:[#allocation14 + $0xd0] sm:$0xff]
      %v1423 = vld [vmem:[#allocation14 + $0xd8] sm:$0xff]
      %v1424 = vld [vmem:[#allocation14 + $0xe0] sm:$0xff]
      %v1425 = vld [vmem:[#allocation14 + $0xe8] sm:$0xff]
      %v1426 = vld [vmem:[#allocation14 + $0xf0] sm:$0xff]
      %v1427 = vld [vmem:[#allocation14 + $0xf8] sm:$0xff]
      %v1428 = vld [vmem:[#allocation14 + $0x100] sm:$0xff]
      %v1429 = vld [vmem:[#allocation14 + $0x108] sm:$0xff]
      %v1430 = vld [vmem:[#allocation14 + $0x110] sm:$0xff]
      %v1431 = vld [vmem:[#allocation14 + $0x118] sm:$0xff]
      %v1432 = vld [vmem:[#allocation14 + $0x120] sm:$0xff]
      %v1433 = vld [vmem:[#allocation14 + $0x128] sm:$0xff]
      %v1434 = vld [vmem:[#allocation14 + $0x130] sm:$0xff]
      %v1435 = vld [vmem:[#allocation14 + $0x138] sm:$0xff]
      %v1436 = vld [vmem:[#allocation14 + $0x140] sm:$0xff]
      %v1437 = vld [vmem:[#allocation14 + $0x148] sm:$0xff]
      %v1438 = vld [vmem:[#allocation14 + $0x150] sm:$0xff]
      %v1439 = vld [vmem:[#allocation14 + $0x158] sm:$0xff]
      %v1440 = vld [vmem:[#allocation14 + $0x160] sm:$0xff]
      %v1441 = vld [vmem:[#allocation14 + $0x168] sm:$0xff]
      %v1442 = vld [vmem:[#allocation14 + $0x170] sm:$0xff]
      %v1443 = vld [vmem:[#allocation14 + $0x178] sm:$0xff]
      %v1444 = vld [vmem:[#allocation14 + $0x180] sm:$0xff]
      %v1445 = vld [vmem:[#allocation14 + $0x188] sm:$0xff]
      %v1446 = vld [vmem:[#allocation14 + $0x190] sm:$0xff]
      %v1447 = vld [vmem:[#allocation14 + $0x198] sm:$0xff]
      %v1448 = vld [vmem:[#allocation14 + $0x1a0] sm:$0xff]
      %v1449 = vld [vmem:[#allocation14 + $0x1a8] sm:$0xff]
      %v1450 = vld [vmem:[#allocation14 + $0x1b0] sm:$0xff]
      %v1451 = vld [vmem:[#allocation14 + $0x1b8] sm:$0xff]
      %v1452 = vld [vmem:[#allocation14 + $0x1c0] sm:$0xff]
      %v1453 = vld [vmem:[#allocation14 + $0x1c8] sm:$0xff]
      %v1454 = vld [vmem:[#allocation14 + $0x1d0] sm:$0xff]
      %v1455 = vld [vmem:[#allocation14 + $0x1d8] sm:$0xff]
      %v1456 = vld [vmem:[#allocation14 + $0x1e0] sm:$0xff]
      %v1457 = vld [vmem:[#allocation14 + $0x1e8] sm:$0xff]
      %v1458 = vld [vmem:[#allocation14 + $0x1f0] sm:$0xff]
      %v1459 = vld [vmem:[#allocation14 + $0x1f8] sm:$0xff]
      %v1524 = vunpack.c.l.b16 %v1396
      %v1525 = vunpack.c.h.b16 %v1396
      %v1526 = vunpack.c.l.b16 %v1397
      %v1527 = vunpack.c.h.b16 %v1397
      %v1528 = vunpack.c.l.b16 %v1398
      %v1529 = vunpack.c.h.b16 %v1398
      %v1530 = vunpack.c.l.b16 %v1399
      %v1531 = vunpack.c.h.b16 %v1399
      %v1532 = vunpack.c.l.b16 %v1400
      %v1533 = vunpack.c.h.b16 %v1400
      %v1534 = vunpack.c.l.b16 %v1401
      %v1535 = vunpack.c.h.b16 %v1401
      %v1536 = vunpack.c.l.b16 %v1402
      %v1537 = vunpack.c.h.b16 %v1402
      %v1538 = vunpack.c.l.b16 %v1403
      %v1539 = vunpack.c.h.b16 %v1403
      %v1540 = vunpack.c.l.b16 %v1404
      %v1541 = vunpack.c.h.b16 %v1404
      %v1542 = vunpack.c.l.b16 %v1405
      %v1543 = vunpack.c.h.b16 %v1405
      %v1544 = vunpack.c.l.b16 %v1406
      %v1545 = vunpack.c.h.b16 %v1406
      %v1546 = vunpack.c.l.b16 %v1407
      %v1547 = vunpack.c.h.b16 %v1407
      %v1548 = vunpack.c.l.b16 %v1408
      %v1549 = vunpack.c.h.b16 %v1408
      %v1550 = vunpack.c.l.b16 %v1409
      %v1551 = vunpack.c.h.b16 %v1409
      %v1552 = vunpack.c.l.b16 %v1410
      %v1553 = vunpack.c.h.b16 %v1410
      %v1554 = vunpack.c.l.b16 %v1411
      %v1555 = vunpack.c.h.b16 %v1411
      %v1556 = vunpack.c.l.b16 %v1412
      %v1557 = vunpack.c.h.b16 %v1412
      %v1558 = vunpack.c.l.b16 %v1413
      %v1559 = vunpack.c.h.b16 %v1413
      %v1560 = vunpack.c.l.b16 %v1414
      %v1561 = vunpack.c.h.b16 %v1414
      %v1562 = vunpack.c.l.b16 %v1415
      %v1563 = vunpack.c.h.b16 %v1415
      %v1564 = vunpack.c.l.b16 %v1416
      %v1565 = vunpack.c.h.b16 %v1416
      %v1566 = vunpack.c.l.b16 %v1417
      %v1567 = vunpack.c.h.b16 %v1417
      %v1568 = vunpack.c.l.b16 %v1418
      %v1569 = vunpack.c.h.b16 %v1418
      %v1570 = vunpack.c.l.b16 %v1419
      %v1571 = vunpack.c.h.b16 %v1419
      %v1572 = vunpack.c.l.b16 %v1420
      %v1573 = vunpack.c.h.b16 %v1420
      %v1574 = vunpack.c.l.b16 %v1421
      %v1575 = vunpack.c.h.b16 %v1421
      %v1576 = vunpack.c.l.b16 %v1422
      %v1577 = vunpack.c.h.b16 %v1422
      %v1578 = vunpack.c.l.b16 %v1423
      %v1579 = vunpack.c.h.b16 %v1423
      %v1580 = vunpack.c.l.b16 %v1424
      %v1581 = vunpack.c.h.b16 %v1424
      %v1582 = vunpack.c.l.b16 %v1425
      %v1583 = vunpack.c.h.b16 %v1425
      %v1584 = vunpack.c.l.b16 %v1426
      %v1585 = vunpack.c.h.b16 %v1426
      %v1586 = vunpack.c.l.b16 %v1427
      %v1587 = vunpack.c.h.b16 %v1427
      %v1588 = vunpack.c.l.b16 %v1428
      %v1589 = vunpack.c.h.b16 %v1428
      %v1590 = vunpack.c.l.b16 %v1429
      %v1591 = vunpack.c.h.b16 %v1429
      %v1592 = vunpack.c.l.b16 %v1430
      %v1593 = vunpack.c.h.b16 %v1430
      %v1594 = vunpack.c.l.b16 %v1431
      %v1595 = vunpack.c.h.b16 %v1431
      %v1596 = vunpack.c.l.b16 %v1432
      %v1597 = vunpack.c.h.b16 %v1432
      %v1598 = vunpack.c.l.b16 %v1433
      %v1599 = vunpack.c.h.b16 %v1433
      %v1600 = vunpack.c.l.b16 %v1434
      %v1601 = vunpack.c.h.b16 %v1434
      %v1602 = vunpack.c.l.b16 %v1435
      %v1603 = vunpack.c.h.b16 %v1435
      %v1604 = vunpack.c.l.b16 %v1436
      %v1605 = vunpack.c.h.b16 %v1436
      %v1606 = vunpack.c.l.b16 %v1437
      %v1607 = vunpack.c.h.b16 %v1437
      %v1608 = vunpack.c.l.b16 %v1438
      %v1609 = vunpack.c.h.b16 %v1438
      %v1610 = vunpack.c.l.b16 %v1439
      %v1611 = vunpack.c.h.b16 %v1439
      %v1612 = vunpack.c.l.b16 %v1440
      %v1613 = vunpack.c.h.b16 %v1440
      %v1614 = vunpack.c.l.b16 %v1441
      %v1615 = vunpack.c.h.b16 %v1441
      %v1616 = vunpack.c.l.b16 %v1442
      %v1617 = vunpack.c.h.b16 %v1442
      %v1618 = vunpack.c.l.b16 %v1443
      %v1619 = vunpack.c.h.b16 %v1443
      %v1620 = vunpack.c.l.b16 %v1444
      %v1621 = vunpack.c.h.b16 %v1444
      %v1622 = vunpack.c.l.b16 %v1445
      %v1623 = vunpack.c.h.b16 %v1445
      %v1624 = vunpack.c.l.b16 %v1446
      %v1625 = vunpack.c.h.b16 %v1446
      %v1626 = vunpack.c.l.b16 %v1447
      %v1627 = vunpack.c.h.b16 %v1447
      %v1628 = vunpack.c.l.b16 %v1448
      %v1629 = vunpack.c.h.b16 %v1448
      %v1630 = vunpack.c.l.b16 %v1449
      %v1631 = vunpack.c.h.b16 %v1449
      %v1632 = vunpack.c.l.b16 %v1450
      %v1633 = vunpack.c.h.b16 %v1450
      %v1634 = vunpack.c.l.b16 %v1451
      %v1635 = vunpack.c.h.b16 %v1451
      %v1636 = vunpack.c.l.b16 %v1452
      %v1637 = vunpack.c.h.b16 %v1452
      %v1638 = vunpack.c.l.b16 %v1453
      %v1639 = vunpack.c.h.b16 %v1453
      %v1640 = vunpack.c.l.b16 %v1454
      %v1641 = vunpack.c.h.b16 %v1454
      %v1642 = vunpack.c.l.b16 %v1455
      %v1643 = vunpack.c.h.b16 %v1455
      %v1644 = vunpack.c.l.b16 %v1456
      %v1645 = vunpack.c.h.b16 %v1456
      %v1646 = vunpack.c.l.b16 %v1457
      %v1647 = vunpack.c.h.b16 %v1457
      %v1648 = vunpack.c.l.b16 %v1458
      %v1649 = vunpack.c.h.b16 %v1458
      %v1650 = vunpack.c.l.b16 %v1459
      %v1651 = vunpack.c.h.b16 %v1459
      %v1652 = vpack.c.b16 %v1528, %v1524
      %v1653 = vpack.c.b16 %v1529, %v1525
      %v1654 = vpack.c.b16 %v1530, %v1526
      %v1655 = vpack.c.b16 %v1531, %v1527
      %v1656 = vpack.c.b16 %v1536, %v1532
      %v1657 = vpack.c.b16 %v1537, %v1533
      %v1658 = vpack.c.b16 %v1538, %v1534
      %v1659 = vpack.c.b16 %v1539, %v1535
      %v1660 = vpack.c.b16 %v1544, %v1540
      %v1661 = vpack.c.b16 %v1545, %v1541
      %v1662 = vpack.c.b16 %v1546, %v1542
      %v1663 = vpack.c.b16 %v1547, %v1543
      %v1664 = vpack.c.b16 %v1552, %v1548
      %v1665 = vpack.c.b16 %v1553, %v1549
      %v1666 = vpack.c.b16 %v1554, %v1550
      %v1667 = vpack.c.b16 %v1555, %v1551
      %v1668 = vpack.c.b16 %v1560, %v1556
      %v1669 = vpack.c.b16 %v1561, %v1557
      %v1670 = vpack.c.b16 %v1562, %v1558
      %v1671 = vpack.c.b16 %v1563, %v1559
      %v1672 = vpack.c.b16 %v1568, %v1564
      %v1673 = vpack.c.b16 %v1569, %v1565
      %v1674 = vpack.c.b16 %v1570, %v1566
      %v1675 = vpack.c.b16 %v1571, %v1567
      %v1676 = vpack.c.b16 %v1576, %v1572
      %v1677 = vpack.c.b16 %v1577, %v1573
      %v1678 = vpack.c.b16 %v1578, %v1574
      %v1679 = vpack.c.b16 %v1579, %v1575
      %v1680 = vpack.c.b16 %v1584, %v1580
      %v1681 = vpack.c.b16 %v1585, %v1581
      %v1682 = vpack.c.b16 %v1586, %v1582
      %v1683 = vpack.c.b16 %v1587, %v1583
      %v1684 = vpack.c.b16 %v1592, %v1588
      %v1685 = vpack.c.b16 %v1593, %v1589
      %v1686 = vpack.c.b16 %v1594, %v1590
      %v1687 = vpack.c.b16 %v1595, %v1591
      %v1688 = vpack.c.b16 %v1600, %v1596
      %v1689 = vpack.c.b16 %v1601, %v1597
      %v1690 = vpack.c.b16 %v1602, %v1598
      %v1691 = vpack.c.b16 %v1603, %v1599
      %v1692 = vpack.c.b16 %v1608, %v1604
      %v1693 = vpack.c.b16 %v1609, %v1605
      %v1694 = vpack.c.b16 %v1610, %v1606
      %v1695 = vpack.c.b16 %v1611, %v1607
      %v1696 = vpack.c.b16 %v1616, %v1612
      %v1697 = vpack.c.b16 %v1617, %v1613
      %v1698 = vpack.c.b16 %v1618, %v1614
      %v1699 = vpack.c.b16 %v1619, %v1615
      %v1700 = vpack.c.b16 %v1624, %v1620
      %v1701 = vpack.c.b16 %v1625, %v1621
      %v1702 = vpack.c.b16 %v1626, %v1622
      %v1703 = vpack.c.b16 %v1627, %v1623
      %v1704 = vpack.c.b16 %v1632, %v1628
      %v1705 = vpack.c.b16 %v1633, %v1629
      %v1706 = vpack.c.b16 %v1634, %v1630
      %v1707 = vpack.c.b16 %v1635, %v1631
      %v1708 = vpack.c.b16 %v1640, %v1636
      %v1709 = vpack.c.b16 %v1641, %v1637
      %v1710 = vpack.c.b16 %v1642, %v1638
      %v1711 = vpack.c.b16 %v1643, %v1639
      %v1712 = vpack.c.b16 %v1648, %v1644
      %v1713 = vpack.c.b16 %v1649, %v1645
      %v1714 = vpack.c.b16 %v1650, %v1646
      %v1715 = vpack.c.b16 %v1651, %v1647
      %1780 = vmatprep.subr.bf16.mxu0 %v1653
      %1781 = vmatpush1.bf16.msra.mxu0 %v1652
      %1782 = vmatprep.subr.bf16.mxu0 %v1657
      %1783 = vmatpush1.bf16.msra.mxu0 %v1656
      %1784 = vmatprep.subr.bf16.mxu0 %v1661
      %1785 = vmatpush1.bf16.msra.mxu0 %v1660
      %1786 = vmatprep.subr.bf16.mxu0 %v1665
      %1787 = vmatpush1.bf16.msra.mxu0 %v1664
      %1788 = vmatprep.subr.bf16.mxu0 %v1669
      %1789 = vmatpush1.bf16.msra.mxu0 %v1668
      %1790 = vmatprep.subr.bf16.mxu0 %v1673
      %1791 = vmatpush1.bf16.msra.mxu0 %v1672
      %1792 = vmatprep.subr.bf16.mxu0 %v1677
      %1793 = vmatpush1.bf16.msra.mxu0 %v1676
      %1794 = vmatprep.subr.bf16.mxu0 %v1681
      %1795 = vmatpush1.bf16.msra.mxu0 %v1680
      %1796 = vmatprep.subr.bf16.mxu0 %v1685
      %1797 = vmatpush1.bf16.msra.mxu0 %v1684
      %1798 = vmatprep.subr.bf16.mxu0 %v1689
      %1799 = vmatpush1.bf16.msra.mxu0 %v1688
      %1800 = vmatprep.subr.bf16.mxu0 %v1693
      %1801 = vmatpush1.bf16.msra.mxu0 %v1692
      %1802 = vmatprep.subr.bf16.mxu0 %v1697
      %1803 = vmatpush1.bf16.msra.mxu0 %v1696
      %1804 = vmatprep.subr.bf16.mxu0 %v1701
      %1805 = vmatpush1.bf16.msra.mxu0 %v1700
      %1806 = vmatprep.subr.bf16.mxu0 %v1705
      %1807 = vmatpush1.bf16.msra.mxu0 %v1704
      %1808 = vmatprep.subr.bf16.mxu0 %v1709
      %1809 = vmatpush1.bf16.msra.mxu0 %v1708
      %1810 = vmatprep.subr.bf16.mxu0 %v1713
      %1811 = vmatpush1.bf16.msra.mxu0 %v1712
      %1812 = vmatprep.mubr.bf16.mxu0 %v1395
      %1813 = vmatmul.mubr.bf16.gmra.mrb[0].mxu0 %v1394
      %v1814 = vpop.f32.mrb[0].mxu0
      %v1815 = vadd.f32 %v575, %v1814
      %v1816 = vpop.f32.mrb[0].mxu0
      %v1817 = vadd.f32 %v576, %v1816
      %v1818 = vpop.f32.mrb[0].mxu0
      %v1819 = vpop.f32.mrb[0].mxu0
      %1820 = vdwg.mxu0
      %1821 = vmatprep.subr.bf16.mxu0 %v1655
      %1822 = vmatpush1.bf16.msra.mxu0 %v1654
      %1823 = vmatprep.subr.bf16.mxu0 %v1659
      %1824 = vmatpush1.bf16.msra.mxu0 %v1658
      %1825 = vmatprep.subr.bf16.mxu0 %v1663
      %1826 = vmatpush1.bf16.msra.mxu0 %v1662
      %1827 = vmatprep.subr.bf16.mxu0 %v1667
      %1828 = vmatpush1.bf16.msra.mxu0 %v1666
      %1829 = vmatprep.subr.bf16.mxu0 %v1671
      %1830 = vmatpush1.bf16.msra.mxu0 %v1670
      %1831 = vmatprep.subr.bf16.mxu0 %v1675
      %1832 = vmatpush1.bf16.msra.mxu0 %v1674
      %1833 = vmatprep.subr.bf16.mxu0 %v1679
      %1834 = vmatpush1.bf16.msra.mxu0 %v1678
      %1835 = vmatprep.subr.bf16.mxu0 %v1683
      %1836 = vmatpush1.bf16.msra.mxu0 %v1682
      %1837 = vmatprep.subr.bf16.mxu0 %v1687
      %1838 = vmatpush1.bf16.msra.mxu0 %v1686
      %1839 = vmatprep.subr.bf16.mxu0 %v1691
      %1840 = vmatpush1.bf16.msra.mxu0 %v1690
      %1841 = vmatprep.subr.bf16.mxu0 %v1695
      %1842 = vmatpush1.bf16.msra.mxu0 %v1694
      %1843 = vmatprep.subr.bf16.mxu0 %v1699
      %1844 = vmatpush1.bf16.msra.mxu0 %v1698
      %1845 = vmatprep.subr.bf16.mxu0 %v1703
      %1846 = vmatpush1.bf16.msra.mxu0 %v1702
      %1847 = vmatprep.subr.bf16.mxu0 %v1707
      %1848 = vmatpush1.bf16.msra.mxu0 %v1706
      %1849 = vmatprep.subr.bf16.mxu0 %v1711
      %1850 = vmatpush1.bf16.msra.mxu0 %v1710
      %1851 = vmatprep.subr.bf16.mxu0 %v1715
      %1852 = vmatpush1.bf16.msra.mxu0 %v1714
      %1853 = vmatprep.mubr.bf16.mxu0 %v1395
      %1854 = vmatmul.mubr.bf16.gmra.mrb[0].mxu0 %v1394
      %v1855 = vpop.f32.mrb[0].mxu0
      %v1856 = vadd.f32 %v577, %v1855
      %v1857 = vpop.f32.mrb[0].mxu0
      %v1858 = vadd.f32 %v578, %v1857
      %v1859 = vpop.f32.mrb[0].mxu0
      %v1860 = vpop.f32.mrb[0].mxu0
      %1861 = vdwg.mxu0
      %v1862 = vxor.u32 %v1815, 2147483648
      %v1863 = vmul.f32 %v1862, 1.442695
      %v1864 = vpow.pop %v1863
      %v1865 = vadd.f32 %v1864, 1.0
      %v1866 = vrcp.pop %v1865
      %v1867 = vmul.f32 1.0, %v1866
      %v1868 = vxor.u32 %v1817, 2147483648
      %v1869 = vmul.f32 %v1868, 1.442695
      %v1870 = vpow.pop %v1869
      %v1871 = vadd.f32 %v1870, 1.0
      %v1872 = vrcp.pop %v1871
      %v1873 = vmul.f32 1.0, %v1872
      %v1874 = vtanh.pop %v1856
      %v1875 = vxor.u32 %v1858, 2147483648
      %v1876 = vmul.f32 %v1875, 1.442695
      %v1877 = vpow.pop %v1876
      %v1878 = vadd.f32 %v1877, 1.0
      %v1879 = vrcp.pop %v1878
      %v1880 = vmul.f32 1.0, %v1879
      %v1881 = vmul.f32 %v1873, %v590
      %v1882 = vmul.f32 %v1867, %v1874
      %v1883 = vadd.f32 %v1881, %v1882
      %v1884 = vtanh.pop %v1883
      %v1885 = vmul.f32 %v1880, %v1884
      %s1886 = sadd.s32 %s591, 1
      %s1887 = smul.u32 %s1886, 4
      %s1888 = smul.addr %s1887, 8
      %s1889 = scalar_lea.vmem [#allocation2], %s1888
      %v1890 = vld [vmem:[%s1889] sm:$0xff]
      %v1891 = vld [vmem:[%s1889 + $0x8] sm:$0xff]
      %v1892 = vld [vmem:[%s1889 + $0x10] sm:$0xff]
      %v1893 = vld [vmem:[%s1889 + $0x18] sm:$0xff]
      %1894 = vmatprep.subr.bf16.mxu0 %v729
      %1895 = vmatpush1.bf16.msra.mxu0 %v728
      %1896 = vmatprep.subr.bf16.mxu0 %v733
      %1897 = vmatpush1.bf16.msra.mxu0 %v732
      %1898 = vmatprep.subr.bf16.mxu0 %v737
      %1899 = vmatpush1.bf16.msra.mxu0 %v736
      %1900 = vmatprep.subr.bf16.mxu0 %v741
      %1901 = vmatpush1.bf16.msra.mxu0 %v740
      %1902 = vmatprep.subr.bf16.mxu0 %v745
      %1903 = vmatpush1.bf16.msra.mxu0 %v744
      %1904 = vmatprep.subr.bf16.mxu0 %v749
      %1905 = vmatpush1.bf16.msra.mxu0 %v748
      %1906 = vmatprep.subr.bf16.mxu0 %v753
      %1907 = vmatpush1.bf16.msra.mxu0 %v752
      %1908 = vmatprep.subr.bf16.mxu0 %v757
      %1909 = vmatpush1.bf16.msra.mxu0 %v756
      %1910 = vmatprep.subr.bf16.mxu0 0
      %1911 = vmatpush1.bf16.msra.mxu0 0
      %1912 = vmatprep.subr.bf16.mxu0 0
      %1913 = vmatpush1.bf16.msra.mxu0 0
      %1914 = vmatprep.subr.bf16.mxu0 0
      %1915 = vmatpush1.bf16.msra.mxu0 0
      %1916 = vmatprep.subr.bf16.mxu0 0
      %1917 = vmatpush1.bf16.msra.mxu0 0
      %1918 = vmatprep.subr.bf16.mxu0 0
      %1919 = vmatpush1.bf16.msra.mxu0 0
      %1920 = vmatprep.subr.bf16.mxu0 0
      %1921 = vmatpush1.bf16.msra.mxu0 0
      %1922 = vmatprep.subr.bf16.mxu0 0
      %1923 = vmatpush1.bf16.msra.mxu0 0
      %1924 = vmatprep.subr.bf16.mxu0 0
      %1925 = vmatpush1.bf16.msra.mxu0 0
      %1926 = vmatprep.mubr.bf16.mxu0 0
      %1927 = vmatmul.mubr.bf16.gmra.mrb[0].mxu0 %v902
      %v1928 = vpop.f32.mrb[0].mxu0
      %v1929 = vadd.f32 0.0, %v1928
      %v1930 = vpop.f32.mrb[0].mxu0
      %v1931 = vadd.f32 0.0, %v1930
      %v1932 = vpop.f32.mrb[0].mxu0
      %v1933 = vpop.f32.mrb[0].mxu0
      %1934 = vdwg.mxu0
      %1935 = vmatprep.subr.bf16.mxu0 %v731
      %1936 = vmatpush1.bf16.msra.mxu0 %v730
      %1937 = vmatprep.subr.bf16.mxu0 %v735
      %1938 = vmatpush1.bf16.msra.mxu0 %v734
      %1939 = vmatprep.subr.bf16.mxu0 %v739
      %1940 = vmatpush1.bf16.msra.mxu0 %v738
      %1941 = vmatprep.subr.bf16.mxu0 %v743
      %1942 = vmatpush1.bf16.msra.mxu0 %v742
      %1943 = vmatprep.subr.bf16.mxu0 %v747
      %1944 = vmatpush1.bf16.msra.mxu0 %v746
      %1945 = vmatprep.subr.bf16.mxu0 %v751
      %1946 = vmatpush1.bf16.msra.mxu0 %v750
      %1947 = vmatprep.subr.bf16.mxu0 %v755
      %1948 = vmatpush1.bf16.msra.mxu0 %v754
      %1949 = vmatprep.subr.bf16.mxu0 %v759
      %1950 = vmatpush1.bf16.msra.mxu0 %v758
      %1951 = vmatprep.subr.bf16.mxu0 0
      %1952 = vmatpush1.bf16.msra.mxu0 0
      %1953 = vmatprep.subr.bf16.mxu0 0
      %1954 = vmatpush1.bf16.msra.mxu0 0
      %1955 = vmatprep.subr.bf16.mxu0 0
      %1956 = vmatpush1.bf16.msra.mxu0 0
      %1957 = vmatprep.subr.bf16.mxu0 0
      %1958 = vmatpush1.bf16.msra.mxu0 0
      %1959 = vmatprep.subr.bf16.mxu0 0
      %1960 = vmatpush1.bf16.msra.mxu0 0
      %1961 = vmatprep.subr.bf16.mxu0 0
      %1962 = vmatpush1.bf16.msra.mxu0 0
      %1963 = vmatprep.subr.bf16.mxu0 0
      %1964 = vmatpush1.bf16.msra.mxu0 0
      %1965 = vmatprep.subr.bf16.mxu0 0
      %1966 = vmatpush1.bf16.msra.mxu0 0
      %1967 = vmatprep.mubr.bf16.mxu0 0
      %1968 = vmatmul.mubr.bf16.gmra.mrb[0].mxu0 %v902
      %v1969 = vpop.f32.mrb[0].mxu0
      %v1970 = vadd.f32 0.0, %v1969
      %v1971 = vpop.f32.mrb[0].mxu0
      %v1972 = vadd.f32 0.0, %v1971
      %v1973 = vpop.f32.mrb[0].mxu0
      %v1974 = vpop.f32.mrb[0].mxu0
      %1975 = vdwg.mxu0
      %v1976 = vadd.f32 %v1890, %v1929
      %v1977 = vadd.f32 %v1891, %v1931
      %v1978 = vadd.f32 %v1892, %v1970
      %v1979 = vadd.f32 %v1893, %v1972
      %v1980 = vxor.u32 %v1976, 2147483648
      %v1981 = vmul.f32 %v1980, 1.442695
      %v1982 = vpow.pop %v1981
      %v1983 = vadd.f32 %v1982, 1.0
      %v1984 = vrcp.pop %v1983
      %v1985 = vmul.f32 1.0, %v1984
      %v1986 = vxor.u32 %v1977, 2147483648
      %v1987 = vmul.f32 %v1986, 1.442695
      %v1988 = vpow.pop %v1987
      %v1989 = vadd.f32 %v1988, 1.0
      %v1990 = vrcp.pop %v1989
      %v1991 = vmul.f32 1.0, %v1990
      %v1992 = vtanh.pop %v1978
      %v1993 = vxor.u32 %v1979, 2147483648
      %v1994 = vmul.f32 %v1993, 1.442695
      %v1995 = vpow.pop %v1994
      %v1996 = vadd.f32 %v1995, 1.0
      %v1997 = vrcp.pop %v1996
      %v1998 = vmul.f32 1.0, %v1997
      %v1999 = vmul.f32 %v1991, %v899
      %v2000 = vmul.f32 %v1985, %v1992
      %v2001 = vadd.f32 %v1999, %v2000
      %v2002 = vtanh.pop %v2001
      %v2003 = vmul.f32 %v1998, %v2002
      %v2004 = vpack.c.bf16 %v2003, %v2003
      %2005 = vmatprep.subr.bf16.mxu0 %v1161
      %2006 = vmatpush1.bf16.msra.mxu0 %v1160
      %2007 = vmatprep.subr.bf16.mxu0 %v1165
      %2008 = vmatpush1.bf16.msra.mxu0 %v1164
      %2009 = vmatprep.subr.bf16.mxu0 %v1169
      %2010 = vmatpush1.bf16.msra.mxu0 %v1168
      %2011 = vmatprep.subr.bf16.mxu0 %v1173
      %2012 = vmatpush1.bf16.msra.mxu0 %v1172
      %2013 = vmatprep.subr.bf16.mxu0 %v1177
      %2014 = vmatpush1.bf16.msra.mxu0 %v1176
      %2015 = vmatprep.subr.bf16.mxu0 %v1181
      %2016 = vmatpush1.bf16.msra.mxu0 %v1180
      %2017 = vmatprep.subr.bf16.mxu0 %v1185
      %2018 = vmatpush1.bf16.msra.mxu0 %v1184
      %2019 = vmatprep.subr.bf16.mxu0 %v1189
      %2020 = vmatpush1.bf16.msra.mxu0 %v1188
      %2021 = vmatprep.subr.bf16.mxu0 %v1193
      %2022 = vmatpush1.bf16.msra.mxu0 %v1192
      %2023 = vmatprep.subr.bf16.mxu0 %v1197
      %2024 = vmatpush1.bf16.msra.mxu0 %v1196
      %2025 = vmatprep.subr.bf16.mxu0 %v1201
      %2026 = vmatpush1.bf16.msra.mxu0 %v1200
      %2027 = vmatprep.subr.bf16.mxu0 %v1205
      %2028 = vmatpush1.bf16.msra.mxu0 %v1204
      %2029 = vmatprep.subr.bf16.mxu0 %v1209
      %2030 = vmatpush1.bf16.msra.mxu0 %v1208
      %2031 = vmatprep.subr.bf16.mxu0 %v1213
      %2032 = vmatpush1.bf16.msra.mxu0 %v1212
      %2033 = vmatprep.subr.bf16.mxu0 %v1217
      %2034 = vmatpush1.bf16.msra.mxu0 %v1216
      %2035 = vmatprep.subr.bf16.mxu0 %v1221
      %2036 = vmatpush1.bf16.msra.mxu0 %v1220
      %2037 = vmatprep.mubr.bf16.mxu0 %v1394
      %2038 = vmatmul.mubr.bf16.gmra.mrb[0].mxu0 %v2004
      %v2039 = vpop.f32.mrb[0].mxu0
      %v2040 = vadd.f32 %v571, %v2039
      %v2041 = vpop.f32.mrb[0].mxu0
      %v2042 = vadd.f32 %v572, %v2041
      %v2043 = vpop.f32.mrb[0].mxu0
      %v2044 = vpop.f32.mrb[0].mxu0
      %2045 = vdwg.mxu0
      %2046 = vmatprep.subr.bf16.mxu0 %v1163
      %2047 = vmatpush1.bf16.msra.mxu0 %v1162
      %2048 = vmatprep.subr.bf16.mxu0 %v1167
      %2049 = vmatpush1.bf16.msra.mxu0 %v1166
      %2050 = vmatprep.subr.bf16.mxu0 %v1171
      %2051 = vmatpush1.bf16.msra.mxu0 %v1170
      %2052 = vmatprep.subr.bf16.mxu0 %v1175
      %2053 = vmatpush1.bf16.msra.mxu0 %v1174
      %2054 = vmatprep.subr.bf16.mxu0 %v1179
      %2055 = vmatpush1.bf16.msra.mxu0 %v1178
      %2056 = vmatprep.subr.bf16.mxu0 %v1183
      %2057 = vmatpush1.bf16.msra.mxu0 %v1182
      %2058 = vmatprep.subr.bf16.mxu0 %v1187
      %2059 = vmatpush1.bf16.msra.mxu0 %v1186
      %2060 = vmatprep.subr.bf16.mxu0 %v1191
      %2061 = vmatpush1.bf16.msra.mxu0 %v1190
      %2062 = vmatprep.subr.bf16.mxu0 %v1195
      %2063 = vmatpush1.bf16.msra.mxu0 %v1194
      %2064 = vmatprep.subr.bf16.mxu0 %v1199
      %2065 = vmatpush1.bf16.msra.mxu0 %v1198
      %2066 = vmatprep.subr.bf16.mxu0 %v1203
      %2067 = vmatpush1.bf16.msra.mxu0 %v1202
      %2068 = vmatprep.subr.bf16.mxu0 %v1207
      %2069 = vmatpush1.bf16.msra.mxu0 %v1206
      %2070 = vmatprep.subr.bf16.mxu0 %v1211
      %2071 = vmatpush1.bf16.msra.mxu0 %v1210
      %2072 = vmatprep.subr.bf16.mxu0 %v1215
      %2073 = vmatpush1.bf16.msra.mxu0 %v1214
      %2074 = vmatprep.subr.bf16.mxu0 %v1219
      %2075 = vmatpush1.bf16.msra.mxu0 %v1218
      %2076 = vmatprep.subr.bf16.mxu0 %v1223
      %2077 = vmatpush1.bf16.msra.mxu0 %v1222
      %2078 = vmatprep.mubr.bf16.mxu0 %v1394
      %2079 = vmatmul.mubr.bf16.gmra.mrb[0].mxu0 %v2004
      %v2080 = vpop.f32.mrb[0].mxu0
      %v2081 = vadd.f32 %v573, %v2080
      %v2082 = vpop.f32.mrb[0].mxu0
      %v2083 = vadd.f32 %v574, %v2082
      %v2084 = vpop.f32.mrb[0].mxu0
      %v2085 = vpop.f32.mrb[0].mxu0
      %2086 = vdwg.mxu0
      %v2087 = vxor.u32 %v2040, 2147483648
      %v2088 = vmul.f32 %v2087, 1.442695
      %v2089 = vpow.pop %v2088
      %v2090 = vadd.f32 %v2089, 1.0
      %v2091 = vrcp.pop %v2090
      %v2092 = vmul.f32 1.0, %v2091
      %v2093 = vxor.u32 %v2042, 2147483648
      %v2094 = vmul.f32 %v2093, 1.442695
      %v2095 = vpow.pop %v2094
      %v2096 = vadd.f32 %v2095, 1.0
      %v2097 = vrcp.pop %v2096
      %v2098 = vmul.f32 1.0, %v2097
      %v2099 = vtanh.pop %v2081
      %v2100 = vxor.u32 %v2083, 2147483648
      %v2101 = vmul.f32 %v2100, 1.442695
      %v2102 = vpow.pop %v2101
      %v2103 = vadd.f32 %v2102, 1.0
      %v2104 = vrcp.pop %v2103
      %v2105 = vmul.f32 1.0, %v2104
      %v2106 = vmul.f32 %v2098, %v1391
      %v2107 = vmul.f32 %v2092, %v2099
      %v2108 = vadd.f32 %v2106, %v2107
      %v2109 = vtanh.pop %v2108
      %v2110 = vmul.f32 %v2105, %v2109
      %v2111 = vpack.c.bf16 %v2110, %v2110
      %v2112 = vpack.c.bf16 %v1885, %v1885
      %2113 = vmatprep.subr.bf16.mxu0 %v1653
      %2114 = vmatpush1.bf16.msra.mxu0 %v1652
      %2115 = vmatprep.subr.bf16.mxu0 %v1657
      %2116 = vmatpush1.bf16.msra.mxu0 %v1656
      %2117 = vmatprep.subr.bf16.mxu0 %v1661
      %2118 = vmatpush1.bf16.msra.mxu0 %v1660
      %2119 = vmatprep.subr.bf16.mxu0 %v1665
      %2120 = vmatpush1.bf16.msra.mxu0 %v1664
      %2121 = vmatprep.subr.bf16.mxu0 %v1669
      %2122 = vmatpush1.bf16.msra.mxu0 %v1668
      %2123 = vmatprep.subr.bf16.mxu0 %v1673
      %2124 = vmatpush1.bf16.msra.mxu0 %v1672
      %2125 = vmatprep.subr.bf16.mxu0 %v1677
      %2126 = vmatpush1.bf16.msra.mxu0 %v1676
      %2127 = vmatprep.subr.bf16.mxu0 %v1681
      %2128 = vmatpush1.bf16.msra.mxu0 %v1680
      %2129 = vmatprep.subr.bf16.mxu0 %v1685
      %2130 = vmatpush1.bf16.msra.mxu0 %v1684
      %2131 = vmatprep.subr.bf16.mxu0 %v1689
      %2132 = vmatpush1.bf16.msra.mxu0 %v1688
      %2133 = vmatprep.subr.bf16.mxu0 %v1693
      %2134 = vmatpush1.bf16.msra.mxu0 %v1692
      %2135 = vmatprep.subr.bf16.mxu0 %v1697
      %2136 = vmatpush1.bf16.msra.mxu0 %v1696
      %2137 = vmatprep.subr.bf16.mxu0 %v1701
      %2138 = vmatpush1.bf16.msra.mxu0 %v1700
      %2139 = vmatprep.subr.bf16.mxu0 %v1705
      %2140 = vmatpush1.bf16.msra.mxu0 %v1704
      %2141 = vmatprep.subr.bf16.mxu0 %v1709
      %2142 = vmatpush1.bf16.msra.mxu0 %v1708
      %2143 = vmatprep.subr.bf16.mxu0 %v1713
      %2144 = vmatpush1.bf16.msra.mxu0 %v1712
      %2145 = vmatprep.mubr.bf16.mxu0 %v2112
      %2146 = vmatmul.mubr.bf16.gmra.mrb[0].mxu0 %v2111
      %v2147 = vpop.f32.mrb[0].mxu0
      %v2148 = vadd.f32 %v575, %v2147
      %v2149 = vpop.f32.mrb[0].mxu0
      %v2150 = vadd.f32 %v576, %v2149
      %v2151 = vpop.f32.mrb[0].mxu0
      %v2152 = vpop.f32.mrb[0].mxu0
      %2153 = vdwg.mxu0
      %2154 = vmatprep.subr.bf16.mxu0 %v1655
      %2155 = vmatpush1.bf16.msra.mxu0 %v1654
      %2156 = vmatprep.subr.bf16.mxu0 %v1659
      %2157 = vmatpush1.bf16.msra.mxu0 %v1658
      %2158 = vmatprep.subr.bf16.mxu0 %v1663
      %2159 = vmatpush1.bf16.msra.mxu0 %v1662
      %2160 = vmatprep.subr.bf16.mxu0 %v1667
      %2161 = vmatpush1.bf16.msra.mxu0 %v1666
      %2162 = vmatprep.subr.bf16.mxu0 %v1671
      %2163 = vmatpush1.bf16.msra.mxu0 %v1670
      %2164 = vmatprep.subr.bf16.mxu0 %v1675
      %2165 = vmatpush1.bf16.msra.mxu0 %v1674
      %2166 = vmatprep.subr.bf16.mxu0 %v1679
      %2167 = vmatpush1.bf16.msra.mxu0 %v1678
      %2168 = vmatprep.subr.bf16.mxu0 %v1683
      %2169 = vmatpush1.bf16.msra.mxu0 %v1682
      %2170 = vmatprep.subr.bf16.mxu0 %v1687
      %2171 = vmatpush1.bf16.msra.mxu0 %v1686
      %2172 = vmatprep.subr.bf16.mxu0 %v1691
      %2173 = vmatpush1.bf16.msra.mxu0 %v1690
      %2174 = vmatprep.subr.bf16.mxu0 %v1695
      %2175 = vmatpush1.bf16.msra.mxu0 %v1694
      %2176 = vmatprep.subr.bf16.mxu0 %v1699
      %2177 = vmatpush1.bf16.msra.mxu0 %v1698
      %2178 = vmatprep.subr.bf16.mxu0 %v1703
      %2179 = vmatpush1.bf16.msra.mxu0 %v1702
      %2180 = vmatprep.subr.bf16.mxu0 %v1707
      %2181 = vmatpush1.bf16.msra.mxu0 %v1706
      %2182 = vmatprep.subr.bf16.mxu0 %v1711
      %2183 = vmatpush1.bf16.msra.mxu0 %v1710
      %2184 = vmatprep.subr.bf16.mxu0 %v1715
      %2185 = vmatpush1.bf16.msra.mxu0 %v1714
      %2186 = vmatprep.mubr.bf16.mxu0 %v2112
      %2187 = vmatmul.mubr.bf16.gmra.mrb[0].mxu0 %v2111
      %v2188 = vpop.f32.mrb[0].mxu0
      %v2189 = vadd.f32 %v577, %v2188
      %v2190 = vpop.f32.mrb[0].mxu0
      %v2191 = vadd.f32 %v578, %v2190
      %v2192 = vpop.f32.mrb[0].mxu0
      %v2193 = vpop.f32.mrb[0].mxu0
      %2194 = vdwg.mxu0
      %v2195 = vxor.u32 %v2148, 2147483648
      %v2196 = vmul.f32 %v2195, 1.442695
      %v2197 = vpow.pop %v2196
      %v2198 = vadd.f32 %v2197, 1.0
      %v2199 = vrcp.pop %v2198
      %v2200 = vmul.f32 1.0, %v2199
      %v2201 = vxor.u32 %v2150, 2147483648
      %v2202 = vmul.f32 %v2201, 1.442695
      %v2203 = vpow.pop %v2202
      %v2204 = vadd.f32 %v2203, 1.0
      %v2205 = vrcp.pop %v2204
      %v2206 = vmul.f32 1.0, %v2205
      %v2207 = vtanh.pop %v2189
      %v2208 = vxor.u32 %v2191, 2147483648
      %v2209 = vmul.f32 %v2208, 1.442695
      %v2210 = vpow.pop %v2209
      %v2211 = vadd.f32 %v2210, 1.0
      %v2212 = vrcp.pop %v2211
      %v2213 = vmul.f32 1.0, %v2212
      %v2214 = vmul.f32 %v2206, %v1883
      %v2215 = vmul.f32 %v2200, %v2207
      %v2216 = vadd.f32 %v2214, %v2215
      %v2217 = vtanh.pop %v2216
      %v2218 = vmul.f32 %v2213, %v2217
      %s2219 = sadd.s32 %s591, 2
      %s2220 = smul.u32 %s2219, 4
      %s2221 = smul.addr %s2220, 8
      %s2222 = scalar_lea.vmem [#allocation2], %s2221
      %v2223 = vld [vmem:[%s2222] sm:$0xff]
      %v2224 = vld [vmem:[%s2222 + $0x8] sm:$0xff]
      %v2225 = vld [vmem:[%s2222 + $0x10] sm:$0xff]
      %v2226 = vld [vmem:[%s2222 + $0x18] sm:$0xff]
      %2227 = vmatprep.subr.bf16.mxu0 %v729
      %2228 = vmatpush1.bf16.msra.mxu0 %v728
      %2229 = vmatprep.subr.bf16.mxu0 %v733
      %2230 = vmatpush1.bf16.msra.mxu0 %v732
      %2231 = vmatprep.subr.bf16.mxu0 %v737
      %2232 = vmatpush1.bf16.msra.mxu0 %v736
      %2233 = vmatprep.subr.bf16.mxu0 %v741
      %2234 = vmatpush1.bf16.msra.mxu0 %v740
      %2235 = vmatprep.subr.bf16.mxu0 %v745
      %2236 = vmatpush1.bf16.msra.mxu0 %v744
      %2237 = vmatprep.subr.bf16.mxu0 %v749
      %2238 = vmatpush1.bf16.msra.mxu0 %v748
      %2239 = vmatprep.subr.bf16.mxu0 %v753
      %2240 = vmatpush1.bf16.msra.mxu0 %v752
      %2241 = vmatprep.subr.bf16.mxu0 %v757
      %2242 = vmatpush1.bf16.msra.mxu0 %v756
      %2243 = vmatprep.subr.bf16.mxu0 0
      %2244 = vmatpush1.bf16.msra.mxu0 0
      %2245 = vmatprep.subr.bf16.mxu0 0
      %2246 = vmatpush1.bf16.msra.mxu0 0
      %2247 = vmatprep.subr.bf16.mxu0 0
      %2248 = vmatpush1.bf16.msra.mxu0 0
      %2249 = vmatprep.subr.bf16.mxu0 0
      %2250 = vmatpush1.bf16.msra.mxu0 0
      %2251 = vmatprep.subr.bf16.mxu0 0
      %2252 = vmatpush1.bf16.msra.mxu0 0
      %2253 = vmatprep.subr.bf16.mxu0 0
      %2254 = vmatpush1.bf16.msra.mxu0 0
      %2255 = vmatprep.subr.bf16.mxu0 0
      %2256 = vmatpush1.bf16.msra.mxu0 0
      %2257 = vmatprep.subr.bf16.mxu0 0
      %2258 = vmatpush1.bf16.msra.mxu0 0
      %2259 = vmatprep.mubr.bf16.mxu0 0
      %2260 = vmatmul.mubr.bf16.gmra.mrb[0].mxu0 %v2004
      %v2261 = vpop.f32.mrb[0].mxu0
      %v2262 = vadd.f32 0.0, %v2261
      %v2263 = vpop.f32.mrb[0].mxu0
      %v2264 = vadd.f32 0.0, %v2263
      %v2265 = vpop.f32.mrb[0].mxu0
      %v2266 = vpop.f32.mrb[0].mxu0
      %2267 = vdwg.mxu0
      %2268 = vmatprep.subr.bf16.mxu0 %v731
      %2269 = vmatpush1.bf16.msra.mxu0 %v730
      %2270 = vmatprep.subr.bf16.mxu0 %v735
      %2271 = vmatpush1.bf16.msra.mxu0 %v734
      %2272 = vmatprep.subr.bf16.mxu0 %v739
      %2273 = vmatpush1.bf16.msra.mxu0 %v738
      %2274 = vmatprep.subr.bf16.mxu0 %v743
      %2275 = vmatpush1.bf16.msra.mxu0 %v742
      %2276 = vmatprep.subr.bf16.mxu0 %v747
      %2277 = vmatpush1.bf16.msra.mxu0 %v746
      %2278 = vmatprep.subr.bf16.mxu0 %v751
      %2279 = vmatpush1.bf16.msra.mxu0 %v750
      %2280 = vmatprep.subr.bf16.mxu0 %v755
      %2281 = vmatpush1.bf16.msra.mxu0 %v754
      %2282 = vmatprep.subr.bf16.mxu0 %v759
      %2283 = vmatpush1.bf16.msra.mxu0 %v758
      %2284 = vmatprep.subr.bf16.mxu0 0
      %2285 = vmatpush1.bf16.msra.mxu0 0
      %2286 = vmatprep.subr.bf16.mxu0 0
      %2287 = vmatpush1.bf16.msra.mxu0 0
      %2288 = vmatprep.subr.bf16.mxu0 0
      %2289 = vmatpush1.bf16.msra.mxu0 0
      %2290 = vmatprep.subr.bf16.mxu0 0
      %2291 = vmatpush1.bf16.msra.mxu0 0
      %2292 = vmatprep.subr.bf16.mxu0 0
      %2293 = vmatpush1.bf16.msra.mxu0 0
      %2294 = vmatprep.subr.bf16.mxu0 0
      %2295 = vmatpush1.bf16.msra.mxu0 0
      %2296 = vmatprep.subr.bf16.mxu0 0
      %2297 = vmatpush1.bf16.msra.mxu0 0
      %2298 = vmatprep.subr.bf16.mxu0 0
      %2299 = vmatpush1.bf16.msra.mxu0 0
      %2300 = vmatprep.mubr.bf16.mxu0 0
      %2301 = vmatmul.mubr.bf16.gmra.mrb[0].mxu0 %v2004
      %v2302 = vpop.f32.mrb[0].mxu0
      %v2303 = vadd.f32 0.0, %v2302
      %v2304 = vpop.f32.mrb[0].mxu0
      %v2305 = vadd.f32 0.0, %v2304
      %v2306 = vpop.f32.mrb[0].mxu0
      %v2307 = vpop.f32.mrb[0].mxu0
      %2308 = vdwg.mxu0
      %v2309 = vadd.f32 %v2223, %v2262
      %v2310 = vadd.f32 %v2224, %v2264
      %v2311 = vadd.f32 %v2225, %v2303
      %v2312 = vadd.f32 %v2226, %v2305
      %v2313 = vxor.u32 %v2309, 2147483648
      %v2314 = vmul.f32 %v2313, 1.442695
      %v2315 = vpow.pop %v2314
      %v2316 = vadd.f32 %v2315, 1.0
      %v2317 = vrcp.pop %v2316
      %v2318 = vmul.f32 1.0, %v2317
      %v2319 = vxor.u32 %v2310, 2147483648
      %v2320 = vmul.f32 %v2319, 1.442695
      %v2321 = vpow.pop %v2320
      %v2322 = vadd.f32 %v2321, 1.0
      %v2323 = vrcp.pop %v2322
      %v2324 = vmul.f32 1.0, %v2323
      %v2325 = vtanh.pop %v2311
      %v2326 = vxor.u32 %v2312, 2147483648
      %v2327 = vmul.f32 %v2326, 1.442695
      %v2328 = vpow.pop %v2327
      %v2329 = vadd.f32 %v2328, 1.0
      %v2330 = vrcp.pop %v2329
      %v2331 = vmul.f32 1.0, %v2330
      %v2332 = vmul.f32 %v2324, %v2001
      %v2333 = vmul.f32 %v2318, %v2325
      %v2334 = vadd.f32 %v2332, %v2333
      %v2335 = vtanh.pop %v2334
      %v2336 = vmul.f32 %v2331, %v2335
      %v2337 = vpack.c.bf16 %v2336, %v2336
      %2338 = vmatprep.subr.bf16.mxu0 %v1161
      %2339 = vmatpush1.bf16.msra.mxu0 %v1160
      %2340 = vmatprep.subr.bf16.mxu0 %v1165
      %2341 = vmatpush1.bf16.msra.mxu0 %v1164
      %2342 = vmatprep.subr.bf16.mxu0 %v1169
      %2343 = vmatpush1.bf16.msra.mxu0 %v1168
      %2344 = vmatprep.subr.bf16.mxu0 %v1173
      %2345 = vmatpush1.bf16.msra.mxu0 %v1172
      %2346 = vmatprep.subr.bf16.mxu0 %v1177
      %2347 = vmatpush1.bf16.msra.mxu0 %v1176
      %2348 = vmatprep.subr.bf16.mxu0 %v1181
      %2349 = vmatpush1.bf16.msra.mxu0 %v1180
      %2350 = vmatprep.subr.bf16.mxu0 %v1185
      %2351 = vmatpush1.bf16.msra.mxu0 %v1184
      %2352 = vmatprep.subr.bf16.mxu0 %v1189
      %2353 = vmatpush1.bf16.msra.mxu0 %v1188
      %2354 = vmatprep.subr.bf16.mxu0 %v1193
      %2355 = vmatpush1.bf16.msra.mxu0 %v1192
      %2356 = vmatprep.subr.bf16.mxu0 %v1197
      %2357 = vmatpush1.bf16.msra.mxu0 %v1196
      %2358 = vmatprep.subr.bf16.mxu0 %v1201
      %2359 = vmatpush1.bf16.msra.mxu0 %v1200
      %2360 = vmatprep.subr.bf16.mxu0 %v1205
      %2361 = vmatpush1.bf16.msra.mxu0 %v1204
      %2362 = vmatprep.subr.bf16.mxu0 %v1209
      %2363 = vmatpush1.bf16.msra.mxu0 %v1208
      %2364 = vmatprep.subr.bf16.mxu0 %v1213
      %2365 = vmatpush1.bf16.msra.mxu0 %v1212
      %2366 = vmatprep.subr.bf16.mxu0 %v1217
      %2367 = vmatpush1.bf16.msra.mxu0 %v1216
      %2368 = vmatprep.subr.bf16.mxu0 %v1221
      %2369 = vmatpush1.bf16.msra.mxu0 %v1220
      %2370 = vmatprep.mubr.bf16.mxu0 %v2111
      %2371 = vmatmul.mubr.bf16.gmra.mrb[0].mxu0 %v2337
      %v2372 = vpop.f32.mrb[0].mxu0
      %v2373 = vadd.f32 %v571, %v2372
      %v2374 = vpop.f32.mrb[0].mxu0
      %v2375 = vadd.f32 %v572, %v2374
      %v2376 = vpop.f32.mrb[0].mxu0
      %v2377 = vpop.f32.mrb[0].mxu0
      %2378 = vdwg.mxu0
      %2379 = vmatprep.subr.bf16.mxu0 %v1163
      %2380 = vmatpush1.bf16.msra.mxu0 %v1162
      %2381 = vmatprep.subr.bf16.mxu0 %v1167
      %2382 = vmatpush1.bf16.msra.mxu0 %v1166
      %2383 = vmatprep.subr.bf16.mxu0 %v1171
      %2384 = vmatpush1.bf16.msra.mxu0 %v1170
      %2385 = vmatprep.subr.bf16.mxu0 %v1175
      %2386 = vmatpush1.bf16.msra.mxu0 %v1174
      %2387 = vmatprep.subr.bf16.mxu0 %v1179
      %2388 = vmatpush1.bf16.msra.mxu0 %v1178
      %2389 = vmatprep.subr.bf16.mxu0 %v1183
      %2390 = vmatpush1.bf16.msra.mxu0 %v1182
      %2391 = vmatprep.subr.bf16.mxu0 %v1187
      %2392 = vmatpush1.bf16.msra.mxu0 %v1186
      %2393 = vmatprep.subr.bf16.mxu0 %v1191
      %2394 = vmatpush1.bf16.msra.mxu0 %v1190
      %2395 = vmatprep.subr.bf16.mxu0 %v1195
      %2396 = vmatpush1.bf16.msra.mxu0 %v1194
      %2397 = vmatprep.subr.bf16.mxu0 %v1199
      %2398 = vmatpush1.bf16.msra.mxu0 %v1198
      %2399 = vmatprep.subr.bf16.mxu0 %v1203
      %2400 = vmatpush1.bf16.msra.mxu0 %v1202
      %2401 = vmatprep.subr.bf16.mxu0 %v1207
      %2402 = vmatpush1.bf16.msra.mxu0 %v1206
      %2403 = vmatprep.subr.bf16.mxu0 %v1211
      %2404 = vmatpush1.bf16.msra.mxu0 %v1210
      %2405 = vmatprep.subr.bf16.mxu0 %v1215
      %2406 = vmatpush1.bf16.msra.mxu0 %v1214
      %2407 = vmatprep.subr.bf16.mxu0 %v1219
      %2408 = vmatpush1.bf16.msra.mxu0 %v1218
      %2409 = vmatprep.subr.bf16.mxu0 %v1223
      %2410 = vmatpush1.bf16.msra.mxu0 %v1222
      %2411 = vmatprep.mubr.bf16.mxu0 %v2111
      %2412 = vmatmul.mubr.bf16.gmra.mrb[0].mxu0 %v2337
      %v2413 = vpop.f32.mrb[0].mxu0
      %v2414 = vadd.f32 %v573, %v2413
      %v2415 = vpop.f32.mrb[0].mxu0
      %v2416 = vadd.f32 %v574, %v2415
      %v2417 = vpop.f32.mrb[0].mxu0
      %v2418 = vpop.f32.mrb[0].mxu0
      %2419 = vdwg.mxu0
      %v2420 = vxor.u32 %v2373, 2147483648
      %v2421 = vmul.f32 %v2420, 1.442695
      %v2422 = vpow.pop %v2421
      %v2423 = vadd.f32 %v2422, 1.0
      %v2424 = vrcp.pop %v2423
      %v2425 = vmul.f32 1.0, %v2424
      %v2426 = vxor.u32 %v2375, 2147483648
      %v2427 = vmul.f32 %v2426, 1.442695
      %v2428 = vpow.pop %v2427
      %v2429 = vadd.f32 %v2428, 1.0
      %v2430 = vrcp.pop %v2429
      %v2431 = vmul.f32 1.0, %v2430
      %v2432 = vtanh.pop %v2414
      %v2433 = vxor.u32 %v2416, 2147483648
      %v2434 = vmul.f32 %v2433, 1.442695
      %v2435 = vpow.pop %v2434
      %v2436 = vadd.f32 %v2435, 1.0
      %v2437 = vrcp.pop %v2436
      %v2438 = vmul.f32 1.0, %v2437
      %v2439 = vmul.f32 %v2431, %v2108
      %v2440 = vmul.f32 %v2425, %v2432
      %v2441 = vadd.f32 %v2439, %v2440
      %v2442 = vtanh.pop %v2441
      %v2443 = vmul.f32 %v2438, %v2442
      %v2444 = vpack.c.bf16 %v2443, %v2443
      %v2445 = vpack.c.bf16 %v2218, %v2218
      %2446 = vmatprep.subr.bf16.mxu0 %v1653
      %2447 = vmatpush1.bf16.msra.mxu0 %v1652
      %2448 = vmatprep.subr.bf16.mxu0 %v1657
      %2449 = vmatpush1.bf16.msra.mxu0 %v1656
      %2450 = vmatprep.subr.bf16.mxu0 %v1661
      %2451 = vmatpush1.bf16.msra.mxu0 %v1660
      %2452 = vmatprep.subr.bf16.mxu0 %v1665
      %2453 = vmatpush1.bf16.msra.mxu0 %v1664
      %2454 = vmatprep.subr.bf16.mxu0 %v1669
      %2455 = vmatpush1.bf16.msra.mxu0 %v1668
      %2456 = vmatprep.subr.bf16.mxu0 %v1673
      %2457 = vmatpush1.bf16.msra.mxu0 %v1672
      %2458 = vmatprep.subr.bf16.mxu0 %v1677
      %2459 = vmatpush1.bf16.msra.mxu0 %v1676
      %2460 = vmatprep.subr.bf16.mxu0 %v1681
      %2461 = vmatpush1.bf16.msra.mxu0 %v1680
      %2462 = vmatprep.subr.bf16.mxu0 %v1685
      %2463 = vmatpush1.bf16.msra.mxu0 %v1684
      %2464 = vmatprep.subr.bf16.mxu0 %v1689
      %2465 = vmatpush1.bf16.msra.mxu0 %v1688
      %2466 = vmatprep.subr.bf16.mxu0 %v1693
      %2467 = vmatpush1.bf16.msra.mxu0 %v1692
      %2468 = vmatprep.subr.bf16.mxu0 %v1697
      %2469 = vmatpush1.bf16.msra.mxu0 %v1696
      %2470 = vmatprep.subr.bf16.mxu0 %v1701
      %2471 = vmatpush1.bf16.msra.mxu0 %v1700
      %2472 = vmatprep.subr.bf16.mxu0 %v1705
      %2473 = vmatpush1.bf16.msra.mxu0 %v1704
      %2474 = vmatprep.subr.bf16.mxu0 %v1709
      %2475 = vmatpush1.bf16.msra.mxu0 %v1708
      %2476 = vmatprep.subr.bf16.mxu0 %v1713
      %2477 = vmatpush1.bf16.msra.mxu0 %v1712
      %2478 = vmatprep.mubr.bf16.mxu0 %v2445
      %2479 = vmatmul.mubr.bf16.gmra.mrb[0].mxu0 %v2444
      %v2480 = vpop.f32.mrb[0].mxu0
      %v2481 = vadd.f32 %v575, %v2480
      %v2482 = vpop.f32.mrb[0].mxu0
      %v2483 = vadd.f32 %v576, %v2482
      %v2484 = vpop.f32.mrb[0].mxu0
      %v2485 = vpop.f32.mrb[0].mxu0
      %2486 = vdwg.mxu0
      %2487 = vmatprep.subr.bf16.mxu0 %v1655
      %2488 = vmatpush1.bf16.msra.mxu0 %v1654
      %2489 = vmatprep.subr.bf16.mxu0 %v1659
      %2490 = vmatpush1.bf16.msra.mxu0 %v1658
      %2491 = vmatprep.subr.bf16.mxu0 %v1663
      %2492 = vmatpush1.bf16.msra.mxu0 %v1662
      %2493 = vmatprep.subr.bf16.mxu0 %v1667
      %2494 = vmatpush1.bf16.msra.mxu0 %v1666
      %2495 = vmatprep.subr.bf16.mxu0 %v1671
      %2496 = vmatpush1.bf16.msra.mxu0 %v1670
      %2497 = vmatprep.subr.bf16.mxu0 %v1675
      %2498 = vmatpush1.bf16.msra.mxu0 %v1674
      %2499 = vmatprep.subr.bf16.mxu0 %v1679
      %2500 = vmatpush1.bf16.msra.mxu0 %v1678
      %2501 = vmatprep.subr.bf16.mxu0 %v1683
      %2502 = vmatpush1.bf16.msra.mxu0 %v1682
      %2503 = vmatprep.subr.bf16.mxu0 %v1687
      %2504 = vmatpush1.bf16.msra.mxu0 %v1686
      %2505 = vmatprep.subr.bf16.mxu0 %v1691
      %2506 = vmatpush1.bf16.msra.mxu0 %v1690
      %2507 = vmatprep.subr.bf16.mxu0 %v1695
      %2508 = vmatpush1.bf16.msra.mxu0 %v1694
      %2509 = vmatprep.subr.bf16.mxu0 %v1699
      %2510 = vmatpush1.bf16.msra.mxu0 %v1698
      %2511 = vmatprep.subr.bf16.mxu0 %v1703
      %2512 = vmatpush1.bf16.msra.mxu0 %v1702
      %2513 = vmatprep.subr.bf16.mxu0 %v1707
      %2514 = vmatpush1.bf16.msra.mxu0 %v1706
      %2515 = vmatprep.subr.bf16.mxu0 %v1711
      %2516 = vmatpush1.bf16.msra.mxu0 %v1710
      %2517 = vmatprep.subr.bf16.mxu0 %v1715
      %2518 = vmatpush1.bf16.msra.mxu0 %v1714
      %2519 = vmatprep.mubr.bf16.mxu0 %v2445
      %2520 = vmatmul.mubr.bf16.gmra.mrb[0].mxu0 %v2444
      %v2521 = vpop.f32.mrb[0].mxu0
      %v2522 = vadd.f32 %v577, %v2521
      %v2523 = vpop.f32.mrb[0].mxu0
      %v2524 = vadd.f32 %v578, %v2523
      %v2525 = vpop.f32.mrb[0].mxu0
      %v2526 = vpop.f32.mrb[0].mxu0
      %2527 = vdwg.mxu0
      %v2528 = vxor.u32 %v2481, 2147483648
      %v2529 = vmul.f32 %v2528, 1.442695
      %v2530 = vpow.pop %v2529
      %v2531 = vadd.f32 %v2530, 1.0
      %v2532 = vrcp.pop %v2531
      %v2533 = vmul.f32 1.0, %v2532
      %v2534 = vxor.u32 %v2483, 2147483648
      %v2535 = vmul.f32 %v2534, 1.442695
      %v2536 = vpow.pop %v2535
      %v2537 = vadd.f32 %v2536, 1.0
      %v2538 = vrcp.pop %v2537
      %v2539 = vmul.f32 1.0, %v2538
      %v2540 = vtanh.pop %v2522
      %v2541 = vxor.u32 %v2524, 2147483648
      %v2542 = vmul.f32 %v2541, 1.442695
      %v2543 = vpow.pop %v2542
      %v2544 = vadd.f32 %v2543, 1.0
      %v2545 = vrcp.pop %v2544
      %v2546 = vmul.f32 1.0, %v2545
      %v2547 = vmul.f32 %v2539, %v2216
      %v2548 = vmul.f32 %v2533, %v2540
      %v2549 = vadd.f32 %v2547, %v2548
      %v2550 = vtanh.pop %v2549
      %v2551 = vmul.f32 %v2546, %v2550
      %s2552 = sadd.s32 %s591, 3
      %s2553 = smul.u32 %s2552, 4
      %s2554 = smul.addr %s2553, 8
      %s2555 = scalar_lea.vmem [#allocation2], %s2554
      %v2556 = vld [vmem:[%s2555] sm:$0xff]
      %v2557 = vld [vmem:[%s2555 + $0x8] sm:$0xff]
      %v2558 = vld [vmem:[%s2555 + $0x10] sm:$0xff]
      %v2559 = vld [vmem:[%s2555 + $0x18] sm:$0xff]
      %2560 = vmatprep.subr.bf16.mxu0 %v729
      %2561 = vmatpush1.bf16.msra.mxu0 %v728
      %2562 = vmatprep.subr.bf16.mxu0 %v733
      %2563 = vmatpush1.bf16.msra.mxu0 %v732
      %2564 = vmatprep.subr.bf16.mxu0 %v737
      %2565 = vmatpush1.bf16.msra.mxu0 %v736
      %2566 = vmatprep.subr.bf16.mxu0 %v741
      %2567 = vmatpush1.bf16.msra.mxu0 %v740
      %2568 = vmatprep.subr.bf16.mxu0 %v745
      %2569 = vmatpush1.bf16.msra.mxu0 %v744
      %2570 = vmatprep.subr.bf16.mxu0 %v749
      %2571 = vmatpush1.bf16.msra.mxu0 %v748
      %2572 = vmatprep.subr.bf16.mxu0 %v753
      %2573 = vmatpush1.bf16.msra.mxu0 %v752
      %2574 = vmatprep.subr.bf16.mxu0 %v757
      %2575 = vmatpush1.bf16.msra.mxu0 %v756
      %2576 = vmatprep.subr.bf16.mxu0 0
      %2577 = vmatpush1.bf16.msra.mxu0 0
      %2578 = vmatprep.subr.bf16.mxu0 0
      %2579 = vmatpush1.bf16.msra.mxu0 0
      %2580 = vmatprep.subr.bf16.mxu0 0
      %2581 = vmatpush1.bf16.msra.mxu0 0
      %2582 = vmatprep.subr.bf16.mxu0 0
      %2583 = vmatpush1.bf16.msra.mxu0 0
      %2584 = vmatprep.subr.bf16.mxu0 0
      %2585 = vmatpush1.bf16.msra.mxu0 0
      %2586 = vmatprep.subr.bf16.mxu0 0
      %2587 = vmatpush1.bf16.msra.mxu0 0
      %2588 = vmatprep.subr.bf16.mxu0 0
      %2589 = vmatpush1.bf16.msra.mxu0 0
      %2590 = vmatprep.subr.bf16.mxu0 0
      %2591 = vmatpush1.bf16.msra.mxu0 0
      %2592 = vmatprep.mubr.bf16.mxu0 0
      %2593 = vmatmul.mubr.bf16.gmra.mrb[0].mxu0 %v2337
      %v2594 = vpop.f32.mrb[0].mxu0
      %v2595 = vadd.f32 0.0, %v2594
      %v2596 = vpop.f32.mrb[0].mxu0
      %v2597 = vadd.f32 0.0, %v2596
      %v2598 = vpop.f32.mrb[0].mxu0
      %v2599 = vpop.f32.mrb[0].mxu0
      %2600 = vdwg.mxu0
      %2601 = vmatprep.subr.bf16.mxu0 %v731
      %2602 = vmatpush1.bf16.msra.mxu0 %v730
      %2603 = vmatprep.subr.bf16.mxu0 %v735
      %2604 = vmatpush1.bf16.msra.mxu0 %v734
      %2605 = vmatprep.subr.bf16.mxu0 %v739
      %2606 = vmatpush1.bf16.msra.mxu0 %v738
      %2607 = vmatprep.subr.bf16.mxu0 %v743
      %2608 = vmatpush1.bf16.msra.mxu0 %v742
      %2609 = vmatprep.subr.bf16.mxu0 %v747
      %2610 = vmatpush1.bf16.msra.mxu0 %v746
      %2611 = vmatprep.subr.bf16.mxu0 %v751
      %2612 = vmatpush1.bf16.msra.mxu0 %v750
      %2613 = vmatprep.subr.bf16.mxu0 %v755
      %2614 = vmatpush1.bf16.msra.mxu0 %v754
      %2615 = vmatprep.subr.bf16.mxu0 %v759
      %2616 = vmatpush1.bf16.msra.mxu0 %v758
      %2617 = vmatprep.subr.bf16.mxu0 0
      %2618 = vmatpush1.bf16.msra.mxu0 0
      %2619 = vmatprep.subr.bf16.mxu0 0
      %2620 = vmatpush1.bf16.msra.mxu0 0
      %2621 = vmatprep.subr.bf16.mxu0 0
      %2622 = vmatpush1.bf16.msra.mxu0 0
      %2623 = vmatprep.subr.bf16.mxu0 0
      %2624 = vmatpush1.bf16.msra.mxu0 0
      %2625 = vmatprep.subr.bf16.mxu0 0
      %2626 = vmatpush1.bf16.msra.mxu0 0
      %2627 = vmatprep.subr.bf16.mxu0 0
      %2628 = vmatpush1.bf16.msra.mxu0 0
      %2629 = vmatprep.subr.bf16.mxu0 0
      %2630 = vmatpush1.bf16.msra.mxu0 0
      %2631 = vmatprep.subr.bf16.mxu0 0
      %2632 = vmatpush1.bf16.msra.mxu0 0
      %2633 = vmatprep.mubr.bf16.mxu0 0
      %2634 = vmatmul.mubr.bf16.gmra.mrb[0].mxu0 %v2337
      %v2635 = vpop.f32.mrb[0].mxu0
      %v2636 = vadd.f32 0.0, %v2635
      %v2637 = vpop.f32.mrb[0].mxu0
      %v2638 = vadd.f32 0.0, %v2637
      %v2639 = vpop.f32.mrb[0].mxu0
      %v2640 = vpop.f32.mrb[0].mxu0
      %2641 = vdwg.mxu0
      %v2642 = vadd.f32 %v2556, %v2595
      %v2643 = vadd.f32 %v2557, %v2597
      %v2644 = vadd.f32 %v2558, %v2636
      %v2645 = vadd.f32 %v2559, %v2638
      %v2646 = vxor.u32 %v2642, 2147483648
      %v2647 = vmul.f32 %v2646, 1.442695
      %v2648 = vpow.pop %v2647
      %v2649 = vadd.f32 %v2648, 1.0
      %v2650 = vrcp.pop %v2649
      %v2651 = vmul.f32 1.0, %v2650
      %v2652 = vxor.u32 %v2643, 2147483648
      %v2653 = vmul.f32 %v2652, 1.442695
      %v2654 = vpow.pop %v2653
      %v2655 = vadd.f32 %v2654, 1.0
      %v2656 = vrcp.pop %v2655
      %v2657 = vmul.f32 1.0, %v2656
      %v2658 = vtanh.pop %v2644
      %v2659 = vxor.u32 %v2645, 2147483648
      %v2660 = vmul.f32 %v2659, 1.442695
      %v2661 = vpow.pop %v2660
      %v2662 = vadd.f32 %v2661, 1.0
      %v2663 = vrcp.pop %v2662
      %v2664 = vmul.f32 1.0, %v2663
      %v2665 = vmul.f32 %v2657, %v2334
      %v2666 = vmul.f32 %v2651, %v2658
      %v2667 = vadd.f32 %v2665, %v2666
      %v2668 = vtanh.pop %v2667
      %v2669 = vmul.f32 %v2664, %v2668
      %v2670 = vpack.c.bf16 %v2669, %v2669
      %2671 = vmatprep.subr.bf16.mxu0 %v1161
      %2672 = vmatpush1.bf16.msra.mxu0 %v1160
      %2673 = vmatprep.subr.bf16.mxu0 %v1165
      %2674 = vmatpush1.bf16.msra.mxu0 %v1164
      %2675 = vmatprep.subr.bf16.mxu0 %v1169
      %2676 = vmatpush1.bf16.msra.mxu0 %v1168
      %2677 = vmatprep.subr.bf16.mxu0 %v1173
      %2678 = vmatpush1.bf16.msra.mxu0 %v1172
      %2679 = vmatprep.subr.bf16.mxu0 %v1177
      %2680 = vmatpush1.bf16.msra.mxu0 %v1176
      %2681 = vmatprep.subr.bf16.mxu0 %v1181
      %2682 = vmatpush1.bf16.msra.mxu0 %v1180
      %2683 = vmatprep.subr.bf16.mxu0 %v1185
      %2684 = vmatpush1.bf16.msra.mxu0 %v1184
      %2685 = vmatprep.subr.bf16.mxu0 %v1189
      %2686 = vmatpush1.bf16.msra.mxu0 %v1188
      %2687 = vmatprep.subr.bf16.mxu0 %v1193
      %2688 = vmatpush1.bf16.msra.mxu0 %v1192
      %2689 = vmatprep.subr.bf16.mxu0 %v1197
      %2690 = vmatpush1.bf16.msra.mxu0 %v1196
      %2691 = vmatprep.subr.bf16.mxu0 %v1201
      %2692 = vmatpush1.bf16.msra.mxu0 %v1200
      %2693 = vmatprep.subr.bf16.mxu0 %v1205
      %2694 = vmatpush1.bf16.msra.mxu0 %v1204
      %2695 = vmatprep.subr.bf16.mxu0 %v1209
      %2696 = vmatpush1.bf16.msra.mxu0 %v1208
      %2697 = vmatprep.subr.bf16.mxu0 %v1213
      %2698 = vmatpush1.bf16.msra.mxu0 %v1212
      %2699 = vmatprep.subr.bf16.mxu0 %v1217
      %2700 = vmatpush1.bf16.msra.mxu0 %v1216
      %2701 = vmatprep.subr.bf16.mxu0 %v1221
      %2702 = vmatpush1.bf16.msra.mxu0 %v1220
      %2703 = vmatprep.mubr.bf16.mxu0 %v2444
      %2704 = vmatmul.mubr.bf16.gmra.mrb[0].mxu0 %v2670
      %v2705 = vpop.f32.mrb[0].mxu0
      %v2706 = vadd.f32 %v571, %v2705
      %v2707 = vpop.f32.mrb[0].mxu0
      %v2708 = vadd.f32 %v572, %v2707
      %v2709 = vpop.f32.mrb[0].mxu0
      %v2710 = vpop.f32.mrb[0].mxu0
      %2711 = vdwg.mxu0
      %2712 = vmatprep.subr.bf16.mxu0 %v1163
      %2713 = vmatpush1.bf16.msra.mxu0 %v1162
      %2714 = vmatprep.subr.bf16.mxu0 %v1167
      %2715 = vmatpush1.bf16.msra.mxu0 %v1166
      %2716 = vmatprep.subr.bf16.mxu0 %v1171
      %2717 = vmatpush1.bf16.msra.mxu0 %v1170
      %2718 = vmatprep.subr.bf16.mxu0 %v1175
      %2719 = vmatpush1.bf16.msra.mxu0 %v1174
      %2720 = vmatprep.subr.bf16.mxu0 %v1179
      %2721 = vmatpush1.bf16.msra.mxu0 %v1178
      %2722 = vmatprep.subr.bf16.mxu0 %v1183
      %2723 = vmatpush1.bf16.msra.mxu0 %v1182
      %2724 = vmatprep.subr.bf16.mxu0 %v1187
      %2725 = vmatpush1.bf16.msra.mxu0 %v1186
      %2726 = vmatprep.subr.bf16.mxu0 %v1191
      %2727 = vmatpush1.bf16.msra.mxu0 %v1190
      %2728 = vmatprep.subr.bf16.mxu0 %v1195
      %2729 = vmatpush1.bf16.msra.mxu0 %v1194
      %2730 = vmatprep.subr.bf16.mxu0 %v1199
      %2731 = vmatpush1.bf16.msra.mxu0 %v1198
      %2732 = vmatprep.subr.bf16.mxu0 %v1203
      %2733 = vmatpush1.bf16.msra.mxu0 %v1202
      %2734 = vmatprep.subr.bf16.mxu0 %v1207
      %2735 = vmatpush1.bf16.msra.mxu0 %v1206
      %2736 = vmatprep.subr.bf16.mxu0 %v1211
      %2737 = vmatpush1.bf16.msra.mxu0 %v1210
      %2738 = vmatprep.subr.bf16.mxu0 %v1215
      %2739 = vmatpush1.bf16.msra.mxu0 %v1214
      %2740 = vmatprep.subr.bf16.mxu0 %v1219
      %2741 = vmatpush1.bf16.msra.mxu0 %v1218
      %2742 = vmatprep.subr.bf16.mxu0 %v1223
      %2743 = vmatpush1.bf16.msra.mxu0 %v1222
      %2744 = vmatprep.mubr.bf16.mxu0 %v2444
      %2745 = vmatmul.mubr.bf16.gmra.mrb[0].mxu0 %v2670
      %v2746 = vpop.f32.mrb[0].mxu0
      %v2747 = vadd.f32 %v573, %v2746
      %v2748 = vpop.f32.mrb[0].mxu0
      %v2749 = vadd.f32 %v574, %v2748
      %v2750 = vpop.f32.mrb[0].mxu0
      %v2751 = vpop.f32.mrb[0].mxu0
      %2752 = vdwg.mxu0
      %v2753 = vxor.u32 %v2706, 2147483648
      %v2754 = vmul.f32 %v2753, 1.442695
      %v2755 = vpow.pop %v2754
      %v2756 = vadd.f32 %v2755, 1.0
      %v2757 = vrcp.pop %v2756
      %v2758 = vmul.f32 1.0, %v2757
      %v2759 = vxor.u32 %v2708, 2147483648
      %v2760 = vmul.f32 %v2759, 1.442695
      %v2761 = vpow.pop %v2760
      %v2762 = vadd.f32 %v2761, 1.0
      %v2763 = vrcp.pop %v2762
      %v2764 = vmul.f32 1.0, %v2763
      %v2765 = vtanh.pop %v2747
      %v2766 = vxor.u32 %v2749, 2147483648
      %v2767 = vmul.f32 %v2766, 1.442695
      %v2768 = vpow.pop %v2767
      %v2769 = vadd.f32 %v2768, 1.0
      %v2770 = vrcp.pop %v2769
      %v2771 = vmul.f32 1.0, %v2770
      %v2772 = vmul.f32 %v2764, %v2441
      %v2773 = vmul.f32 %v2758, %v2765
      %v2774 = vadd.f32 %v2772, %v2773
      %v2775 = vtanh.pop %v2774
      %v2776 = vmul.f32 %v2771, %v2775
      %v2777 = vpack.c.bf16 %v2776, %v2776
      %v2778 = vpack.c.bf16 %v2551, %v2551
      %2779 = vmatprep.subr.bf16.mxu0 %v1653
      %2780 = vmatpush1.bf16.msra.mxu0 %v1652
      %2781 = vmatprep.subr.bf16.mxu0 %v1657
      %2782 = vmatpush1.bf16.msra.mxu0 %v1656
      %2783 = vmatprep.subr.bf16.mxu0 %v1661
      %2784 = vmatpush1.bf16.msra.mxu0 %v1660
      %2785 = vmatprep.subr.bf16.mxu0 %v1665
      %2786 = vmatpush1.bf16.msra.mxu0 %v1664
      %2787 = vmatprep.subr.bf16.mxu0 %v1669
      %2788 = vmatpush1.bf16.msra.mxu0 %v1668
      %2789 = vmatprep.subr.bf16.mxu0 %v1673
      %2790 = vmatpush1.bf16.msra.mxu0 %v1672
      %2791 = vmatprep.subr.bf16.mxu0 %v1677
      %2792 = vmatpush1.bf16.msra.mxu0 %v1676
      %2793 = vmatprep.subr.bf16.mxu0 %v1681
      %2794 = vmatpush1.bf16.msra.mxu0 %v1680
      %2795 = vmatprep.subr.bf16.mxu0 %v1685
      %2796 = vmatpush1.bf16.msra.mxu0 %v1684
      %2797 = vmatprep.subr.bf16.mxu0 %v1689
      %2798 = vmatpush1.bf16.msra.mxu0 %v1688
      %2799 = vmatprep.subr.bf16.mxu0 %v1693
      %2800 = vmatpush1.bf16.msra.mxu0 %v1692
      %2801 = vmatprep.subr.bf16.mxu0 %v1697
      %2802 = vmatpush1.bf16.msra.mxu0 %v1696
      %2803 = vmatprep.subr.bf16.mxu0 %v1701
      %2804 = vmatpush1.bf16.msra.mxu0 %v1700
      %2805 = vmatprep.subr.bf16.mxu0 %v1705
      %2806 = vmatpush1.bf16.msra.mxu0 %v1704
      %2807 = vmatprep.subr.bf16.mxu0 %v1709
      %2808 = vmatpush1.bf16.msra.mxu0 %v1708
      %2809 = vmatprep.subr.bf16.mxu0 %v1713
      %2810 = vmatpush1.bf16.msra.mxu0 %v1712
      %2811 = vmatprep.mubr.bf16.mxu0 %v2778
      %2812 = vmatmul.mubr.bf16.gmra.mrb[0].mxu0 %v2777
      %v2813 = vpop.f32.mrb[0].mxu0
      %v2814 = vadd.f32 %v575, %v2813
      %v2815 = vpop.f32.mrb[0].mxu0
      %v2816 = vadd.f32 %v576, %v2815
      %v2817 = vpop.f32.mrb[0].mxu0
      %v2818 = vpop.f32.mrb[0].mxu0
      %2819 = vdwg.mxu0
      %2820 = vmatprep.subr.bf16.mxu0 %v1655
      %2821 = vmatpush1.bf16.msra.mxu0 %v1654
      %2822 = vmatprep.subr.bf16.mxu0 %v1659
      %2823 = vmatpush1.bf16.msra.mxu0 %v1658
      %2824 = vmatprep.subr.bf16.mxu0 %v1663
      %2825 = vmatpush1.bf16.msra.mxu0 %v1662
      %2826 = vmatprep.subr.bf16.mxu0 %v1667
      %2827 = vmatpush1.bf16.msra.mxu0 %v1666
      %2828 = vmatprep.subr.bf16.mxu0 %v1671
      %2829 = vmatpush1.bf16.msra.mxu0 %v1670
      %2830 = vmatprep.subr.bf16.mxu0 %v1675
      %2831 = vmatpush1.bf16.msra.mxu0 %v1674
      %2832 = vmatprep.subr.bf16.mxu0 %v1679
      %2833 = vmatpush1.bf16.msra.mxu0 %v1678
      %2834 = vmatprep.subr.bf16.mxu0 %v1683
      %2835 = vmatpush1.bf16.msra.mxu0 %v1682
      %2836 = vmatprep.subr.bf16.mxu0 %v1687
      %2837 = vmatpush1.bf16.msra.mxu0 %v1686
      %2838 = vmatprep.subr.bf16.mxu0 %v1691
      %2839 = vmatpush1.bf16.msra.mxu0 %v1690
      %2840 = vmatprep.subr.bf16.mxu0 %v1695
      %2841 = vmatpush1.bf16.msra.mxu0 %v1694
      %2842 = vmatprep.subr.bf16.mxu0 %v1699
      %2843 = vmatpush1.bf16.msra.mxu0 %v1698
      %2844 = vmatprep.subr.bf16.mxu0 %v1703
      %2845 = vmatpush1.bf16.msra.mxu0 %v1702
      %2846 = vmatprep.subr.bf16.mxu0 %v1707
      %2847 = vmatpush1.bf16.msra.mxu0 %v1706
      %2848 = vmatprep.subr.bf16.mxu0 %v1711
      %2849 = vmatpush1.bf16.msra.mxu0 %v1710
      %2850 = vmatprep.subr.bf16.mxu0 %v1715
      %2851 = vmatpush1.bf16.msra.mxu0 %v1714
      %2852 = vmatprep.mubr.bf16.mxu0 %v2778
      %2853 = vmatmul.mubr.bf16.gmra.mrb[0].mxu0 %v2777
      %v2854 = vpop.f32.mrb[0].mxu0
      %v2855 = vadd.f32 %v577, %v2854
      %v2856 = vpop.f32.mrb[0].mxu0
      %v2857 = vadd.f32 %v578, %v2856
      %v2858 = vpop.f32.mrb[0].mxu0
      %v2859 = vpop.f32.mrb[0].mxu0
      %2860 = vdwg.mxu0
      %v2861 = vxor.u32 %v2814, 2147483648
      %v2862 = vmul.f32 %v2861, 1.442695
      %v2863 = vpow.pop %v2862
      %v2864 = vadd.f32 %v2863, 1.0
      %v2865 = vrcp.pop %v2864
      %v2866 = vmul.f32 1.0, %v2865
      %v2867 = vxor.u32 %v2816, 2147483648
      %v2868 = vmul.f32 %v2867, 1.442695
      %v2869 = vpow.pop %v2868
      %v2870 = vadd.f32 %v2869, 1.0
      %v2871 = vrcp.pop %v2870
      %v2872 = vmul.f32 1.0, %v2871
      %v2873 = vtanh.pop %v2855
      %v2874 = vxor.u32 %v2857, 2147483648
      %v2875 = vmul.f32 %v2874, 1.442695
      %v2876 = vpow.pop %v2875
      %v2877 = vadd.f32 %v2876, 1.0
      %v2878 = vrcp.pop %v2877
      %v2879 = vmul.f32 1.0, %v2878
      %v2880 = vmul.f32 %v2872, %v2549
      %v2881 = vmul.f32 %v2866, %v2873
      %v2882 = vadd.f32 %v2880, %v2881
      %v2883 = vtanh.pop %v2882
      %v2884 = vmul.f32 %v2879, %v2883
    $region82: #{tpu_custom_call.1} parent=1 // loop_footer
      %s584 = sadd.s32 1, %s580
    $region83: #{tpu_custom_call.1} parent=1 // loop_footer_branch
      %579 = sbr.rel target = $region79
    $region84: #{tpu_custom_call.1} parent=1 // loop_exit
      _
    %v2885 = vpack.c.bf16 %v589, %v589
    %v2886 = vld [vmem:[#allocation17] sm:$0xf]
    %v2887 = vld [vmem:[#allocation17 + $0x4] sm:$0xf]
    %v2888 = vld [vmem:[#allocation17 + $0x8] sm:$0xf]
    %v2889 = vld [vmem:[#allocation17 + $0xc] sm:$0xf]
    %v2890 = vld [vmem:[#allocation17 + $0x10] sm:$0xf]
    %v2891 = vld [vmem:[#allocation17 + $0x14] sm:$0xf]
    %v2892 = vld [vmem:[#allocation17 + $0x18] sm:$0xf]
    %v2893 = vld [vmem:[#allocation17 + $0x1c] sm:$0xf]
    %v2894 = vld [vmem:[#allocation17 + $0x20] sm:$0xf]
    %v2895 = vld [vmem:[#allocation17 + $0x24] sm:$0xf]
    %v2896 = vld [vmem:[#allocation17 + $0x28] sm:$0xf]
    %v2897 = vld [vmem:[#allocation17 + $0x2c] sm:$0xf]
    %v2898 = vld [vmem:[#allocation17 + $0x30] sm:$0xf]
    %v2899 = vld [vmem:[#allocation17 + $0x34] sm:$0xf]
    %v2900 = vld [vmem:[#allocation17 + $0x38] sm:$0xf]
    %v2901 = vld [vmem:[#allocation17 + $0x3c] sm:$0xf]
    %v2902 = vld [vmem:[%s9] sm:$0xff]
    %v2919 = vunpack.c.l.b16 %v2886
    %v2920 = vunpack.c.l.b16 %v2887
    %v2921 = vunpack.c.l.b16 %v2888
    %v2922 = vunpack.c.l.b16 %v2889
    %v2923 = vunpack.c.l.b16 %v2890
    %v2924 = vunpack.c.l.b16 %v2891
    %v2925 = vunpack.c.l.b16 %v2892
    %v2926 = vunpack.c.l.b16 %v2893
    %v2927 = vunpack.c.l.b16 %v2894
    %v2928 = vunpack.c.l.b16 %v2895
    %v2929 = vunpack.c.l.b16 %v2896
    %v2930 = vunpack.c.l.b16 %v2897
    %v2931 = vunpack.c.l.b16 %v2898
    %v2932 = vunpack.c.l.b16 %v2899
    %v2933 = vunpack.c.l.b16 %v2900
    %v2934 = vunpack.c.l.b16 %v2901
    %v2935 = vpack.c.b16 %v2920, %v2919
    %v2936 = vpack.c.b16 %v2922, %v2921
    %v2937 = vpack.c.b16 %v2924, %v2923
    %v2938 = vpack.c.b16 %v2926, %v2925
    %v2939 = vpack.c.b16 %v2928, %v2927
    %v2940 = vpack.c.b16 %v2930, %v2929
    %v2941 = vpack.c.b16 %v2932, %v2931
    %v2942 = vpack.c.b16 %v2934, %v2933
    %2951 = vmatprep.subr.bf16.mxu0 0
    %2952 = vmatpush1.bf16.msra.mxu0 %v2935
    %2953 = vmatprep.subr.bf16.mxu0 0
    %2954 = vmatpush1.bf16.msra.mxu0 %v2936
    %2955 = vmatprep.subr.bf16.mxu0 0
    %2956 = vmatpush1.bf16.msra.mxu0 %v2937
    %2957 = vmatprep.subr.bf16.mxu0 0
    %2958 = vmatpush1.bf16.msra.mxu0 %v2938
    %2959 = vmatprep.subr.bf16.mxu0 0
    %2960 = vmatpush1.bf16.msra.mxu0 %v2939
    %2961 = vmatprep.subr.bf16.mxu0 0
    %2962 = vmatpush1.bf16.msra.mxu0 %v2940
    %2963 = vmatprep.subr.bf16.mxu0 0
    %2964 = vmatpush1.bf16.msra.mxu0 %v2941
    %2965 = vmatprep.subr.bf16.mxu0 0
    %2966 = vmatpush1.bf16.msra.mxu0 %v2942
    %2967 = vmatprep.subr.bf16.mxu0 0
    %2968 = vmatpush1.bf16.msra.mxu0 0
    %2969 = vmatprep.subr.bf16.mxu0 0
    %2970 = vmatpush1.bf16.msra.mxu0 0
    %2971 = vmatprep.subr.bf16.mxu0 0
    %2972 = vmatpush1.bf16.msra.mxu0 0
    %2973 = vmatprep.subr.bf16.mxu0 0
    %2974 = vmatpush1.bf16.msra.mxu0 0
    %2975 = vmatprep.subr.bf16.mxu0 0
    %2976 = vmatpush1.bf16.msra.mxu0 0
    %2977 = vmatprep.subr.bf16.mxu0 0
    %2978 = vmatpush1.bf16.msra.mxu0 0
    %2979 = vmatprep.subr.bf16.mxu0 0
    %2980 = vmatpush1.bf16.msra.mxu0 0
    %2981 = vmatprep.subr.bf16.mxu0 0
    %2982 = vmatpush1.bf16.msra.mxu0 0
    %2983 = vmatprep.mubr.bf16.mxu0 0
    %2984 = vmatmul.mubr.bf16.gmra.mrb[0].mxu0 %v2885
    %v2985 = vpop.f32.mrb[0].mxu0
    %v2986 = vadd.f32 %v2902, %v2985
    %v2987 = vpop.f32.mrb[0].mxu0
    %v2988 = vpop.f32.mrb[0].mxu0
    %v2989 = vpop.f32.mrb[0].mxu0
    %2990 = vdwg.mxu0
    %v2991 = vmax.f32 %v2986, 0.0
    %v2992 = vmul.f32 %v2991, %v2991
    %2993 = vadd.xlane.f32.xlu0 %v2992
    %v2994 = vpop.xlane.xlu0 %2993
    %v2995 = vrsqrt.pop %v2994
    %v2996 = vmul.f32 %v2991, %v2995
    %2997 = vst [vmem:[#allocation18] sm:$0xff] %v2996
    // Predicated region
    $region85: #{tpu_custom_call.1} parent=1 // pred_check
      _
    $region86: #{tpu_custom_call.1} parent=1 // pred_check_branch
      %2999 = sbr.rel (0) target = $region88
    $region87: #{tpu_custom_call.1} parent=1 // pred_region
      %s3001 = ssub.s32 128, 128
      %3002 = vsyncadd [#allocation5], %s3001
      %s3004 = sshll.u32 [#allocation18], 4
      %s3005 = int_to_ptr.vmem [resolvable:$true] %s3004
      %3007 = dma.vmem_to_hbm [thread:$0]  %s3005, 128, %s10, [#allocation5]
    $region88: #{tpu_custom_call.1} parent=1 // pred_fallthru
      _
    // Predicated region
    $region89: #{tpu_custom_call.1} parent=1 // pred_check
      _
    $region90: #{tpu_custom_call.1} parent=1 // pred_check_branch
      %3009 = sbr.rel (0) target = $region92
    $region91: #{tpu_custom_call.1} parent=1 // pred_region
      %3010 = dma.done [#allocation5], 128
    $region92: #{tpu_custom_call.1} parent=1 // pred_fallthru
      _
    %3011 = vsyncpa [#allocation4], 1
    %3012 = vsyncpa [#allocation7], 1
    %3013 = vsyncpa [#allocation10], 1
    %3014 = vsyncpa [#allocation13], 1
    %3015 = vsyncpa [#allocation16], 1
    %3016 = vsyncpa [#allocation5], 1

</llo_original>
